<compile_context>
chip_gen: v7x
topology: tpu7x:2x2x1
jax: 0.10.0
libtpu: 0.0.40
codegen_flags: <defaults>
</compile_context>

<pallas_src>
import numpy as np

import jax
import jax.numpy as jnp
from jax import lax
from jax.experimental import pallas as pl
from jax.experimental.pallas import tpu as pltpu


# ----------------------------------------------------------------------------- #
# Host-side constants: orthonormal 8x8 DCT matrix and JPEG quantization tables.
# ----------------------------------------------------------------------------- #

_LUMA_Q = np.array(
    [[16, 11, 10, 16, 24, 40, 51, 61],
     [12, 12, 14, 19, 26, 58, 60, 55],
     [14, 13, 16, 24, 40, 57, 69, 56],
     [14, 17, 22, 29, 51, 87, 80, 62],
     [18, 22, 37, 56, 68, 109, 103, 77],
     [24, 35, 55, 64, 81, 104, 113, 92],
     [49, 64, 78, 87, 103, 121, 120, 101],
     [72, 92, 95, 98, 112, 100, 103, 99]], dtype=np.float32)

_CHROMA_Q = np.array(
    [[17, 18, 24, 47, 99, 99, 99, 99],
     [18, 21, 26, 66, 99, 99, 99, 99],
     [24, 26, 56, 99, 99, 99, 99, 99],
     [47, 66, 99, 99, 99, 99, 99, 99],
     [99, 99, 99, 99, 99, 99, 99, 99],
     [99, 99, 99, 99, 99, 99, 99, 99],
     [99, 99, 99, 99, 99, 99, 99, 99],
     [99, 99, 99, 99, 99, 99, 99, 99]], dtype=np.float32)


def _dct8():
    """Orthonormal DCT-II matrix D[u, x] = c(u) cos((2x+1) u pi / 16)."""
    u = np.arange(8, dtype=np.float64)[:, None]
    x = np.arange(8, dtype=np.float64)[None, :]
    d = np.cos((2.0 * x + 1.0) * u * np.pi / 16.0)
    d[0, :] *= np.sqrt(1.0 / 8.0)
    d[1:, :] *= np.sqrt(2.0 / 8.0)
    return d.astype(np.float32)


def _scale_qtable(table, quality):
    """libjpeg quality scaling (jpeg_quality_scaling)."""
    quality = max(1, min(100, int(quality)))
    if quality < 50:
        scale = 5000.0 / quality
    else:
        scale = 200.0 - 2.0 * quality
    q = np.floor((table * scale + 50.0) / 100.0)
    return np.clip(q, 1.0, 255.0).astype(np.float32)


# MXU contraction width: 256 on v6e/v7x (2x256x256); use tile_cap=128 on v5e (4x128x128).
_MXU_TILE_CAP = 256


def _pick_row_tile(H, cap=_MXU_TILE_CAP):
    """Row tile: multiple of 8, divides H, capped at the MXU width."""
    if H <= cap:
        return H
    t = (cap // 8) * 8
    while t > 8 and H % t:
        t -= 8
    return t


def _pick_col_tile(W, cap=_MXU_TILE_CAP):
    """Column (lane) tile: multiple of 128 (or the full width), divides W, capped."""
    if W <= cap or W % 128:
        # TODO(synk): replicate-pad W to the next 128 multiple on the host so very wide
        # non-128-multiple images can still be lane-tiled with unmasked stores.
        return W
    for t in (256, 128):
        if t <= cap and W % t == 0:
            return t
    return W


# ----------------------------------------------------------------------------- #
# Pallas kernel
# ----------------------------------------------------------------------------- #

def _jpeg_kernel(ms_ref, x_ref, dh_ref, dht_ref, dw_ref, dwt_ref, q_ref, qinv_ref,
                 o_ref):
    """One (batch, row-tile, col-tile) block: (3, TH, TW) in, (3, TH, TW) out."""
    mean = ms_ref[0]
    std = ms_ref[1]

    th = x_ref.shape[1]
    tw = x_ref.shape[2]
    reps = th // 8
    prec = lax.Precision.HIGHEST          # pin MXU precision (f32 multipass)
    f32 = jnp.float32

    dh = dh_ref[...]      # (TH, TH) block-diagonal DCT (rows)
    dht = dht_ref[...]    # (TH, TH) transpose
    dw = dw_ref[...]      # (TW, TW) block-diagonal DCT (cols)
    dwt = dwt_ref[...]    # (TW, TW) transpose

    def to_255(v):
        # x_denorm = clip(std*x + mean, 0, 1) scaled to [0, 255]
        return jnp.clip(std * v.astype(f32) + mean, 0.0, 1.0) * 255.0

    r = to_255(x_ref[0])
    g = to_255(x_ref[1])
    b = to_255(x_ref[2])

    # RGB -> YCbCr (JFIF full-range).  Chroma is kept centered: the +128 level shift and
    # the pre-DCT -128 centering cancel exactly, so only luma carries the -128 offset.
    y = 0.299 * r + 0.587 * g + 0.114 * b - 128.0
    cb = -0.168736 * r - 0.331264 * g + 0.5 * b
    cr = 0.5 * r - 0.418688 * g - 0.081312 * b

    # Row DCT per channel (block-diagonal => per-8x8 DCT along rows).
    ay = jnp.dot(dh, y, preferred_element_type=f32, precision=prec)
    acb = jnp.dot(dh, cb, preferred_element_type=f32, precision=prec)
    acr = jnp.dot(dh, cr, preferred_element_type=f32, precision=prec)

    # Stack channels along rows (sublane-aligned) and fuse the column transforms.
    arows = jnp.concatenate([ay, acb, acr], axis=0)                    # (3*TH, TW)
    coef = jnp.dot(arows, dwt, preferred_element_type=f32, precision=prec)

    # Quantize / dequantize (the lossy JPEG step).  The quality-scaled tables repeat
    # every 8 rows, so a (8, TW) slab is tiled in-kernel: luma rows first, then chroma.
    qy8 = q_ref[0]
    qc8 = q_ref[1]
    qiy8 = qinv_ref[0]
    qic8 = qinv_ref[1]
    q_full = jnp.concatenate([qy8] * reps + [qc8] * (2 * reps), axis=0)      # (3*TH, TW)
    qi_full = jnp.concatenate([qiy8] * reps + [qic8] * (2 * reps), axis=0)   # (3*TH, TW)
    deq = jnp.round(coef * qi_full) * q_full

    # Inverse column transform (fused), then inverse row transform per channel.
    e = jnp.dot(deq, dw, preferred_element_type=f32, precision=prec)         # (3*TH, TW)
    y_r = jnp.dot(dht, e[:th], preferred_element_type=f32, precision=prec) + 128.0
    cb_r = jnp.dot(dht, e[th:2 * th], preferred_element_type=f32, precision=prec)
    cr_r = jnp.dot(dht, e[2 * th:], preferred_element_type=f32, precision=prec)

    r_o = y_r + 1.402 * cr_r
    g_o = y_r - 0.344136 * cb_r - 0.714136 * cr_r
    b_o = y_r + 1.772 * cb_r

    def to_norm(v):
        # decoded JPEG lives on the uint8 grid -> round, back to [0,1], renormalize
        u = jnp.round(jnp.clip(v, 0.0, 255.0)) * (1.0 / 255.0)
        return ((u - mean) / std).astype(o_ref.dtype)

    o_ref[0] = to_norm(r_o)
    o_ref[1] = to_norm(g_o)
    o_ref[2] = to_norm(b_o)


# ----------------------------------------------------------------------------- #
# Wrapper
# ----------------------------------------------------------------------------- #

def jpeg_compress_pallas(x, quality, mean=0.5, std=0.5,
                         row_tile=None, col_tile=None, tile_cap=_MXU_TILE_CAP):
    """Approximate-JPEG forward for x of shape (B, 3, H, W) or (3, H, W).

    H and W must be multiples of 8 (JPEG MCU size).
    """
    squeeze = False
    if x.ndim == 3:
        x = x[None]
        squeeze = True
    B, C, H, W = x.shape
    if C != 3:
        # TODO(synk): grayscale (C==1) path of the PyTorch op.
        raise NotImplementedError("jpeg_compress_pallas supports 3-channel input")
    if H % 8 or W % 8:
        # TODO(synk): edge-replication padding to MCU multiples, as real JPEG does.
        raise NotImplementedError("H and W must be multiples of 8")

    TH = _pick_row_tile(H, tile_cap) if row_tile is None else int(row_tile)
    TW = _pick_col_tile(W, tile_cap) if col_tile is None else int(col_tile)
    assert TH % 8 == 0 and H % TH == 0
    assert TW % 8 == 0 and W % TW == 0
    assert TW == W or TW % 128 == 0, "col_tile must be a multiple of 128 or the full width"

    dct8 = _dct8()
    dh = np.kron(np.eye(TH // 8, dtype=np.float32), dct8)          # (TH, TH)
    dw = np.kron(np.eye(TW // 8, dtype=np.float32), dct8)          # (TW, TW)
    dht = np.ascontiguousarray(dh.T)
    dwt = np.ascontiguousarray(dw.T)

    # (2, 8, TW) quantization slabs: the row pattern repeats every 8 sublanes.
    qy = np.tile(_scale_qtable(_LUMA_Q, quality), (1, TW // 8))
    qc = np.tile(_scale_qtable(_CHROMA_Q, quality), (1, TW // 8))
    q = np.stack([qy, qc], axis=0).astype(np.float32)               # (2, 8, TW)
    qinv = (1.0 / q).astype(np.float32)

    ms = jnp.asarray([mean, std], dtype=jnp.float32)                # SMEM scalars

    grid = (B, H // TH, W // TW)

    out = pl.pallas_call(
        _jpeg_kernel,
        out_shape=jax.ShapeDtypeStruct((B, C, H, W), x.dtype),
        grid_spec=pltpu.PrefetchScalarGridSpec(
            num_scalar_prefetch=0,
            grid=grid,
            in_specs=[
                pl.BlockSpec(memory_space=pltpu.MemorySpace.SMEM),              # mean/std
                pl.BlockSpec((None, 3, TH, TW), lambda b, h, w: (b, 0, h, w)),  # x tile
                pl.BlockSpec((TH, TH), lambda b, h, w: (0, 0)),                 # DH
                pl.BlockSpec((TH, TH), lambda b, h, w: (0, 0)),                 # DH^T
                pl.BlockSpec((TW, TW), lambda b, h, w: (0, 0)),                 # DW
                pl.BlockSpec((TW, TW), lambda b, h, w: (0, 0)),                 # DW^T
                pl.BlockSpec((2, 8, TW), lambda b, h, w: (0, 0, 0)),            # Q slabs
                pl.BlockSpec((2, 8, TW), lambda b, h, w: (0, 0, 0)),            # 1/Q slabs
            ],
            out_specs=pl.BlockSpec((None, 3, TH, TW), lambda b, h, w: (b, 0, h, w)),
        ),
        compiler_params=pltpu.CompilerParams(
            dimension_semantics=("parallel", "parallel", "parallel"),
            vmem_limit_bytes=32 * 1024 * 1024,
        ),
    )(ms, x,
      jnp.asarray(dh), jnp.asarray(dht), jnp.asarray(dw), jnp.asarray(dwt),
      jnp.asarray(q), jnp.asarray(qinv))
    return out[0] if squeeze else out


class JPEGCompress:
    """JAX/Pallas equivalent of the PyTorch JPEGCompress module (forward pass)."""

    def __init__(self, quality: int):
        self.quality = int(quality)

    def __str__(self):
        return f"JPEGCompress(quality={self.quality})"

    def __call__(self, x, mean=0.5, std=0.5):
        return jpeg_compress_pallas(x, self.quality, mean, std)


# ----------------------------------------------------------------------------- #
# Pure-JAX reference of the identical approximate-JPEG math (for validation)
# ----------------------------------------------------------------------------- #

def _jpeg_reference(x, quality, mean=0.5, std=0.5):
    B, C, H, W = x.shape
    prec = lax.Precision.HIGHEST
    dct8 = _dct8()
    dh = jnp.asarray(np.kron(np.eye(H // 8, dtype=np.float32), dct8))
    dw = jnp.asarray(np.kron(np.eye(W // 8, dtype=np.float32), dct8))
    qy = np.tile(_scale_qtable(_LUMA_Q, quality), (H // 8, W // 8)).astype(np.float32)
    qc = np.tile(_scale_qtable(_CHROMA_Q, quality), (H // 8, W // 8)).astype(np.float32)
    qyi = (1.0 / qy).astype(np.float32)
    qci = (1.0 / qc).astype(np.float32)
    qy, qc, qyi, qci = map(jnp.asarray, (qy, qc, qyi, qci))

    img = jnp.clip(std * x + mean, 0.0, 1.0) * 255.0
    r, g, b = img[:, 0], img[:, 1], img[:, 2]
    y = 0.299 * r + 0.587 * g + 0.114 * b - 128.0
    cb = -0.168736 * r - 0.331264 * g + 0.5 * b
    cr = 0.5 * r - 0.418688 * g - 0.081312 * b

    def chan(c, q, qinv):
        coef = jnp.einsum("uk,bkw->buw", dh, c, precision=prec)     # DH @ X
        coef = jnp.einsum("buw,vw->buv", coef, dw, precision=prec)  # @ DW^T
        deq = jnp.round(coef * qinv) * q
        rec = jnp.einsum("uk,buw->bkw", dh, deq, precision=prec)    # DH^T @ C
        rec = jnp.einsum("bkw,wv->bkv", rec, dw, precision=prec)    # @ DW
        return rec

    y_r = chan(y, qy, qyi) + 128.0
    cb_r = chan(cb, qc, qci)
    cr_r = chan(cr, qc, qci)

    r_o = y_r + 1.402 * cr_r
    g_o = y_r - 0.344136 * cb_r - 0.714136 * cr_r
    b_o = y_r + 1.772 * cb_r
    out = jnp.stack([r_o, g_o, b_o], axis=1)
    out = jnp.round(jnp.clip(out, 0.0, 255.0)) * (1.0 / 255.0)
    return ((out - mean) / std).astype(x.dtype)


if __name__ == "__main__":
    key = jax.random.PRNGKey(0)
    quality = 80
    module = JPEGCompress(quality=quality)

    cases = [
        ((2, 3, 16, 16), {}),                                  # tiny, full-dim blocks
        ((2, 3, 32, 256), dict(row_tile=16, col_tile=128)),    # >=128 wide, multi-tile grid
        ((2, 3, 256, 384), {}),                                # default tile picker, W tiled
    ]
    for i, (shape, tile_kwargs) in enumerate(cases):
        raw = jax.random.uniform(jax.random.fold_in(key, i), shape, dtype=jnp.float32)
        x = (raw - 0.5) / 0.5   # pixel = (raw - mean) / std, raw in [0, 1]

        if i == 0:
            out = module(x)     # exercise the module wrapper once
        else:
            out = jpeg_compress_pallas(x, quality, **tile_kwargs)
        out = jax.block_until_ready(out)

        assert out.shape == x.shape and out.dtype == x.dtype
        assert bool(jnp.all(jnp.isfinite(out)))
        # The codec must actually be lossy on high-frequency noise images.
        assert float(jnp.mean(jnp.abs(out - x))) > 1e-3

        ref = _jpeg_reference(x, quality)
        err = jnp.abs(out - ref)
        mean_err = float(jnp.mean(err))
        frac_bad = float(jnp.mean((err > 0.15).astype(jnp.float32)))
        # Tolerant compare: accumulation-order / precision differences can flip a rare
        # round() at a .5 quantization boundary; require agreement almost everywhere.
        assert mean_err < 0.02, f"case {i}: mean abs err too large: {mean_err}"
        assert frac_bad < 0.01, f"case {i}: too many mismatching pixels: {frac_bad}"

    print("KERNEL_OK")
</pallas_src>

<mosaic_0001>
module attributes {stable_mosaic.version = 11 : i64} {
  func.func @_jpeg_kernel(%arg0: i32, %arg1: i32, %arg2: i32, %arg3: memref<2xf32, #tpu.memory_space<smem>>, %arg4: memref<1x3x16x16xf32, #tpu.memory_space<vmem>>, %arg5: memref<16x16xf32, #tpu.memory_space<vmem>>, %arg6: memref<16x16xf32, #tpu.memory_space<vmem>>, %arg7: memref<16x16xf32, #tpu.memory_space<vmem>>, %arg8: memref<16x16xf32, #tpu.memory_space<vmem>>, %arg9: memref<2x8x16xf32, #tpu.memory_space<vmem>>, %arg10: memref<2x8x16xf32, #tpu.memory_space<vmem>>, %arg11: memref<1x3x16x16xf32, #tpu.memory_space<vmem>>) attributes {dimension_semantics = [#tpu.dimension_semantics<parallel>, #tpu.dimension_semantics<parallel>, #tpu.dimension_semantics<parallel>], iteration_bounds = array<i64: 2, 1, 1>, scalar_prefetch = 0 : i64, scratch_operands = 0 : i64, tpu.core_type = #tpu.core_type<tc>, window_params = [{transform_indices = @transform_0, window_bounds = array<i64: 2>}, {transform_indices = @transform_1, window_bounds = array<i64: 1, 3, 16, 16>}, {pipeline_mode = #tpu.pipeline_mode<synchronous>, transform_indices = @transform_2, window_bounds = array<i64: 16, 16>}, {pipeline_mode = #tpu.pipeline_mode<synchronous>, transform_indices = @transform_3, window_bounds = array<i64: 16, 16>}, {pipeline_mode = #tpu.pipeline_mode<synchronous>, transform_indices = @transform_4, window_bounds = array<i64: 16, 16>}, {pipeline_mode = #tpu.pipeline_mode<synchronous>, transform_indices = @transform_5, window_bounds = array<i64: 16, 16>}, {pipeline_mode = #tpu.pipeline_mode<synchronous>, transform_indices = @transform_6, window_bounds = array<i64: 2, 8, 16>}, {pipeline_mode = #tpu.pipeline_mode<synchronous>, transform_indices = @transform_7, window_bounds = array<i64: 2, 8, 16>}, {transform_indices = @transform_8, window_bounds = array<i64: 1, 3, 16, 16>}]} {
    %c0 = arith.constant 0 : index
    %0 = memref.load %arg3[%c0] : memref<2xf32, #tpu.memory_space<smem>>
    %c1 = arith.constant 1 : index
    %1 = memref.load %arg3[%c1] : memref<2xf32, #tpu.memory_space<smem>>
    %c0_0 = arith.constant 0 : index
    %c0_1 = arith.constant 0 : index
    %2 = vector.load %arg5[%c0_0, %c0_1] : memref<16x16xf32, #tpu.memory_space<vmem>>, vector<16x16xf32>
    %c0_2 = arith.constant 0 : index
    %c0_3 = arith.constant 0 : index
    %3 = vector.load %arg6[%c0_2, %c0_3] : memref<16x16xf32, #tpu.memory_space<vmem>>, vector<16x16xf32>
    %c0_4 = arith.constant 0 : index
    %c0_5 = arith.constant 0 : index
    %4 = vector.load %arg7[%c0_4, %c0_5] : memref<16x16xf32, #tpu.memory_space<vmem>>, vector<16x16xf32>
    %c0_6 = arith.constant 0 : index
    %c0_7 = arith.constant 0 : index
    %5 = vector.load %arg8[%c0_6, %c0_7] : memref<16x16xf32, #tpu.memory_space<vmem>>, vector<16x16xf32>
    %c0_8 = arith.constant 0 : index
    %c0_9 = arith.constant 0 : index
    %c0_10 = arith.constant 0 : index
    %c0_11 = arith.constant 0 : index
    %6 = vector.load %arg4[%c0_8, %c0_9, %c0_10, %c0_11] : memref<1x3x16x16xf32, #tpu.memory_space<vmem>>, vector<1x1x16x16xf32>
    %7 = vector.shape_cast %6 : vector<1x1x16x16xf32> to vector<16x16xf32>
    %8 = vector.broadcast %1 : f32 to vector<16x16xf32>
    %9 = arith.mulf %8, %7 : vector<16x16xf32>
    %10 = vector.broadcast %0 : f32 to vector<16x16xf32>
    %11 = arith.addf %9, %10 : vector<16x16xf32>
    %cst = arith.constant 0.000000e+00 : f32
    %cst_12 = arith.constant 1.000000e+00 : f32
    %12 = vector.broadcast %cst : f32 to vector<16x16xf32>
    %13 = arith.maximumf %12, %11 : vector<16x16xf32>
    %14 = vector.broadcast %cst_12 : f32 to vector<16x16xf32>
    %15 = arith.minimumf %14, %13 : vector<16x16xf32>
    %cst_13 = arith.constant 2.550000e+02 : f32
    %16 = vector.broadcast %cst_13 : f32 to vector<16x16xf32>
    %17 = arith.mulf %15, %16 : vector<16x16xf32>
    %c0_14 = arith.constant 0 : index
    %c1_15 = arith.constant 1 : index
    %c0_16 = arith.constant 0 : index
    %c0_17 = arith.constant 0 : index
    %18 = vector.load %arg4[%c0_14, %c1_15, %c0_16, %c0_17] : memref<1x3x16x16xf32, #tpu.memory_space<vmem>>, vector<1x1x16x16xf32>
    %19 = vector.shape_cast %18 : vector<1x1x16x16xf32> to vector<16x16xf32>
    %20 = vector.broadcast %1 : f32 to vector<16x16xf32>
    %21 = arith.mulf %20, %19 : vector<16x16xf32>
    %22 = vector.broadcast %0 : f32 to vector<16x16xf32>
    %23 = arith.addf %21, %22 : vector<16x16xf32>
    %cst_18 = arith.constant 0.000000e+00 : f32
    %cst_19 = arith.constant 1.000000e+00 : f32
    %24 = vector.broadcast %cst_18 : f32 to vector<16x16xf32>
    %25 = arith.maximumf %24, %23 : vector<16x16xf32>
    %26 = vector.broadcast %cst_19 : f32 to vector<16x16xf32>
    %27 = arith.minimumf %26, %25 : vector<16x16xf32>
    %cst_20 = arith.constant 2.550000e+02 : f32
    %28 = vector.broadcast %cst_20 : f32 to vector<16x16xf32>
    %29 = arith.mulf %27, %28 : vector<16x16xf32>
    %c0_21 = arith.constant 0 : index
    %c2 = arith.constant 2 : index
    %c0_22 = arith.constant 0 : index
    %c0_23 = arith.constant 0 : index
    %30 = vector.load %arg4[%c0_21, %c2, %c0_22, %c0_23] : memref<1x3x16x16xf32, #tpu.memory_space<vmem>>, vector<1x1x16x16xf32>
    %31 = vector.shape_cast %30 : vector<1x1x16x16xf32> to vector<16x16xf32>
    %32 = vector.broadcast %1 : f32 to vector<16x16xf32>
    %33 = arith.mulf %32, %31 : vector<16x16xf32>
    %34 = vector.broadcast %0 : f32 to vector<16x16xf32>
    %35 = arith.addf %33, %34 : vector<16x16xf32>
    %cst_24 = arith.constant 0.000000e+00 : f32
    %cst_25 = arith.constant 1.000000e+00 : f32
    %36 = vector.broadcast %cst_24 : f32 to vector<16x16xf32>
    %37 = arith.maximumf %36, %35 : vector<16x16xf32>
    %38 = vector.broadcast %cst_25 : f32 to vector<16x16xf32>
    %39 = arith.minimumf %38, %37 : vector<16x16xf32>
    %cst_26 = arith.constant 2.550000e+02 : f32
    %40 = vector.broadcast %cst_26 : f32 to vector<16x16xf32>
    %41 = arith.mulf %39, %40 : vector<16x16xf32>
    %cst_27 = arith.constant 2.990000e-01 : f32
    %42 = vector.broadcast %cst_27 : f32 to vector<16x16xf32>
    %43 = arith.mulf %42, %17 : vector<16x16xf32>
    %cst_28 = arith.constant 5.870000e-01 : f32
    %44 = vector.broadcast %cst_28 : f32 to vector<16x16xf32>
    %45 = arith.mulf %44, %29 : vector<16x16xf32>
    %46 = arith.addf %43, %45 : vector<16x16xf32>
    %cst_29 = arith.constant 1.140000e-01 : f32
    %47 = vector.broadcast %cst_29 : f32 to vector<16x16xf32>
    %48 = arith.mulf %47, %41 : vector<16x16xf32>
    %49 = arith.addf %46, %48 : vector<16x16xf32>
    %cst_30 = arith.constant 1.280000e+02 : f32
    %50 = vector.broadcast %cst_30 : f32 to vector<16x16xf32>
    %51 = arith.subf %49, %50 : vector<16x16xf32>
    %cst_31 = arith.constant -1.687360e-01 : f32
    %52 = vector.broadcast %cst_31 : f32 to vector<16x16xf32>
    %53 = arith.mulf %52, %17 : vector<16x16xf32>
    %cst_32 = arith.constant 3.312640e-01 : f32
    %54 = vector.broadcast %cst_32 : f32 to vector<16x16xf32>
    %55 = arith.mulf %54, %29 : vector<16x16xf32>
    %56 = arith.subf %53, %55 : vector<16x16xf32>
    %cst_33 = arith.constant 5.000000e-01 : f32
    %57 = vector.broadcast %cst_33 : f32 to vector<16x16xf32>
    %58 = arith.mulf %57, %41 : vector<16x16xf32>
    %59 = arith.addf %56, %58 : vector<16x16xf32>
    %cst_34 = arith.constant 5.000000e-01 : f32
    %60 = vector.broadcast %cst_34 : f32 to vector<16x16xf32>
    %61 = arith.mulf %60, %17 : vector<16x16xf32>
    %cst_35 = arith.constant 4.186880e-01 : f32
    %62 = vector.broadcast %cst_35 : f32 to vector<16x16xf32>
    %63 = arith.mulf %62, %29 : vector<16x16xf32>
    %64 = arith.subf %61, %63 : vector<16x16xf32>
    %cst_36 = arith.constant 8.131200e-02 : f32
    %65 = vector.broadcast %cst_36 : f32 to vector<16x16xf32>
    %66 = arith.mulf %65, %41 : vector<16x16xf32>
    %67 = arith.subf %64, %66 : vector<16x16xf32>
    %cst_37 = arith.constant dense<0.000000e+00> : vector<16x16xf32>
    %68 = tpu.matmul %2, %51, %cst_37 {dimension_numbers = #tpu.dot_dimension_numbers<[1], [0], [0], [1], [0, 0, 1, 1], [], []>, precision = #tpu.contract_precision<fp32>} : vector<16x16xf32>, vector<16x16xf32>, vector<16x16xf32> -> vector<16x16xf32>
    %cst_38 = arith.constant dense<0.000000e+00> : vector<16x16xf32>
    %69 = tpu.matmul %2, %59, %cst_38 {dimension_numbers = #tpu.dot_dimension_numbers<[1], [0], [0], [1], [0, 0, 1, 1], [], []>, precision = #tpu.contract_precision<fp32>} : vector<16x16xf32>, vector<16x16xf32>, vector<16x16xf32> -> vector<16x16xf32>
    %cst_39 = arith.constant dense<0.000000e+00> : vector<16x16xf32>
    %70 = tpu.matmul %2, %67, %cst_39 {dimension_numbers = #tpu.dot_dimension_numbers<[1], [0], [0], [1], [0, 0, 1, 1], [], []>, precision = #tpu.contract_precision<fp32>} : vector<16x16xf32>, vector<16x16xf32>, vector<16x16xf32> -> vector<16x16xf32>
    %71 = tpu.concatenate %68, %69, %70 in 0 : vector<16x16xf32>, vector<16x16xf32>, vector<16x16xf32> -> vector<48x16xf32>
    %cst_40 = arith.constant dense<0.000000e+00> : vector<48x16xf32>
    %72 = tpu.matmul %71, %5, %cst_40 {dimension_numbers = #tpu.dot_dimension_numbers<[1], [0], [0], [1], [0, 0, 1, 1], [], []>, precision = #tpu.contract_precision<fp32>} : vector<48x16xf32>, vector<16x16xf32>, vector<48x16xf32> -> vector<48x16xf32>
    %c0_41 = arith.constant 0 : index
    %c0_42 = arith.constant 0 : index
    %c0_43 = arith.constant 0 : index
    %73 = vector.load %arg9[%c0_41, %c0_42, %c0_43] : memref<2x8x16xf32, #tpu.memory_space<vmem>>, vector<1x8x16xf32>
    %74 = vector.shape_cast %73 : vector<1x8x16xf32> to vector<8x16xf32>
    %c1_44 = arith.constant 1 : index
    %c0_45 = arith.constant 0 : index
    %c0_46 = arith.constant 0 : index
    %75 = vector.load %arg9[%c1_44, %c0_45, %c0_46] : memref<2x8x16xf32, #tpu.memory_space<vmem>>, vector<1x8x16xf32>
    %76 = vector.shape_cast %75 : vector<1x8x16xf32> to vector<8x16xf32>
    %c0_47 = arith.constant 0 : index
    %c0_48 = arith.constant 0 : index
    %c0_49 = arith.constant 0 : index
    %77 = vector.load %arg10[%c0_47, %c0_48, %c0_49] : memref<2x8x16xf32, #tpu.memory_space<vmem>>, vector<1x8x16xf32>
    %78 = vector.shape_cast %77 : vector<1x8x16xf32> to vector<8x16xf32>
    %c1_50 = arith.constant 1 : index
    %c0_51 = arith.constant 0 : index
    %c0_52 = arith.constant 0 : index
    %79 = vector.load %arg10[%c1_50, %c0_51, %c0_52] : memref<2x8x16xf32, #tpu.memory_space<vmem>>, vector<1x8x16xf32>
    %80 = vector.shape_cast %79 : vector<1x8x16xf32> to vector<8x16xf32>
    %81 = tpu.concatenate %74, %74, %76, %76, %76, %76 in 0 : vector<8x16xf32>, vector<8x16xf32>, vector<8x16xf32>, vector<8x16xf32>, vector<8x16xf32>, vector<8x16xf32> -> vector<48x16xf32>
    %82 = tpu.concatenate %78, %78, %80, %80, %80, %80 in 0 : vector<8x16xf32>, vector<8x16xf32>, vector<8x16xf32>, vector<8x16xf32>, vector<8x16xf32>, vector<8x16xf32> -> vector<48x16xf32>
    %83 = arith.mulf %72, %82 : vector<48x16xf32>
    %84 = math.roundeven %83 : vector<48x16xf32>
    %85 = arith.mulf %84, %81 : vector<48x16xf32>
    %cst_53 = arith.constant dense<0.000000e+00> : vector<48x16xf32>
    %86 = tpu.matmul %85, %4, %cst_53 {dimension_numbers = #tpu.dot_dimension_numbers<[1], [0], [0], [1], [0, 0, 1, 1], [], []>, precision = #tpu.contract_precision<fp32>} : vector<48x16xf32>, vector<16x16xf32>, vector<48x16xf32> -> vector<48x16xf32>
    %87 = vector.extract_strided_slice %86 {offsets = [0, 0], sizes = [16, 16], strides = [1, 1]} : vector<48x16xf32> to vector<16x16xf32>
    %cst_54 = arith.constant dense<0.000000e+00> : vector<16x16xf32>
    %88 = tpu.matmul %3, %87, %cst_54 {dimension_numbers = #tpu.dot_dimension_numbers<[1], [0], [0], [1], [0, 0, 1, 1], [], []>, precision = #tpu.contract_precision<fp32>} : vector<16x16xf32>, vector<16x16xf32>, vector<16x16xf32> -> vector<16x16xf32>
    %cst_55 = arith.constant 1.280000e+02 : f32
    %89 = vector.broadcast %cst_55 : f32 to vector<16x16xf32>
    %90 = arith.addf %88, %89 : vector<16x16xf32>
    %91 = vector.extract_strided_slice %86 {offsets = [16, 0], sizes = [16, 16], strides = [1, 1]} : vector<48x16xf32> to vector<16x16xf32>
    %cst_56 = arith.constant dense<0.000000e+00> : vector<16x16xf32>
    %92 = tpu.matmul %3, %91, %cst_56 {dimension_numbers = #tpu.dot_dimension_numbers<[1], [0], [0], [1], [0, 0, 1, 1], [], []>, precision = #tpu.contract_precision<fp32>} : vector<16x16xf32>, vector<16x16xf32>, vector<16x16xf32> -> vector<16x16xf32>
    %93 = vector.extract_strided_slice %86 {offsets = [32, 0], sizes = [16, 16], strides = [1, 1]} : vector<48x16xf32> to vector<16x16xf32>
    %cst_57 = arith.constant dense<0.000000e+00> : vector<16x16xf32>
    %94 = tpu.matmul %3, %93, %cst_57 {dimension_numbers = #tpu.dot_dimension_numbers<[1], [0], [0], [1], [0, 0, 1, 1], [], []>, precision = #tpu.contract_precision<fp32>} : vector<16x16xf32>, vector<16x16xf32>, vector<16x16xf32> -> vector<16x16xf32>
    %cst_58 = arith.constant 1.402000e+00 : f32
    %95 = vector.broadcast %cst_58 : f32 to vector<16x16xf32>
    %96 = arith.mulf %95, %94 : vector<16x16xf32>
    %97 = arith.addf %90, %96 : vector<16x16xf32>
    %cst_59 = arith.constant 3.441360e-01 : f32
    %98 = vector.broadcast %cst_59 : f32 to vector<16x16xf32>
    %99 = arith.mulf %98, %92 : vector<16x16xf32>
    %100 = arith.subf %90, %99 : vector<16x16xf32>
    %cst_60 = arith.constant 7.141360e-01 : f32
    %101 = vector.broadcast %cst_60 : f32 to vector<16x16xf32>
    %102 = arith.mulf %101, %94 : vector<16x16xf32>
    %103 = arith.subf %100, %102 : vector<16x16xf32>
    %cst_61 = arith.constant 1.772000e+00 : f32
    %104 = vector.broadcast %cst_61 : f32 to vector<16x16xf32>
    %105 = arith.mulf %104, %92 : vector<16x16xf32>
    %106 = arith.addf %90, %105 : vector<16x16xf32>
    %cst_62 = arith.constant 0.000000e+00 : f32
    %cst_63 = arith.constant 2.550000e+02 : f32
    %107 = vector.broadcast %cst_62 : f32 to vector<16x16xf32>
    %108 = arith.maximumf %107, %97 : vector<16x16xf32>
    %109 = vector.broadcast %cst_63 : f32 to vector<16x16xf32>
    %110 = arith.minimumf %109, %108 : vector<16x16xf32>
    %111 = math.roundeven %110 : vector<16x16xf32>
    %cst_64 = arith.constant 0.00392156886 : f32
    %112 = vector.broadcast %cst_64 : f32 to vector<16x16xf32>
    %113 = arith.mulf %111, %112 : vector<16x16xf32>
    %114 = vector.broadcast %0 : f32 to vector<16x16xf32>
    %115 = arith.subf %113, %114 : vector<16x16xf32>
    %116 = vector.broadcast %1 : f32 to vector<16x16xf32>
    %117 = arith.divf %115, %116 : vector<16x16xf32>
    %c0_65 = arith.constant 0 : index
    %c0_66 = arith.constant 0 : index
    %c0_67 = arith.constant 0 : index
    %c0_68 = arith.constant 0 : index
    %118 = vector.load %arg11[%c0_65, %c0_66, %c0_67, %c0_68] : memref<1x3x16x16xf32, #tpu.memory_space<vmem>>, vector<1x1x16x16xf32>
    %119 = vector.shape_cast %118 : vector<1x1x16x16xf32> to vector<16x16xf32>
    %120 = vector.shape_cast %117 : vector<16x16xf32> to vector<1x1x16x16xf32>
    tpu.vector_store %arg11[%c0_65, %c0_66, %c0_67, %c0_68], %120 {strides = array<i32>} : memref<1x3x16x16xf32, #tpu.memory_space<vmem>>, vector<1x1x16x16xf32>,
    %cst_69 = arith.constant 0.000000e+00 : f32
    %cst_70 = arith.constant 2.550000e+02 : f32
    %121 = vector.broadcast %cst_69 : f32 to vector<16x16xf32>
    %122 = arith.maximumf %121, %103 : vector<16x16xf32>
    %123 = vector.broadcast %cst_70 : f32 to vector<16x16xf32>
    %124 = arith.minimumf %123, %122 : vector<16x16xf32>
    %125 = math.roundeven %124 : vector<16x16xf32>
    %cst_71 = arith.constant 0.00392156886 : f32
    %126 = vector.broadcast %cst_71 : f32 to vector<16x16xf32>
    %127 = arith.mulf %125, %126 : vector<16x16xf32>
    %128 = vector.broadcast %0 : f32 to vector<16x16xf32>
    %129 = arith.subf %127, %128 : vector<16x16xf32>
    %130 = vector.broadcast %1 : f32 to vector<16x16xf32>
    %131 = arith.divf %129, %130 : vector<16x16xf32>
    %c0_72 = arith.constant 0 : index
    %c1_73 = arith.constant 1 : index
    %c0_74 = arith.constant 0 : index
    %c0_75 = arith.constant 0 : index
    %132 = vector.load %arg11[%c0_72, %c1_73, %c0_74, %c0_75] : memref<1x3x16x16xf32, #tpu.memory_space<vmem>>, vector<1x1x16x16xf32>
    %133 = vector.shape_cast %132 : vector<1x1x16x16xf32> to vector<16x16xf32>
    %134 = vector.shape_cast %131 : vector<16x16xf32> to vector<1x1x16x16xf32>
    tpu.vector_store %arg11[%c0_72, %c1_73, %c0_74, %c0_75], %134 {strides = array<i32>} : memref<1x3x16x16xf32, #tpu.memory_space<vmem>>, vector<1x1x16x16xf32>,
    %cst_76 = arith.constant 0.000000e+00 : f32
    %cst_77 = arith.constant 2.550000e+02 : f32
    %135 = vector.broadcast %cst_76 : f32 to vector<16x16xf32>
    %136 = arith.maximumf %135, %106 : vector<16x16xf32>
    %137 = vector.broadcast %cst_77 : f32 to vector<16x16xf32>
    %138 = arith.minimumf %137, %136 : vector<16x16xf32>
    %139 = math.roundeven %138 : vector<16x16xf32>
    %cst_78 = arith.constant 0.00392156886 : f32
    %140 = vector.broadcast %cst_78 : f32 to vector<16x16xf32>
    %141 = arith.mulf %139, %140 : vector<16x16xf32>
    %142 = vector.broadcast %0 : f32 to vector<16x16xf32>
    %143 = arith.subf %141, %142 : vector<16x16xf32>
    %144 = vector.broadcast %1 : f32 to vector<16x16xf32>
    %145 = arith.divf %143, %144 : vector<16x16xf32>
    %c0_79 = arith.constant 0 : index
    %c2_80 = arith.constant 2 : index
    %c0_81 = arith.constant 0 : index
    %c0_82 = arith.constant 0 : index
    %146 = vector.load %arg11[%c0_79, %c2_80, %c0_81, %c0_82] : memref<1x3x16x16xf32, #tpu.memory_space<vmem>>, vector<1x1x16x16xf32>
    %147 = vector.shape_cast %146 : vector<1x1x16x16xf32> to vector<16x16xf32>
    %148 = vector.shape_cast %145 : vector<16x16xf32> to vector<1x1x16x16xf32>
    tpu.vector_store %arg11[%c0_79, %c2_80, %c0_81, %c0_82], %148 {strides = array<i32>} : memref<1x3x16x16xf32, #tpu.memory_space<vmem>>, vector<1x1x16x16xf32>,
    return
  }
  func.func @transform_0(%arg0: i32, %arg1: i32, %arg2: i32) -> i32 {
    %c0_i32 = arith.constant 0 : i32
    %c0_i32_0 = arith.constant 0 : i32
    return %c0_i32 : i32
  }
  func.func @transform_1(%arg0: i32, %arg1: i32, %arg2: i32) -> (i32, i32, i32, i32) {
    %c0_i32 = arith.constant 0 : i32
    %c0_i32_0 = arith.constant 0 : i32
    return %arg0, %c0_i32, %arg1, %arg2 : i32, i32, i32, i32
  }
  func.func @transform_2(%arg0: i32, %arg1: i32, %arg2: i32) -> (i32, i32) {
    %c0_i32 = arith.constant 0 : i32
    %c0_i32_0 = arith.constant 0 : i32
    %c0_i32_1 = arith.constant 0 : i32
    return %c0_i32, %c0_i32_0 : i32, i32
  }
  func.func @transform_3(%arg0: i32, %arg1: i32, %arg2: i32) -> (i32, i32) {
    %c0_i32 = arith.constant 0 : i32
    %c0_i32_0 = arith.constant 0 : i32
    %c0_i32_1 = arith.constant 0 : i32
    return %c0_i32, %c0_i32_0 : i32, i32
  }
  func.func @transform_4(%arg0: i32, %arg1: i32, %arg2: i32) -> (i32, i32) {
    %c0_i32 = arith.constant 0 : i32
    %c0_i32_0 = arith.constant 0 : i32
    %c0_i32_1 = arith.constant 0 : i32
    return %c0_i32, %c0_i32_0 : i32, i32
  }
  func.func @transform_5(%arg0: i32, %arg1: i32, %arg2: i32) -> (i32, i32) {
    %c0_i32 = arith.constant 0 : i32
    %c0_i32_0 = arith.constant 0 : i32
    %c0_i32_1 = arith.constant 0 : i32
    return %c0_i32, %c0_i32_0 : i32, i32
  }
  func.func @transform_6(%arg0: i32, %arg1: i32, %arg2: i32) -> (i32, i32, i32) {
    %c0_i32 = arith.constant 0 : i32
    %c0_i32_0 = arith.constant 0 : i32
    %c0_i32_1 = arith.constant 0 : i32
    %c0_i32_2 = arith.constant 0 : i32
    return %c0_i32, %c0_i32_0, %c0_i32_1 : i32, i32, i32
  }
  func.func @transform_7(%arg0: i32, %arg1: i32, %arg2: i32) -> (i32, i32, i32) {
    %c0_i32 = arith.constant 0 : i32
    %c0_i32_0 = arith.constant 0 : i32
    %c0_i32_1 = arith.constant 0 : i32
    %c0_i32_2 = arith.constant 0 : i32
    return %c0_i32, %c0_i32_0, %c0_i32_1 : i32, i32, i32
  }
  func.func @transform_8(%arg0: i32, %arg1: i32, %arg2: i32) -> (i32, i32, i32, i32) {
    %c0_i32 = arith.constant 0 : i32
    %c0_i32_0 = arith.constant 0 : i32
    return %arg0, %c0_i32, %arg1, %arg2 : i32, i32, i32, i32
  }
}

</mosaic_0001>

<llo_original>
// kernel: tpu_custom_call.1
$region0: #{tpu_custom_call.1}
  #allocation0 [shape = 'u32[]', space=smem, size = 0x4, offset = 0x4, fixed_abs, tag = 'smem constant byte address 0x4 - core index']
  #allocation1 [shape = 'u32[144,128]{1,0:T(1,128)}', space=vmem, size = 0x12000, scoped, tag = 'internal scratch']
  %s0 = inlined_call_operand.hbm [shape: f32[2], index: 0, kind: input, shape index: {}]
  %s1 = inlined_call_operand.hbm [shape: f32[2,3,16,16], index: 1, kind: input, shape index: {}]
  %s2 = inlined_call_operand.hbm [shape: f32[16,16], index: 2, kind: input, shape index: {}]
  %s3 = inlined_call_operand.hbm [shape: f32[16,16], index: 3, kind: input, shape index: {}]
  %s4 = inlined_call_operand.hbm [shape: f32[16,16], index: 4, kind: input, shape index: {}]
  %s5 = inlined_call_operand.vmem [shape: f32[16,16], index: 5, kind: input, shape index: {}]
  %s6 = inlined_call_operand.hbm [shape: f32[2,8,16], index: 6, kind: input, shape index: {}]
  %s7 = inlined_call_operand.hbm [shape: f32[2,8,16], index: 7, kind: input, shape index: {}]
  %s8 = inlined_call_operand.hbm [shape: f32[2,3,16,16], index: 8, kind: output, shape index: {}]
  %s9 = sld [smem:[#allocation0]]
  $region93: #{tpu_custom_call.1} parent=0
    _
  %s11 = ssub.s32 1, %s9
  %s12 = scalar_select 0, %s11, %s9
  $region1: #{tpu_custom_call.1} parent=0
    #allocation2 [shape = 'u8[512]{0}', space=smem, size = 0x200, scoped, tag = 'input window, operand 0, single buffered']
    #allocation3 [shape = 's32[2]{0}', space=sflag, size = 0x8, scoped, tag = 'scoped memory for tpu_custom_call.1']
    #allocation4 [shape = 's32[2]{0}', space=sflag, size = 0x8, scoped, tag = 'scoped memory for tpu_custom_call.1']
    #allocation5 [shape = 's32[2]{0}', space=sflag, size = 0x8, scoped, tag = 'scoped memory for tpu_custom_call.1']
    #allocation6 [shape = 'u8[49152]{0}', space=vmem, size = 0xc000, scoped, tag = 'input window, operand 1']
    #allocation7 [shape = 'u8[8192]{0}', space=vmem, size = 0x2000, scoped, tag = 'input window, operand 2, single buffered']
    #allocation8 [shape = 's32[1]{0}', space=sflag, size = 0x4, scoped, tag = 'scoped memory for tpu_custom_call.1']
    #allocation9 [shape = 'u8[8192]{0}', space=vmem, size = 0x2000, scoped, tag = 'input window, operand 3, single buffered']
    #allocation10 [shape = 'u8[8192]{0}', space=vmem, size = 0x2000, scoped, tag = 'input window, operand 4, single buffered']
    #allocation11 [shape = 's32[1]{0}', space=sflag, size = 0x4, scoped, tag = 'scoped memory for tpu_custom_call.1']
    #allocation12 [shape = 'u8[8192]{0}', space=vmem, size = 0x2000, scoped, tag = 'input window, operand 6, single buffered']
    #allocation13 [shape = 'u8[8192]{0}', space=vmem, size = 0x2000, scoped, tag = 'input window, operand 7, single buffered']
    #allocation14 [shape = 's32[1]{0}', space=sflag, size = 0x4, scoped, tag = 'scoped memory for tpu_custom_call.1']
    #allocation15 [shape = 'u8[49152]{0}', space=vmem, size = 0xc000, scoped, tag = 'output window, operand 0']
    %13 = vsyncpa [#allocation5], 0
    %14 = vsyncpa [#allocation3], 0
    %s15 = scalar_lea.sflag [#allocation3], 1
    %16 = vsyncpa %s15, 0
    %17 = vsyncpa [#allocation8], 0
    %18 = vsyncpa [#allocation11], 0
    %19 = vsyncpa [#allocation14], 0
    %20 = vsyncpa [#allocation4], 0
    %s21 = scalar_lea.sflag [#allocation4], 1
    %22 = vsyncpa %s21, 0
    loop: start=0, step=1, limit=4
    $region2: #{tpu_custom_call.1} parent=1 // loop_pre_header
      _
    $region3: #{tpu_custom_call.1} parent=1 // loop_header
      %s24 = sphi 0, %s28
      %p25 = scmp.ge.s32.totalorder %s24, 4
      %s31 = sphi 0, %s50
      %s32 = sphi 0, %s46
      %s33 = sphi 0, %s42
      %s34 = sphi 0, %s31
      %s35 = sphi 0, %s32
      %s36 = sphi 0, %s33
      %s37 = sphi 0, %s34
      %s38 = sphi 0, %s35
      %s39 = sphi 0, %s36
      %s51 = sphi 0, %s51
      %s53 = sphi 0, %s51
      %s54 = sphi 0, %s53
      %s68 = sphi 0, %s54
      %s78 = sphi 0, %s80
      %s81 = sphi 0, %s78
      %s82 = sphi 0, %s81
      %s98 = sphi 0, %s82
      %s102 = sphi 0, %s102
      %s104 = sphi 0, %s102
      %s105 = sphi 0, %s104
      %s119 = sphi 0, %s105
      %s123 = sphi 0, %s123
      %s125 = sphi 0, %s123
      %s126 = sphi 0, %s125
      %s140 = sphi 0, %s126
      %s144 = sphi 0, %s144
      %s146 = sphi 0, %s144
      %s147 = sphi 0, %s146
      %s161 = sphi 0, %s147
      %s165 = sphi 0, %s165
      %s167 = sphi 0, %s165
      %s168 = sphi 0, %s167
      %s182 = sphi 0, %s168
      %s186 = sphi 0, %s186
      %s188 = sphi 0, %s186
      %s189 = sphi 0, %s188
      %s203 = sphi 0, %s189
      %s207 = sphi 0, %s207
      %s209 = sphi 0, %s207
      %s210 = sphi 0, %s209
      %s224 = sphi 0, %s210
      %s234 = sphi 0, %s236
      %s237 = sphi 0, %s234
      %s238 = sphi 0, %s237
      %s254 = sphi 0, %s238
    $region4: #{tpu_custom_call.1} parent=1 // loop_header_branch
      %27 = sbr.rel (%p25) target = $region8
    $region5: #{tpu_custom_call.1} parent=1 // loop_body
      %s29 = ssub.s32 %s24, 1
      %s30 = ssub.s32 %s24, 2
      %s40 = sadd.s32 1, %s33
      %p41 = scmp.ge.s32.totalorder %s40, 1
      %s42 = scalar_select %p41, 0, %s40
      %s43 = sadd.s32 1, %s32
      %s44 = scalar_select %p41, %s43, %s32
      %p45 = scmp.ge.s32.totalorder %s44, 1
      %s46 = scalar_select %p45, 0, %s44
      %s47 = sadd.s32 1, %s31
      %s48 = scalar_select %p45, %s47, %s31
      %p49 = scmp.ge.s32.totalorder %s48, 2
      %s50 = scalar_select %p49, 0, %s48
      %s52 = sadd.s32 %s51, 1
      %p55 = scmp.eq.s32.totalorder %s24, 1
      %p56 = scmp.ne.s32.totalorder %s51, %s53
      %p57 = scmp.eq.s32.totalorder %s24, 0
      %p58 = por %p56, %p57
      %p59 = scmp.ne.s32.totalorder %s51, %s53
      %p60 = scmp.eq.s32.totalorder %s29, 1
      %p61 = por %p59, %p60
      %p62 = scmp.ne.s32.totalorder %s53, %s54
      %p63 = scmp.eq.s32.totalorder %s29, 0
      %p64 = por %p62, %p63
      %p65 = scmp.ne.s32.totalorder %s53, %s54
      %p66 = scmp.eq.s32.totalorder %s30, 1
      %p67 = por %p65, %p66
      %p69 = scmp.ne.s32.totalorder %s54, %s68
      %p70 = scmp.eq.s32.totalorder %s30, 0
      %p71 = por %p69, %p70
      %s72 = ssub.s32 %s31, %s50
      %s73 = ssub.s32 %s32, %s46
      %s74 = sor.u32 %s72, %s73
      %s75 = ssub.s32 %s33, %s42
      %s76 = sor.u32 %s74, %s75
      %p77 = scmp.eq.s32.totalorder %s76, 0
      %s79 = sadd.s32 %s78, 1
      %s80 = scalar_select %p77, %s78, %s79
      %p83 = pneg %p77
      %p84 = scmp.eq.s32.totalorder %s24, 1
      %p85 = por %p83, %p84
      %p86 = scmp.ne.s32.totalorder %s78, %s81
      %p87 = scmp.eq.s32.totalorder %s24, 0
      %p88 = por %p86, %p87
      %p89 = scmp.ne.s32.totalorder %s78, %s81
      %p90 = scmp.eq.s32.totalorder %s29, 1
      %p91 = por %p89, %p90
      %p92 = scmp.ne.s32.totalorder %s81, %s82
      %p93 = scmp.eq.s32.totalorder %s29, 0
      %p94 = por %p92, %p93
      %p95 = scmp.ne.s32.totalorder %s81, %s82
      %p96 = scmp.eq.s32.totalorder %s30, 1
      %p97 = por %p95, %p96
      %p99 = scmp.ne.s32.totalorder %s82, %s98
      %p100 = scmp.eq.s32.totalorder %s30, 0
      %p101 = por %p99, %p100
      %s103 = sadd.s32 %s102, 1
      %p106 = scmp.eq.s32.totalorder %s24, 1
      %p107 = scmp.ne.s32.totalorder %s102, %s104
      %p108 = scmp.eq.s32.totalorder %s24, 0
      %p109 = por %p107, %p108
      %p110 = scmp.ne.s32.totalorder %s102, %s104
      %p111 = scmp.eq.s32.totalorder %s29, 1
      %p112 = por %p110, %p111
      %p113 = scmp.ne.s32.totalorder %s104, %s105
      %p114 = scmp.eq.s32.totalorder %s29, 0
      %p115 = por %p113, %p114
      %p116 = scmp.ne.s32.totalorder %s104, %s105
      %p117 = scmp.eq.s32.totalorder %s30, 1
      %p118 = por %p116, %p117
      %p120 = scmp.ne.s32.totalorder %s105, %s119
      %p121 = scmp.eq.s32.totalorder %s30, 0
      %p122 = por %p120, %p121
      %s124 = sadd.s32 %s123, 1
      %p127 = scmp.eq.s32.totalorder %s24, 1
      %p128 = scmp.ne.s32.totalorder %s123, %s125
      %p129 = scmp.eq.s32.totalorder %s24, 0
      %p130 = por %p128, %p129
      %p131 = scmp.ne.s32.totalorder %s123, %s125
      %p132 = scmp.eq.s32.totalorder %s29, 1
      %p133 = por %p131, %p132
      %p134 = scmp.ne.s32.totalorder %s125, %s126
      %p135 = scmp.eq.s32.totalorder %s29, 0
      %p136 = por %p134, %p135
      %p137 = scmp.ne.s32.totalorder %s125, %s126
      %p138 = scmp.eq.s32.totalorder %s30, 1
      %p139 = por %p137, %p138
      %p141 = scmp.ne.s32.totalorder %s126, %s140
      %p142 = scmp.eq.s32.totalorder %s30, 0
      %p143 = por %p141, %p142
      %s145 = sadd.s32 %s144, 1
      %p148 = scmp.eq.s32.totalorder %s24, 1
      %p149 = scmp.ne.s32.totalorder %s144, %s146
      %p150 = scmp.eq.s32.totalorder %s24, 0
      %p151 = por %p149, %p150
      %p152 = scmp.ne.s32.totalorder %s144, %s146
      %p153 = scmp.eq.s32.totalorder %s29, 1
      %p154 = por %p152, %p153
      %p155 = scmp.ne.s32.totalorder %s146, %s147
      %p156 = scmp.eq.s32.totalorder %s29, 0
      %p157 = por %p155, %p156
      %p158 = scmp.ne.s32.totalorder %s146, %s147
      %p159 = scmp.eq.s32.totalorder %s30, 1
      %p160 = por %p158, %p159
      %p162 = scmp.ne.s32.totalorder %s147, %s161
      %p163 = scmp.eq.s32.totalorder %s30, 0
      %p164 = por %p162, %p163
      %s166 = sadd.s32 %s165, 1
      %p169 = scmp.eq.s32.totalorder %s24, 1
      %p170 = scmp.ne.s32.totalorder %s165, %s167
      %p171 = scmp.eq.s32.totalorder %s24, 0
      %p172 = por %p170, %p171
      %p173 = scmp.ne.s32.totalorder %s165, %s167
      %p174 = scmp.eq.s32.totalorder %s29, 1
      %p175 = por %p173, %p174
      %p176 = scmp.ne.s32.totalorder %s167, %s168
      %p177 = scmp.eq.s32.totalorder %s29, 0
      %p178 = por %p176, %p177
      %p179 = scmp.ne.s32.totalorder %s167, %s168
      %p180 = scmp.eq.s32.totalorder %s30, 1
      %p181 = por %p179, %p180
      %p183 = scmp.ne.s32.totalorder %s168, %s182
      %p184 = scmp.eq.s32.totalorder %s30, 0
      %p185 = por %p183, %p184
      %s187 = sadd.s32 %s186, 1
      %p190 = scmp.eq.s32.totalorder %s24, 1
      %p191 = scmp.ne.s32.totalorder %s186, %s188
      %p192 = scmp.eq.s32.totalorder %s24, 0
      %p193 = por %p191, %p192
      %p194 = scmp.ne.s32.totalorder %s186, %s188
      %p195 = scmp.eq.s32.totalorder %s29, 1
      %p196 = por %p194, %p195
      %p197 = scmp.ne.s32.totalorder %s188, %s189
      %p198 = scmp.eq.s32.totalorder %s29, 0
      %p199 = por %p197, %p198
      %p200 = scmp.ne.s32.totalorder %s188, %s189
      %p201 = scmp.eq.s32.totalorder %s30, 1
      %p202 = por %p200, %p201
      %p204 = scmp.ne.s32.totalorder %s189, %s203
      %p205 = scmp.eq.s32.totalorder %s30, 0
      %p206 = por %p204, %p205
      %s208 = sadd.s32 %s207, 1
      %p211 = scmp.eq.s32.totalorder %s24, 1
      %p212 = scmp.ne.s32.totalorder %s207, %s209
      %p213 = scmp.eq.s32.totalorder %s24, 0
      %p214 = por %p212, %p213
      %p215 = scmp.ne.s32.totalorder %s207, %s209
      %p216 = scmp.eq.s32.totalorder %s29, 1
      %p217 = por %p215, %p216
      %p218 = scmp.ne.s32.totalorder %s209, %s210
      %p219 = scmp.eq.s32.totalorder %s29, 0
      %p220 = por %p218, %p219
      %p221 = scmp.ne.s32.totalorder %s209, %s210
      %p222 = scmp.eq.s32.totalorder %s30, 1
      %p223 = por %p221, %p222
      %p225 = scmp.ne.s32.totalorder %s210, %s224
      %p226 = scmp.eq.s32.totalorder %s30, 0
      %p227 = por %p225, %p226
      %s228 = ssub.s32 %s31, %s50
      %s229 = ssub.s32 %s32, %s46
      %s230 = sor.u32 %s228, %s229
      %s231 = ssub.s32 %s33, %s42
      %s232 = sor.u32 %s230, %s231
      %p233 = scmp.eq.s32.totalorder %s232, 0
      %s235 = sadd.s32 %s234, 1
      %s236 = scalar_select %p233, %s234, %s235
      %p239 = pneg %p233
      %p240 = scmp.eq.s32.totalorder %s24, 1
      %p241 = por %p239, %p240
      %p242 = scmp.ne.s32.totalorder %s234, %s237
      %p243 = scmp.eq.s32.totalorder %s24, 0
      %p244 = por %p242, %p243
      %p245 = scmp.ne.s32.totalorder %s234, %s237
      %p246 = scmp.eq.s32.totalorder %s29, 1
      %p247 = por %p245, %p246
      %p248 = scmp.ne.s32.totalorder %s237, %s238
      %p249 = scmp.eq.s32.totalorder %s29, 0
      %p250 = por %p248, %p249
      %p251 = scmp.ne.s32.totalorder %s237, %s238
      %p252 = scmp.eq.s32.totalorder %s30, 1
      %p253 = por %p251, %p252
      %p255 = scmp.ne.s32.totalorder %s238, %s254
      %p256 = scmp.eq.s32.totalorder %s30, 0
      %p257 = por %p255, %p256
      %p258 = scmp.le.s32.totalorder 1, %s24
      %p259 = scmp.lt.s32.totalorder %s24, 3
      %p260 = pnand %p258, %p259
      %p261 = pneg %p260
      // Predicated region
      $region9: #{tpu_custom_call.1} parent=5 // pred_check
        _
      $region10: #{tpu_custom_call.1} parent=5 // pred_check_branch
        %263 = sbr.rel (%p260) target = $region12
      $region11: #{tpu_custom_call.1} parent=5 // pred_region
        %s264 = ssub.s32 %s24, 1
        // Predicated region
        $region13: #{tpu_custom_call.1} parent=11 // pred_check
          %p265 = pneg %p64
        $region14: #{tpu_custom_call.1} parent=11 // pred_check_branch
          %267 = sbr.rel (%p265) target = $region16
        $region15: #{tpu_custom_call.1} parent=11 // pred_region
          %s269 = ssub.s32 16, 16
          %270 = vsyncadd [#allocation5], %s269
          %273 = dma.hbm_to_smem %s0, 16, [#allocation2], [#allocation5]
        $region16: #{tpu_custom_call.1} parent=11 // pred_fallthru
          _
        // Predicated region
        $region17: #{tpu_custom_call.1} parent=11 // pred_check
          %p274 = pneg %p115
        $region18: #{tpu_custom_call.1} parent=11 // pred_check_branch
          %276 = sbr.rel (%p274) target = $region20
        $region19: #{tpu_custom_call.1} parent=11 // pred_region
          %s278 = ssub.s32 256, 256
          %279 = vsyncadd [#allocation8], %s278
          %s280 = sshll.u32 [#allocation7], 4
          %s281 = int_to_ptr.vmem [resolvable:$true] %s280
          %286 = dma.hbm_to_vmem [thread:$0]  %s2, 256, %s281, [#allocation8], 128, 128, 8
        $region20: #{tpu_custom_call.1} parent=11 // pred_fallthru
          _
        // Predicated region
        $region21: #{tpu_custom_call.1} parent=11 // pred_check
          %p287 = pneg %p136
        $region22: #{tpu_custom_call.1} parent=11 // pred_check_branch
          %289 = sbr.rel (%p287) target = $region24
        $region23: #{tpu_custom_call.1} parent=11 // pred_region
          %s291 = ssub.s32 256, 256
          %292 = vsyncadd [#allocation8], %s291
          %s293 = sshll.u32 [#allocation9], 4
          %s294 = int_to_ptr.vmem [resolvable:$true] %s293
          %299 = dma.hbm_to_vmem [thread:$0]  %s3, 256, %s294, [#allocation8], 128, 128, 8
        $region24: #{tpu_custom_call.1} parent=11 // pred_fallthru
          _
        // Predicated region
        $region25: #{tpu_custom_call.1} parent=11 // pred_check
          %p300 = pneg %p157
        $region26: #{tpu_custom_call.1} parent=11 // pred_check_branch
          %302 = sbr.rel (%p300) target = $region28
        $region27: #{tpu_custom_call.1} parent=11 // pred_region
          %s304 = ssub.s32 256, 256
          %305 = vsyncadd [#allocation11], %s304
          %s306 = sshll.u32 [#allocation10], 4
          %s307 = int_to_ptr.vmem [resolvable:$true] %s306
          %312 = dma.hbm_to_vmem [thread:$0]  %s4, 256, %s307, [#allocation11], 128, 128, 8
        $region28: #{tpu_custom_call.1} parent=11 // pred_fallthru
          _
        // Predicated region
        $region29: #{tpu_custom_call.1} parent=11 // pred_check
          %p313 = pneg %p178
        $region30: #{tpu_custom_call.1} parent=11 // pred_check_branch
          %315 = sbr.rel (%p313) target = $region32
        $region31: #{tpu_custom_call.1} parent=11 // pred_region
          _
        $region32: #{tpu_custom_call.1} parent=11 // pred_fallthru
          _
        // Predicated region
        $region33: #{tpu_custom_call.1} parent=11 // pred_check
          %p316 = pneg %p199
        $region34: #{tpu_custom_call.1} parent=11 // pred_check_branch
          %318 = sbr.rel (%p316) target = $region36
        $region35: #{tpu_custom_call.1} parent=11 // pred_region
          %s320 = ssub.s32 256, 256
          %321 = vsyncadd [#allocation11], %s320
          %s322 = sshll.u32 [#allocation12], 4
          %s323 = int_to_ptr.vmem [resolvable:$true] %s322
          %328 = dma.hbm_to_vmem [thread:$0]  %s6, 256, %s323, [#allocation11], 128, 128, 8
        $region36: #{tpu_custom_call.1} parent=11 // pred_fallthru
          _
        // Predicated region
        $region37: #{tpu_custom_call.1} parent=11 // pred_check
          %p329 = pneg %p220
        $region38: #{tpu_custom_call.1} parent=11 // pred_check_branch
          %331 = sbr.rel (%p329) target = $region40
        $region39: #{tpu_custom_call.1} parent=11 // pred_region
          %s333 = ssub.s32 256, 256
          %334 = vsyncadd [#allocation14], %s333
          %s335 = sshll.u32 [#allocation13], 4
          %s336 = int_to_ptr.vmem [resolvable:$true] %s335
          %341 = dma.hbm_to_vmem [thread:$0]  %s7, 256, %s336, [#allocation14], 128, 128, 8
        $region40: #{tpu_custom_call.1} parent=11 // pred_fallthru
          _
      $region12: #{tpu_custom_call.1} parent=5 // pred_fallthru
        _
      %p342 = scmp.lt.s32.totalorder %s24, 2
      // Predicated region
      $region41: #{tpu_custom_call.1} parent=5 // pred_check
        %p343 = pneg %p342
      $region42: #{tpu_custom_call.1} parent=5 // pred_check_branch
        %345 = sbr.rel (%p343) target = $region44
      $region43: #{tpu_custom_call.1} parent=5 // pred_region
        // Predicated region
        $region45: #{tpu_custom_call.1} parent=43 // pred_check
          %p346 = pneg %p88
        $region46: #{tpu_custom_call.1} parent=43 // pred_check_branch
          %348 = sbr.rel (%p346) target = $region48
        $region47: #{tpu_custom_call.1} parent=43 // pred_region
          %s349 = sand.u32 %s78, 1
          %s350 = scalar_lea.sflag [#allocation3], %s349
          %s351 = sand.u32 %s78, 1
          %s352 = smul.addr %s351, 48
          %s353 = scalar_lea.vmem [#allocation6], %s352
          %s354 = smul.u32 2, %s32
          %s356 = ssub.s32 768, 768
          %357 = vsyncadd %s350, %s356
          %s358 = sadd.s32 %s33, %s354
          %s359 = smul.addr %s31, 6
          %s360 = sadd.s32 %s358, %s359
          %s361 = smul.addr %s360, 128
          %s362 = scalar_lea.hbm %s1, %s361
          %s363 = sshll.u32 %s353, 4
          %s364 = int_to_ptr.vmem [resolvable:$true] %s363
          %369 = dma.hbm_to_vmem [thread:$0]  %s362, 768, %s364, %s350, 128, 128, 8
        $region48: #{tpu_custom_call.1} parent=43 // pred_fallthru
          _
      $region44: #{tpu_custom_call.1} parent=5 // pred_fallthru
        _
      %p370 = scmp.le.s32.totalorder 1, %s24
      %p371 = scmp.lt.s32.totalorder %s24, 3
      %p372 = pnand %p370, %p371
      %p373 = pneg %p372
      // Predicated region
      $region49: #{tpu_custom_call.1} parent=5 // pred_check
        _
      $region50: #{tpu_custom_call.1} parent=5 // pred_check_branch
        %375 = sbr.rel (%p372) target = $region52
      $region51: #{tpu_custom_call.1} parent=5 // pred_region
        %s376 = ssub.s32 %s24, 1
        // Predicated region
        $region53: #{tpu_custom_call.1} parent=51 // pred_check
          %p377 = pneg %p64
        $region54: #{tpu_custom_call.1} parent=51 // pred_check_branch
          %379 = sbr.rel (%p377) target = $region56
        $region55: #{tpu_custom_call.1} parent=51 // pred_region
          %380 = dma.done [#allocation5], 16
        $region56: #{tpu_custom_call.1} parent=51 // pred_fallthru
          _
        %s381 = sand.u32 %s81, 1
        %s382 = scalar_lea.sflag [#allocation3], %s381
        %s383 = sand.u32 %s81, 1
        %s384 = smul.addr %s383, 48
        %s385 = scalar_lea.vmem [#allocation6], %s384
        // Predicated region
        $region57: #{tpu_custom_call.1} parent=51 // pred_check
          %p386 = pneg %p94
        $region58: #{tpu_custom_call.1} parent=51 // pred_check_branch
          %388 = sbr.rel (%p386) target = $region60
        $region59: #{tpu_custom_call.1} parent=51 // pred_region
          %389 = dma.done %s382, 768
        $region60: #{tpu_custom_call.1} parent=51 // pred_fallthru
          _
        // Predicated region
        $region61: #{tpu_custom_call.1} parent=51 // pred_check
          %p390 = pneg %p115
        $region62: #{tpu_custom_call.1} parent=51 // pred_check_branch
          %392 = sbr.rel (%p390) target = $region64
        $region63: #{tpu_custom_call.1} parent=51 // pred_region
          %393 = dma.done [#allocation8], 256
        $region64: #{tpu_custom_call.1} parent=51 // pred_fallthru
          _
        // Predicated region
        $region65: #{tpu_custom_call.1} parent=51 // pred_check
          %p394 = pneg %p136
        $region66: #{tpu_custom_call.1} parent=51 // pred_check_branch
          %396 = sbr.rel (%p394) target = $region68
        $region67: #{tpu_custom_call.1} parent=51 // pred_region
          %397 = dma.done [#allocation8], 256
        $region68: #{tpu_custom_call.1} parent=51 // pred_fallthru
          _
        // Predicated region
        $region69: #{tpu_custom_call.1} parent=51 // pred_check
          %p398 = pneg %p157
        $region70: #{tpu_custom_call.1} parent=51 // pred_check_branch
          %400 = sbr.rel (%p398) target = $region72
        $region71: #{tpu_custom_call.1} parent=51 // pred_region
          %401 = dma.done [#allocation11], 256
        $region72: #{tpu_custom_call.1} parent=51 // pred_fallthru
          _
        // Predicated region
        $region73: #{tpu_custom_call.1} parent=51 // pred_check
          %p402 = pneg %p199
        $region74: #{tpu_custom_call.1} parent=51 // pred_check_branch
          %404 = sbr.rel (%p402) target = $region76
        $region75: #{tpu_custom_call.1} parent=51 // pred_region
          %405 = dma.done [#allocation11], 256
        $region76: #{tpu_custom_call.1} parent=51 // pred_fallthru
          _
        // Predicated region
        $region77: #{tpu_custom_call.1} parent=51 // pred_check
          %p406 = pneg %p220
        $region78: #{tpu_custom_call.1} parent=51 // pred_check_branch
          %408 = sbr.rel (%p406) target = $region80
        $region79: #{tpu_custom_call.1} parent=51 // pred_region
          %409 = dma.done [#allocation14], 256
        $region80: #{tpu_custom_call.1} parent=51 // pred_fallthru
          _
        %410 = sfence
        %p411 = pneg %p64
        %p412 = pneg %p61
        %s413 = sand.u32 %s81, 1
        %s414 = scalar_lea.sflag [#allocation3], %s413
        %s415 = sand.u32 %s81, 1
        %s416 = smul.addr %s415, 48
        %s417 = scalar_lea.vmem [#allocation6], %s416
        %p418 = pneg %p94
        %p419 = pneg %p91
        %p420 = pneg %p115
        %p421 = pneg %p112
        %p422 = pneg %p136
        %p423 = pneg %p133
        %p424 = pneg %p157
        %p425 = pneg %p154
        %p426 = pneg %p178
        %p427 = pneg %p175
        %p428 = pneg %p199
        %p429 = pneg %p196
        %p430 = pneg %p220
        %p431 = pneg %p217
        %p432 = pneg %p250
        %p433 = pneg %p247
        %s434 = sand.u32 %s237, 1
        %s435 = scalar_lea.sflag [#allocation4], %s434
        %s436 = sand.u32 %s237, 1
        %s437 = smul.addr %s436, 48
        %s438 = scalar_lea.vmem [#allocation15], %s437
        %s439 = smul.u32 2, %s35
        %s440 = smul.u32 2, %s35
        %s441 = sld [smem:[#allocation2]]
        %s442 = sld [smem:[#allocation2 + $0x1]]
        %v443 = vld [vmem:[#allocation7] sm:$0xff]
        %v444 = vld [vmem:[#allocation7 + $0x8] sm:$0xff]
        %v445 = vld [vmem:[#allocation9] sm:$0xff]
        %v446 = vld [vmem:[#allocation9 + $0x8] sm:$0xff]
        %v447 = vld [vmem:[#allocation10] sm:$0xff]
        %v448 = vld [vmem:[#allocation10 + $0x8] sm:$0xff]
        %v449 = vld [vmem:[%s5] sm:$0xff]
        %v450 = vld [vmem:[%s5 + $0x8] sm:$0xff]
        %v451 = vld [vmem:[%s385] sm:$0xff]
        %v452 = vld [vmem:[%s385 + $0x8] sm:$0xff]
        %v453 = vstv %s442
        %v454 = vmul.f32 %v453, %v451
        %v455 = vmul.f32 %v453, %v452
        %v456 = vstv %s441
        %v457 = vadd.f32 %v454, %v456
        %v458 = vadd.f32 %v455, %v456
        %v459 = vmax.f32 %v457, 0.0
        %v460 = vmax.f32 %v458, 0.0
        %v461 = vmin.f32 %v459, 1.0
        %v462 = vmin.f32 %v460, 1.0
        %v463 = vmul.f32 %v461, 255.0
        %v464 = vmul.f32 %v462, 255.0
        %s465 = scalar_lea.vmem %s385, 16 [#allocation6]
        %v466 = vld [vmem:[%s465] sm:$0xff]
        %v467 = vld [vmem:[%s465 + $0x8] sm:$0xff]
        %v468 = vmul.f32 %v453, %v466
        %v469 = vmul.f32 %v453, %v467
        %v470 = vadd.f32 %v468, %v456
        %v471 = vadd.f32 %v469, %v456
        %v472 = vmax.f32 %v470, 0.0
        %v473 = vmax.f32 %v471, 0.0
        %v474 = vmin.f32 %v472, 1.0
        %v475 = vmin.f32 %v473, 1.0
        %v476 = vmul.f32 %v474, 255.0
        %v477 = vmul.f32 %v475, 255.0
        %s478 = scalar_lea.vmem %s385, 32 [#allocation6]
        %v479 = vld [vmem:[%s478] sm:$0xff]
        %v480 = vld [vmem:[%s478 + $0x8] sm:$0xff]
        %v481 = vmul.f32 %v453, %v479
        %v482 = vmul.f32 %v453, %v480
        %v483 = vadd.f32 %v481, %v456
        %v484 = vadd.f32 %v482, %v456
        %v485 = vmax.f32 %v483, 0.0
        %v486 = vmax.f32 %v484, 0.0
        %v487 = vmin.f32 %v485, 1.0
        %v488 = vmin.f32 %v486, 1.0
        %v489 = vmul.f32 %v487, 255.0
        %v490 = vmul.f32 %v488, 255.0
        %v491 = vmul.f32 %v463, 0.299
        %v492 = vmul.f32 %v464, 0.299
        %v493 = vmul.f32 %v476, 0.587
        %v494 = vmul.f32 %v477, 0.587
        %v495 = vadd.f32 %v491, %v493
        %v496 = vadd.f32 %v492, %v494
        %v497 = vmul.f32 %v489, 0.114
        %v498 = vmul.f32 %v490, 0.114
        %v499 = vadd.f32 %v495, %v497
        %v500 = vadd.f32 %v496, %v498
        %v501 = vsub.f32 %v499, 128.0
        %v502 = vsub.f32 %v500, 128.0
        %v503 = vmul.f32 %v463, -0.168736
        %v504 = vmul.f32 %v464, -0.168736
        %v505 = vmul.f32 %v476, 0.331264
        %v506 = vmul.f32 %v477, 0.331264
        %v507 = vsub.f32 %v503, %v505
        %v508 = vsub.f32 %v504, %v506
        %v509 = vmul.f32 %v489, 0.5
        %v510 = vmul.f32 %v490, 0.5
        %v511 = vadd.f32 %v507, %v509
        %v512 = vadd.f32 %v508, %v510
        %v513 = vmul.f32 %v463, 0.5
        %v514 = vmul.f32 %v464, 0.5
        %v515 = vmul.f32 %v476, 0.418688
        %v516 = vmul.f32 %v477, 0.418688
        %v517 = vsub.f32 %v513, %v515
        %v518 = vsub.f32 %v514, %v516
        %v519 = vmul.f32 %v489, 0.081312
        %v520 = vmul.f32 %v490, 0.081312
        %v521 = vsub.f32 %v517, %v519
        %v522 = vsub.f32 %v518, %v520
        %vm523 = vcmask 130048
        %v525 = vsel %vm523, %v443, 0
        %v528 = vsel %vm523, %v444, 0
        %530 = vmatprep.subr.mxu0 0.0
        %v531 = vand.u32 %v501, 4294901760
        %532 = vmatpush1.msra.mxu0 %v531
        %533 = vmatprep.subr.mxu0 0.0
        %v534 = vand.u32 %v502, 4294901760
        %535 = vmatpush1.msra.mxu0 %v534
        %536 = vmatprep.subr.mxu0 0.0
        %537 = vmatpush1.msra.mxu0 0.0
        %538 = vmatprep.subr.mxu0 0.0
        %539 = vmatpush1.msra.mxu0 0.0
        %540 = vmatprep.subr.mxu0 0.0
        %541 = vmatpush1.msra.mxu0 0.0
        %542 = vmatprep.subr.mxu0 0.0
        %543 = vmatpush1.msra.mxu0 0.0
        %544 = vmatprep.subr.mxu0 0.0
        %545 = vmatpush1.msra.mxu0 0.0
        %546 = vmatprep.subr.mxu0 0.0
        %547 = vmatpush1.msra.mxu0 0.0
        %548 = vmatprep.subr.mxu0 0.0
        %549 = vmatpush1.msra.mxu0 0.0
        %550 = vmatprep.subr.mxu0 0.0
        %551 = vmatpush1.msra.mxu0 0.0
        %552 = vmatprep.subr.mxu0 0.0
        %553 = vmatpush1.msra.mxu0 0.0
        %554 = vmatprep.subr.mxu0 0.0
        %555 = vmatpush1.msra.mxu0 0.0
        %556 = vmatprep.subr.mxu0 0.0
        %557 = vmatpush1.msra.mxu0 0.0
        %558 = vmatprep.subr.mxu0 0.0
        %559 = vmatpush1.msra.mxu0 0.0
        %560 = vmatprep.subr.mxu0 0.0
        %561 = vmatpush1.msra.mxu0 0.0
        %562 = vmatprep.subr.mxu0 0.0
        %563 = vmatpush1.msra.mxu0 0.0
        %564 = vmatprep.subr.mxu0 0.0
        %565 = vmatpush1.msra.mxu0 0.0
        %566 = vmatprep.subr.mxu0 0.0
        %567 = vmatpush1.msra.mxu0 0.0
        %568 = vmatprep.subr.mxu0 0.0
        %569 = vmatpush1.msra.mxu0 0.0
        %570 = vmatprep.subr.mxu0 0.0
        %571 = vmatpush1.msra.mxu0 0.0
        %572 = vmatprep.subr.mxu0 0.0
        %573 = vmatpush1.msra.mxu0 0.0
        %574 = vmatprep.subr.mxu0 0.0
        %575 = vmatpush1.msra.mxu0 0.0
        %576 = vmatprep.subr.mxu0 0.0
        %577 = vmatpush1.msra.mxu0 0.0
        %578 = vmatprep.subr.mxu0 0.0
        %579 = vmatpush1.msra.mxu0 0.0
        %580 = vmatprep.subr.mxu0 0.0
        %581 = vmatpush1.msra.mxu0 0.0
        %582 = vmatprep.subr.mxu0 0.0
        %583 = vmatpush1.msra.mxu0 0.0
        %584 = vmatprep.subr.mxu0 0.0
        %585 = vmatpush1.msra.mxu0 0.0
        %586 = vmatprep.subr.mxu0 0.0
        %587 = vmatpush1.msra.mxu0 0.0
        %588 = vmatprep.subr.mxu0 0.0
        %589 = vmatpush1.msra.mxu0 0.0
        %590 = vmatprep.subr.mxu0 0.0
        %591 = vmatpush1.msra.mxu0 0.0
        %592 = vmatprep.subr.mxu0 0.0
        %593 = vmatpush1.msra.mxu0 0.0
        %594 = vmatprep.subr.mxu0 0.0
        %595 = vmatpush1.msra.mxu0 0.0
        %596 = vmatprep.mubr.f32.mxu0 0.0
        %v597 = vand.u32 %v525, 4294901760
        %v598 = vsub.f32 %v525, %v597
        %v599 = vand.u32 %v598, 4294901760
        %v600 = vsub.f32 %v598, %v599
        %v601 = vand.u32 %v600, 4294901760
        %602 = vmatmul.mubr.f32.gmra.mrb[0].mxu0 %v601
        %v603 = vpop.f32.mrb[0].mxu0
        %v604 = vadd.f32 0.0, %v603
        %v605 = vpop.f32.mrb[0].mxu0
        %606 = vmatprep.mubr.f32.mxu0 0.0
        %v607 = vand.u32 %v528, 4294901760
        %v608 = vsub.f32 %v528, %v607
        %v609 = vand.u32 %v608, 4294901760
        %v610 = vsub.f32 %v608, %v609
        %v611 = vand.u32 %v610, 4294901760
        %612 = vmatmul.mubr.f32.gmra.mrb[0].mxu0 %v611
        %v613 = vpop.f32.mrb[0].mxu0
        %v614 = vadd.f32 0.0, %v613
        %v615 = vpop.f32.mrb[0].mxu0
        %616 = vdwg.mxu0
        %617 = vmatprep.subr.mxu0 0.0
        %v618 = vand.u32 %v501, 4294901760
        %v619 = vsub.f32 %v501, %v618
        %v620 = vand.u32 %v619, 4294901760
        %v621 = vsub.f32 %v619, %v620
        %v622 = vand.u32 %v621, 4294901760
        %623 = vmatpush1.msra.mxu0 %v622
        %624 = vmatprep.subr.mxu0 0.0
        %v625 = vand.u32 %v502, 4294901760
        %v626 = vsub.f32 %v502, %v625
        %v627 = vand.u32 %v626, 4294901760
        %v628 = vsub.f32 %v626, %v627
        %v629 = vand.u32 %v628, 4294901760
        %630 = vmatpush1.msra.mxu0 %v629
        %631 = vmatprep.subr.mxu0 0.0
        %632 = vmatpush1.msra.mxu0 0.0
        %633 = vmatprep.subr.mxu0 0.0
        %634 = vmatpush1.msra.mxu0 0.0
        %635 = vmatprep.subr.mxu0 0.0
        %636 = vmatpush1.msra.mxu0 0.0
        %637 = vmatprep.subr.mxu0 0.0
        %638 = vmatpush1.msra.mxu0 0.0
        %639 = vmatprep.subr.mxu0 0.0
        %640 = vmatpush1.msra.mxu0 0.0
        %641 = vmatprep.subr.mxu0 0.0
        %642 = vmatpush1.msra.mxu0 0.0
        %643 = vmatprep.subr.mxu0 0.0
        %644 = vmatpush1.msra.mxu0 0.0
        %645 = vmatprep.subr.mxu0 0.0
        %646 = vmatpush1.msra.mxu0 0.0
        %647 = vmatprep.subr.mxu0 0.0
        %648 = vmatpush1.msra.mxu0 0.0
        %649 = vmatprep.subr.mxu0 0.0
        %650 = vmatpush1.msra.mxu0 0.0
        %651 = vmatprep.subr.mxu0 0.0
        %652 = vmatpush1.msra.mxu0 0.0
        %653 = vmatprep.subr.mxu0 0.0
        %654 = vmatpush1.msra.mxu0 0.0
        %655 = vmatprep.subr.mxu0 0.0
        %656 = vmatpush1.msra.mxu0 0.0
        %657 = vmatprep.subr.mxu0 0.0
        %658 = vmatpush1.msra.mxu0 0.0
        %659 = vmatprep.subr.mxu0 0.0
        %660 = vmatpush1.msra.mxu0 0.0
        %661 = vmatprep.subr.mxu0 0.0
        %662 = vmatpush1.msra.mxu0 0.0
        %663 = vmatprep.subr.mxu0 0.0
        %664 = vmatpush1.msra.mxu0 0.0
        %665 = vmatprep.subr.mxu0 0.0
        %666 = vmatpush1.msra.mxu0 0.0
        %667 = vmatprep.subr.mxu0 0.0
        %668 = vmatpush1.msra.mxu0 0.0
        %669 = vmatprep.subr.mxu0 0.0
        %670 = vmatpush1.msra.mxu0 0.0
        %671 = vmatprep.subr.mxu0 0.0
        %672 = vmatpush1.msra.mxu0 0.0
        %673 = vmatprep.subr.mxu0 0.0
        %674 = vmatpush1.msra.mxu0 0.0
        %675 = vmatprep.subr.mxu0 0.0
        %676 = vmatpush1.msra.mxu0 0.0
        %677 = vmatprep.subr.mxu0 0.0
        %678 = vmatpush1.msra.mxu0 0.0
        %679 = vmatprep.subr.mxu0 0.0
        %680 = vmatpush1.msra.mxu0 0.0
        %681 = vmatprep.subr.mxu0 0.0
        %682 = vmatpush1.msra.mxu0 0.0
        %683 = vmatprep.subr.mxu0 0.0
        %684 = vmatpush1.msra.mxu0 0.0
        %685 = vmatprep.subr.mxu0 0.0
        %686 = vmatpush1.msra.mxu0 0.0
        %687 = vmatprep.subr.mxu0 0.0
        %688 = vmatpush1.msra.mxu0 0.0
        %689 = vmatprep.subr.mxu0 0.0
        %690 = vmatpush1.msra.mxu0 0.0
        %691 = vmatprep.mubr.f32.mxu0 0.0
        %v692 = vand.u32 %v525, 4294901760
        %693 = vmatmul.mubr.f32.gmra.mrb[0].mxu0 %v692
        %v694 = vpop.f32.mrb[0].mxu0
        %v695 = vadd.f32 %v604, %v694
        %v696 = vpop.f32.mrb[0].mxu0
        %697 = vmatprep.mubr.f32.mxu0 0.0
        %v698 = vand.u32 %v528, 4294901760
        %699 = vmatmul.mubr.f32.gmra.mrb[0].mxu0 %v698
        %v700 = vpop.f32.mrb[0].mxu0
        %v701 = vadd.f32 %v614, %v700
        %v702 = vpop.f32.mrb[0].mxu0
        %703 = vdwg.mxu0
        %704 = vmatprep.subr.mxu0 0.0
        %v705 = vand.u32 %v501, 4294901760
        %v706 = vsub.f32 %v501, %v705
        %707 = vmatpush1.msra.mxu0 %v706
        %708 = vmatprep.subr.mxu0 0.0
        %v709 = vand.u32 %v502, 4294901760
        %v710 = vsub.f32 %v502, %v709
        %711 = vmatpush1.msra.mxu0 %v710
        %712 = vmatprep.subr.mxu0 0.0
        %713 = vmatpush1.msra.mxu0 0.0
        %714 = vmatprep.subr.mxu0 0.0
        %715 = vmatpush1.msra.mxu0 0.0
        %716 = vmatprep.subr.mxu0 0.0
        %717 = vmatpush1.msra.mxu0 0.0
        %718 = vmatprep.subr.mxu0 0.0
        %719 = vmatpush1.msra.mxu0 0.0
        %720 = vmatprep.subr.mxu0 0.0
        %721 = vmatpush1.msra.mxu0 0.0
        %722 = vmatprep.subr.mxu0 0.0
        %723 = vmatpush1.msra.mxu0 0.0
        %724 = vmatprep.subr.mxu0 0.0
        %725 = vmatpush1.msra.mxu0 0.0
        %726 = vmatprep.subr.mxu0 0.0
        %727 = vmatpush1.msra.mxu0 0.0
        %728 = vmatprep.subr.mxu0 0.0
        %729 = vmatpush1.msra.mxu0 0.0
        %730 = vmatprep.subr.mxu0 0.0
        %731 = vmatpush1.msra.mxu0 0.0
        %732 = vmatprep.subr.mxu0 0.0
        %733 = vmatpush1.msra.mxu0 0.0
        %734 = vmatprep.subr.mxu0 0.0
        %735 = vmatpush1.msra.mxu0 0.0
        %736 = vmatprep.subr.mxu0 0.0
        %737 = vmatpush1.msra.mxu0 0.0
        %738 = vmatprep.subr.mxu0 0.0
        %739 = vmatpush1.msra.mxu0 0.0
        %740 = vmatprep.subr.mxu0 0.0
        %741 = vmatpush1.msra.mxu0 0.0
        %742 = vmatprep.subr.mxu0 0.0
        %743 = vmatpush1.msra.mxu0 0.0
        %744 = vmatprep.subr.mxu0 0.0
        %745 = vmatpush1.msra.mxu0 0.0
        %746 = vmatprep.subr.mxu0 0.0
        %747 = vmatpush1.msra.mxu0 0.0
        %748 = vmatprep.subr.mxu0 0.0
        %749 = vmatpush1.msra.mxu0 0.0
        %750 = vmatprep.subr.mxu0 0.0
        %751 = vmatpush1.msra.mxu0 0.0
        %752 = vmatprep.subr.mxu0 0.0
        %753 = vmatpush1.msra.mxu0 0.0
        %754 = vmatprep.subr.mxu0 0.0
        %755 = vmatpush1.msra.mxu0 0.0
        %756 = vmatprep.subr.mxu0 0.0
        %757 = vmatpush1.msra.mxu0 0.0
        %758 = vmatprep.subr.mxu0 0.0
        %759 = vmatpush1.msra.mxu0 0.0
        %760 = vmatprep.subr.mxu0 0.0
        %761 = vmatpush1.msra.mxu0 0.0
        %762 = vmatprep.subr.mxu0 0.0
        %763 = vmatpush1.msra.mxu0 0.0
        %764 = vmatprep.subr.mxu0 0.0
        %765 = vmatpush1.msra.mxu0 0.0
        %766 = vmatprep.subr.mxu0 0.0
        %767 = vmatpush1.msra.mxu0 0.0
        %768 = vmatprep.subr.mxu0 0.0
        %769 = vmatpush1.msra.mxu0 0.0
        %770 = vmatprep.subr.mxu0 0.0
        %771 = vmatpush1.msra.mxu0 0.0
        %772 = vmatprep.mubr.f32.mxu0 0.0
        %v773 = vand.u32 %v525, 4294901760
        %v774 = vsub.f32 %v525, %v773
        %775 = vmatmul.mubr.f32.gmra.mrb[0].mxu0 %v774
        %v776 = vpop.f32.mrb[0].mxu0
        %v777 = vadd.f32 %v695, %v776
        %v778 = vpop.f32.mrb[0].mxu0
        %779 = vmatprep.mubr.f32.mxu0 0.0
        %v780 = vand.u32 %v528, 4294901760
        %v781 = vsub.f32 %v528, %v780
        %782 = vmatmul.mubr.f32.gmra.mrb[0].mxu0 %v781
        %v783 = vpop.f32.mrb[0].mxu0
        %v784 = vadd.f32 %v701, %v783
        %v785 = vpop.f32.mrb[0].mxu0
        %786 = vdwg.mxu0
        %787 = vmatprep.subr.mxu0 0.0
        %v788 = vand.u32 %v501, 4294901760
        %789 = vmatpush1.msra.mxu0 %v788
        %790 = vmatprep.subr.mxu0 0.0
        %v791 = vand.u32 %v502, 4294901760
        %792 = vmatpush1.msra.mxu0 %v791
        %793 = vmatprep.subr.mxu0 0.0
        %794 = vmatpush1.msra.mxu0 0.0
        %795 = vmatprep.subr.mxu0 0.0
        %796 = vmatpush1.msra.mxu0 0.0
        %797 = vmatprep.subr.mxu0 0.0
        %798 = vmatpush1.msra.mxu0 0.0
        %799 = vmatprep.subr.mxu0 0.0
        %800 = vmatpush1.msra.mxu0 0.0
        %801 = vmatprep.subr.mxu0 0.0
        %802 = vmatpush1.msra.mxu0 0.0
        %803 = vmatprep.subr.mxu0 0.0
        %804 = vmatpush1.msra.mxu0 0.0
        %805 = vmatprep.subr.mxu0 0.0
        %806 = vmatpush1.msra.mxu0 0.0
        %807 = vmatprep.subr.mxu0 0.0
        %808 = vmatpush1.msra.mxu0 0.0
        %809 = vmatprep.subr.mxu0 0.0
        %810 = vmatpush1.msra.mxu0 0.0
        %811 = vmatprep.subr.mxu0 0.0
        %812 = vmatpush1.msra.mxu0 0.0
        %813 = vmatprep.subr.mxu0 0.0
        %814 = vmatpush1.msra.mxu0 0.0
        %815 = vmatprep.subr.mxu0 0.0
        %816 = vmatpush1.msra.mxu0 0.0
        %817 = vmatprep.subr.mxu0 0.0
        %818 = vmatpush1.msra.mxu0 0.0
        %819 = vmatprep.subr.mxu0 0.0
        %820 = vmatpush1.msra.mxu0 0.0
        %821 = vmatprep.subr.mxu0 0.0
        %822 = vmatpush1.msra.mxu0 0.0
        %823 = vmatprep.subr.mxu0 0.0
        %824 = vmatpush1.msra.mxu0 0.0
        %825 = vmatprep.subr.mxu0 0.0
        %826 = vmatpush1.msra.mxu0 0.0
        %827 = vmatprep.subr.mxu0 0.0
        %828 = vmatpush1.msra.mxu0 0.0
        %829 = vmatprep.subr.mxu0 0.0
        %830 = vmatpush1.msra.mxu0 0.0
        %831 = vmatprep.subr.mxu0 0.0
        %832 = vmatpush1.msra.mxu0 0.0
        %833 = vmatprep.subr.mxu0 0.0
        %834 = vmatpush1.msra.mxu0 0.0
        %835 = vmatprep.subr.mxu0 0.0
        %836 = vmatpush1.msra.mxu0 0.0
        %837 = vmatprep.subr.mxu0 0.0
        %838 = vmatpush1.msra.mxu0 0.0
        %839 = vmatprep.subr.mxu0 0.0
        %840 = vmatpush1.msra.mxu0 0.0
        %841 = vmatprep.subr.mxu0 0.0
        %842 = vmatpush1.msra.mxu0 0.0
        %843 = vmatprep.subr.mxu0 0.0
        %844 = vmatpush1.msra.mxu0 0.0
        %845 = vmatprep.subr.mxu0 0.0
        %846 = vmatpush1.msra.mxu0 0.0
        %847 = vmatprep.subr.mxu0 0.0
        %848 = vmatpush1.msra.mxu0 0.0
        %849 = vmatprep.subr.mxu0 0.0
        %850 = vmatpush1.msra.mxu0 0.0
        %851 = vmatprep.subr.mxu0 0.0
        %852 = vmatpush1.msra.mxu0 0.0
        %853 = vmatprep.mubr.f32.mxu0 0.0
        %v854 = vand.u32 %v525, 4294901760
        %v855 = vsub.f32 %v525, %v854
        %v856 = vand.u32 %v855, 4294901760
        %857 = vmatmul.mubr.f32.gmra.mrb[0].mxu0 %v856
        %v858 = vpop.f32.mrb[0].mxu0
        %v859 = vadd.f32 %v777, %v858
        %v860 = vpop.f32.mrb[0].mxu0
        %861 = vmatprep.mubr.f32.mxu0 0.0
        %v862 = vand.u32 %v528, 4294901760
        %v863 = vsub.f32 %v528, %v862
        %v864 = vand.u32 %v863, 4294901760
        %865 = vmatmul.mubr.f32.gmra.mrb[0].mxu0 %v864
        %v866 = vpop.f32.mrb[0].mxu0
        %v867 = vadd.f32 %v784, %v866
        %v868 = vpop.f32.mrb[0].mxu0
        %869 = vdwg.mxu0
        %870 = vmatprep.subr.mxu0 0.0
        %v871 = vand.u32 %v501, 4294901760
        %v872 = vsub.f32 %v501, %v871
        %v873 = vand.u32 %v872, 4294901760
        %874 = vmatpush1.msra.mxu0 %v873
        %875 = vmatprep.subr.mxu0 0.0
        %v876 = vand.u32 %v502, 4294901760
        %v877 = vsub.f32 %v502, %v876
        %v878 = vand.u32 %v877, 4294901760
        %879 = vmatpush1.msra.mxu0 %v878
        %880 = vmatprep.subr.mxu0 0.0
        %881 = vmatpush1.msra.mxu0 0.0
        %882 = vmatprep.subr.mxu0 0.0
        %883 = vmatpush1.msra.mxu0 0.0
        %884 = vmatprep.subr.mxu0 0.0
        %885 = vmatpush1.msra.mxu0 0.0
        %886 = vmatprep.subr.mxu0 0.0
        %887 = vmatpush1.msra.mxu0 0.0
        %888 = vmatprep.subr.mxu0 0.0
        %889 = vmatpush1.msra.mxu0 0.0
        %890 = vmatprep.subr.mxu0 0.0
        %891 = vmatpush1.msra.mxu0 0.0
        %892 = vmatprep.subr.mxu0 0.0
        %893 = vmatpush1.msra.mxu0 0.0
        %894 = vmatprep.subr.mxu0 0.0
        %895 = vmatpush1.msra.mxu0 0.0
        %896 = vmatprep.subr.mxu0 0.0
        %897 = vmatpush1.msra.mxu0 0.0
        %898 = vmatprep.subr.mxu0 0.0
        %899 = vmatpush1.msra.mxu0 0.0
        %900 = vmatprep.subr.mxu0 0.0
        %901 = vmatpush1.msra.mxu0 0.0
        %902 = vmatprep.subr.mxu0 0.0
        %903 = vmatpush1.msra.mxu0 0.0
        %904 = vmatprep.subr.mxu0 0.0
        %905 = vmatpush1.msra.mxu0 0.0
        %906 = vmatprep.subr.mxu0 0.0
        %907 = vmatpush1.msra.mxu0 0.0
        %908 = vmatprep.subr.mxu0 0.0
        %909 = vmatpush1.msra.mxu0 0.0
        %910 = vmatprep.subr.mxu0 0.0
        %911 = vmatpush1.msra.mxu0 0.0
        %912 = vmatprep.subr.mxu0 0.0
        %913 = vmatpush1.msra.mxu0 0.0
        %914 = vmatprep.subr.mxu0 0.0
        %915 = vmatpush1.msra.mxu0 0.0
        %916 = vmatprep.subr.mxu0 0.0
        %917 = vmatpush1.msra.mxu0 0.0
        %918 = vmatprep.subr.mxu0 0.0
        %919 = vmatpush1.msra.mxu0 0.0
        %920 = vmatprep.subr.mxu0 0.0
        %921 = vmatpush1.msra.mxu0 0.0
        %922 = vmatprep.subr.mxu0 0.0
        %923 = vmatpush1.msra.mxu0 0.0
        %924 = vmatprep.subr.mxu0 0.0
        %925 = vmatpush1.msra.mxu0 0.0
        %926 = vmatprep.subr.mxu0 0.0
        %927 = vmatpush1.msra.mxu0 0.0
        %928 = vmatprep.subr.mxu0 0.0
        %929 = vmatpush1.msra.mxu0 0.0
        %930 = vmatprep.subr.mxu0 0.0
        %931 = vmatpush1.msra.mxu0 0.0
        %932 = vmatprep.subr.mxu0 0.0
        %933 = vmatpush1.msra.mxu0 0.0
        %934 = vmatprep.subr.mxu0 0.0
        %935 = vmatpush1.msra.mxu0 0.0
        %936 = vmatprep.subr.mxu0 0.0
        %937 = vmatpush1.msra.mxu0 0.0
        %938 = vmatprep.subr.mxu0 0.0
        %939 = vmatpush1.msra.mxu0 0.0
        %940 = vmatprep.mubr.f32.mxu0 0.0
        %v941 = vand.u32 %v525, 4294901760
        %942 = vmatmul.mubr.f32.gmra.mrb[0].mxu0 %v941
        %v943 = vpop.f32.mrb[0].mxu0
        %v944 = vadd.f32 %v859, %v943
        %v945 = vpop.f32.mrb[0].mxu0
        %946 = vmatprep.mubr.f32.mxu0 0.0
        %v947 = vand.u32 %v528, 4294901760
        %948 = vmatmul.mubr.f32.gmra.mrb[0].mxu0 %v947
        %v949 = vpop.f32.mrb[0].mxu0
        %v950 = vadd.f32 %v867, %v949
        %v951 = vpop.f32.mrb[0].mxu0
        %952 = vdwg.mxu0
        %953 = vmatprep.subr.mxu0 0.0
        %v954 = vand.u32 %v501, 4294901760
        %955 = vmatpush1.msra.mxu0 %v954
        %956 = vmatprep.subr.mxu0 0.0
        %v957 = vand.u32 %v502, 4294901760
        %958 = vmatpush1.msra.mxu0 %v957
        %959 = vmatprep.subr.mxu0 0.0
        %960 = vmatpush1.msra.mxu0 0.0
        %961 = vmatprep.subr.mxu0 0.0
        %962 = vmatpush1.msra.mxu0 0.0
        %963 = vmatprep.subr.mxu0 0.0
        %964 = vmatpush1.msra.mxu0 0.0
        %965 = vmatprep.subr.mxu0 0.0
        %966 = vmatpush1.msra.mxu0 0.0
        %967 = vmatprep.subr.mxu0 0.0
        %968 = vmatpush1.msra.mxu0 0.0
        %969 = vmatprep.subr.mxu0 0.0
        %970 = vmatpush1.msra.mxu0 0.0
        %971 = vmatprep.subr.mxu0 0.0
        %972 = vmatpush1.msra.mxu0 0.0
        %973 = vmatprep.subr.mxu0 0.0
        %974 = vmatpush1.msra.mxu0 0.0
        %975 = vmatprep.subr.mxu0 0.0
        %976 = vmatpush1.msra.mxu0 0.0
        %977 = vmatprep.subr.mxu0 0.0
        %978 = vmatpush1.msra.mxu0 0.0
        %979 = vmatprep.subr.mxu0 0.0
        %980 = vmatpush1.msra.mxu0 0.0
        %981 = vmatprep.subr.mxu0 0.0
        %982 = vmatpush1.msra.mxu0 0.0
        %983 = vmatprep.subr.mxu0 0.0
        %984 = vmatpush1.msra.mxu0 0.0
        %985 = vmatprep.subr.mxu0 0.0
        %986 = vmatpush1.msra.mxu0 0.0
        %987 = vmatprep.subr.mxu0 0.0
        %988 = vmatpush1.msra.mxu0 0.0
        %989 = vmatprep.subr.mxu0 0.0
        %990 = vmatpush1.msra.mxu0 0.0
        %991 = vmatprep.subr.mxu0 0.0
        %992 = vmatpush1.msra.mxu0 0.0
        %993 = vmatprep.subr.mxu0 0.0
        %994 = vmatpush1.msra.mxu0 0.0
        %995 = vmatprep.subr.mxu0 0.0
        %996 = vmatpush1.msra.mxu0 0.0
        %997 = vmatprep.subr.mxu0 0.0
        %998 = vmatpush1.msra.mxu0 0.0
        %999 = vmatprep.subr.mxu0 0.0
        %1000 = vmatpush1.msra.mxu0 0.0
        %1001 = vmatprep.subr.mxu0 0.0
        %1002 = vmatpush1.msra.mxu0 0.0
        %1003 = vmatprep.subr.mxu0 0.0
        %1004 = vmatpush1.msra.mxu0 0.0
        %1005 = vmatprep.subr.mxu0 0.0
        %1006 = vmatpush1.msra.mxu0 0.0
        %1007 = vmatprep.subr.mxu0 0.0
        %1008 = vmatpush1.msra.mxu0 0.0
        %1009 = vmatprep.subr.mxu0 0.0
        %1010 = vmatpush1.msra.mxu0 0.0
        %1011 = vmatprep.subr.mxu0 0.0
        %1012 = vmatpush1.msra.mxu0 0.0
        %1013 = vmatprep.subr.mxu0 0.0
        %1014 = vmatpush1.msra.mxu0 0.0
        %1015 = vmatprep.subr.mxu0 0.0
        %1016 = vmatpush1.msra.mxu0 0.0
        %1017 = vmatprep.subr.mxu0 0.0
        %1018 = vmatpush1.msra.mxu0 0.0
        %1019 = vmatprep.mubr.f32.mxu0 0.0
        %v1020 = vand.u32 %v525, 4294901760
        %1021 = vmatmul.mubr.f32.gmra.mrb[0].mxu0 %v1020
        %v1022 = vpop.f32.mrb[0].mxu0
        %v1023 = vadd.f32 %v944, %v1022
        %v1024 = vpop.f32.mrb[0].mxu0
        %1025 = vmatprep.mubr.f32.mxu0 0.0
        %v1026 = vand.u32 %v528, 4294901760
        %1027 = vmatmul.mubr.f32.gmra.mrb[0].mxu0 %v1026
        %v1028 = vpop.f32.mrb[0].mxu0
        %v1029 = vadd.f32 %v950, %v1028
        %v1030 = vpop.f32.mrb[0].mxu0
        %1031 = vdwg.mxu0
        %1032 = vmatprep.subr.mxu0 0.0
        %v1033 = vand.u32 %v511, 4294901760
        %1034 = vmatpush1.msra.mxu0 %v1033
        %1035 = vmatprep.subr.mxu0 0.0
        %v1036 = vand.u32 %v512, 4294901760
        %1037 = vmatpush1.msra.mxu0 %v1036
        %1038 = vmatprep.subr.mxu0 0.0
        %1039 = vmatpush1.msra.mxu0 0.0
        %1040 = vmatprep.subr.mxu0 0.0
        %1041 = vmatpush1.msra.mxu0 0.0
        %1042 = vmatprep.subr.mxu0 0.0
        %1043 = vmatpush1.msra.mxu0 0.0
        %1044 = vmatprep.subr.mxu0 0.0
        %1045 = vmatpush1.msra.mxu0 0.0
        %1046 = vmatprep.subr.mxu0 0.0
        %1047 = vmatpush1.msra.mxu0 0.0
        %1048 = vmatprep.subr.mxu0 0.0
        %1049 = vmatpush1.msra.mxu0 0.0
        %1050 = vmatprep.subr.mxu0 0.0
        %1051 = vmatpush1.msra.mxu0 0.0
        %1052 = vmatprep.subr.mxu0 0.0
        %1053 = vmatpush1.msra.mxu0 0.0
        %1054 = vmatprep.subr.mxu0 0.0
        %1055 = vmatpush1.msra.mxu0 0.0
        %1056 = vmatprep.subr.mxu0 0.0
        %1057 = vmatpush1.msra.mxu0 0.0
        %1058 = vmatprep.subr.mxu0 0.0
        %1059 = vmatpush1.msra.mxu0 0.0
        %1060 = vmatprep.subr.mxu0 0.0
        %1061 = vmatpush1.msra.mxu0 0.0
        %1062 = vmatprep.subr.mxu0 0.0
        %1063 = vmatpush1.msra.mxu0 0.0
        %1064 = vmatprep.subr.mxu0 0.0
        %1065 = vmatpush1.msra.mxu0 0.0
        %1066 = vmatprep.subr.mxu0 0.0
        %1067 = vmatpush1.msra.mxu0 0.0
        %1068 = vmatprep.subr.mxu0 0.0
        %1069 = vmatpush1.msra.mxu0 0.0
        %1070 = vmatprep.subr.mxu0 0.0
        %1071 = vmatpush1.msra.mxu0 0.0
        %1072 = vmatprep.subr.mxu0 0.0
        %1073 = vmatpush1.msra.mxu0 0.0
        %1074 = vmatprep.subr.mxu0 0.0
        %1075 = vmatpush1.msra.mxu0 0.0
        %1076 = vmatprep.subr.mxu0 0.0
        %1077 = vmatpush1.msra.mxu0 0.0
        %1078 = vmatprep.subr.mxu0 0.0
        %1079 = vmatpush1.msra.mxu0 0.0
        %1080 = vmatprep.subr.mxu0 0.0
        %1081 = vmatpush1.msra.mxu0 0.0
        %1082 = vmatprep.subr.mxu0 0.0
        %1083 = vmatpush1.msra.mxu0 0.0
        %1084 = vmatprep.subr.mxu0 0.0
        %1085 = vmatpush1.msra.mxu0 0.0
        %1086 = vmatprep.subr.mxu0 0.0
        %1087 = vmatpush1.msra.mxu0 0.0
        %1088 = vmatprep.subr.mxu0 0.0
        %1089 = vmatpush1.msra.mxu0 0.0
        %1090 = vmatprep.subr.mxu0 0.0
        %1091 = vmatpush1.msra.mxu0 0.0
        %1092 = vmatprep.subr.mxu0 0.0
        %1093 = vmatpush1.msra.mxu0 0.0
        %1094 = vmatprep.subr.mxu0 0.0
        %1095 = vmatpush1.msra.mxu0 0.0
        %1096 = vmatprep.subr.mxu0 0.0
        %1097 = vmatpush1.msra.mxu0 0.0
        %1098 = vmatprep.mubr.f32.mxu0 0.0
        %v1099 = vand.u32 %v525, 4294901760
        %v1100 = vsub.f32 %v525, %v1099
        %v1101 = vand.u32 %v1100, 4294901760
        %v1102 = vsub.f32 %v1100, %v1101
        %v1103 = vand.u32 %v1102, 4294901760
        %1104 = vmatmul.mubr.f32.gmra.mrb[0].mxu0 %v1103
        %v1105 = vpop.f32.mrb[0].mxu0
        %v1106 = vadd.f32 0.0, %v1105
        %v1107 = vpop.f32.mrb[0].mxu0
        %1108 = vmatprep.mubr.f32.mxu0 0.0
        %v1109 = vand.u32 %v528, 4294901760
        %v1110 = vsub.f32 %v528, %v1109
        %v1111 = vand.u32 %v1110, 4294901760
        %v1112 = vsub.f32 %v1110, %v1111
        %v1113 = vand.u32 %v1112, 4294901760
        %1114 = vmatmul.mubr.f32.gmra.mrb[0].mxu0 %v1113
        %v1115 = vpop.f32.mrb[0].mxu0
        %v1116 = vadd.f32 0.0, %v1115
        %v1117 = vpop.f32.mrb[0].mxu0
        %1118 = vdwg.mxu0
        %1119 = vmatprep.subr.mxu0 0.0
        %v1120 = vand.u32 %v511, 4294901760
        %v1121 = vsub.f32 %v511, %v1120
        %v1122 = vand.u32 %v1121, 4294901760
        %v1123 = vsub.f32 %v1121, %v1122
        %v1124 = vand.u32 %v1123, 4294901760
        %1125 = vmatpush1.msra.mxu0 %v1124
        %1126 = vmatprep.subr.mxu0 0.0
        %v1127 = vand.u32 %v512, 4294901760
        %v1128 = vsub.f32 %v512, %v1127
        %v1129 = vand.u32 %v1128, 4294901760
        %v1130 = vsub.f32 %v1128, %v1129
        %v1131 = vand.u32 %v1130, 4294901760
        %1132 = vmatpush1.msra.mxu0 %v1131
        %1133 = vmatprep.subr.mxu0 0.0
        %1134 = vmatpush1.msra.mxu0 0.0
        %1135 = vmatprep.subr.mxu0 0.0
        %1136 = vmatpush1.msra.mxu0 0.0
        %1137 = vmatprep.subr.mxu0 0.0
        %1138 = vmatpush1.msra.mxu0 0.0
        %1139 = vmatprep.subr.mxu0 0.0
        %1140 = vmatpush1.msra.mxu0 0.0
        %1141 = vmatprep.subr.mxu0 0.0
        %1142 = vmatpush1.msra.mxu0 0.0
        %1143 = vmatprep.subr.mxu0 0.0
        %1144 = vmatpush1.msra.mxu0 0.0
        %1145 = vmatprep.subr.mxu0 0.0
        %1146 = vmatpush1.msra.mxu0 0.0
        %1147 = vmatprep.subr.mxu0 0.0
        %1148 = vmatpush1.msra.mxu0 0.0
        %1149 = vmatprep.subr.mxu0 0.0
        %1150 = vmatpush1.msra.mxu0 0.0
        %1151 = vmatprep.subr.mxu0 0.0
        %1152 = vmatpush1.msra.mxu0 0.0
        %1153 = vmatprep.subr.mxu0 0.0
        %1154 = vmatpush1.msra.mxu0 0.0
        %1155 = vmatprep.subr.mxu0 0.0
        %1156 = vmatpush1.msra.mxu0 0.0
        %1157 = vmatprep.subr.mxu0 0.0
        %1158 = vmatpush1.msra.mxu0 0.0
        %1159 = vmatprep.subr.mxu0 0.0
        %1160 = vmatpush1.msra.mxu0 0.0
        %1161 = vmatprep.subr.mxu0 0.0
        %1162 = vmatpush1.msra.mxu0 0.0
        %1163 = vmatprep.subr.mxu0 0.0
        %1164 = vmatpush1.msra.mxu0 0.0
        %1165 = vmatprep.subr.mxu0 0.0
        %1166 = vmatpush1.msra.mxu0 0.0
        %1167 = vmatprep.subr.mxu0 0.0
        %1168 = vmatpush1.msra.mxu0 0.0
        %1169 = vmatprep.subr.mxu0 0.0
        %1170 = vmatpush1.msra.mxu0 0.0
        %1171 = vmatprep.subr.mxu0 0.0
        %1172 = vmatpush1.msra.mxu0 0.0
        %1173 = vmatprep.subr.mxu0 0.0
        %1174 = vmatpush1.msra.mxu0 0.0
        %1175 = vmatprep.subr.mxu0 0.0
        %1176 = vmatpush1.msra.mxu0 0.0
        %1177 = vmatprep.subr.mxu0 0.0
        %1178 = vmatpush1.msra.mxu0 0.0
        %1179 = vmatprep.subr.mxu0 0.0
        %1180 = vmatpush1.msra.mxu0 0.0
        %1181 = vmatprep.subr.mxu0 0.0
        %1182 = vmatpush1.msra.mxu0 0.0
        %1183 = vmatprep.subr.mxu0 0.0
        %1184 = vmatpush1.msra.mxu0 0.0
        %1185 = vmatprep.subr.mxu0 0.0
        %1186 = vmatpush1.msra.mxu0 0.0
        %1187 = vmatprep.subr.mxu0 0.0
        %1188 = vmatpush1.msra.mxu0 0.0
        %1189 = vmatprep.subr.mxu0 0.0
        %1190 = vmatpush1.msra.mxu0 0.0
        %1191 = vmatprep.subr.mxu0 0.0
        %1192 = vmatpush1.msra.mxu0 0.0
        %1193 = vmatprep.mubr.f32.mxu0 0.0
        %v1194 = vand.u32 %v525, 4294901760
        %1195 = vmatmul.mubr.f32.gmra.mrb[0].mxu0 %v1194
        %v1196 = vpop.f32.mrb[0].mxu0
        %v1197 = vadd.f32 %v1106, %v1196
        %v1198 = vpop.f32.mrb[0].mxu0
        %1199 = vmatprep.mubr.f32.mxu0 0.0
        %v1200 = vand.u32 %v528, 4294901760
        %1201 = vmatmul.mubr.f32.gmra.mrb[0].mxu0 %v1200
        %v1202 = vpop.f32.mrb[0].mxu0
        %v1203 = vadd.f32 %v1116, %v1202
        %v1204 = vpop.f32.mrb[0].mxu0
        %1205 = vdwg.mxu0
        %1206 = vmatprep.subr.mxu0 0.0
        %v1207 = vand.u32 %v511, 4294901760
        %v1208 = vsub.f32 %v511, %v1207
        %1209 = vmatpush1.msra.mxu0 %v1208
        %1210 = vmatprep.subr.mxu0 0.0
        %v1211 = vand.u32 %v512, 4294901760
        %v1212 = vsub.f32 %v512, %v1211
        %1213 = vmatpush1.msra.mxu0 %v1212
        %1214 = vmatprep.subr.mxu0 0.0
        %1215 = vmatpush1.msra.mxu0 0.0
        %1216 = vmatprep.subr.mxu0 0.0
        %1217 = vmatpush1.msra.mxu0 0.0
        %1218 = vmatprep.subr.mxu0 0.0
        %1219 = vmatpush1.msra.mxu0 0.0
        %1220 = vmatprep.subr.mxu0 0.0
        %1221 = vmatpush1.msra.mxu0 0.0
        %1222 = vmatprep.subr.mxu0 0.0
        %1223 = vmatpush1.msra.mxu0 0.0
        %1224 = vmatprep.subr.mxu0 0.0
        %1225 = vmatpush1.msra.mxu0 0.0
        %1226 = vmatprep.subr.mxu0 0.0
        %1227 = vmatpush1.msra.mxu0 0.0
        %1228 = vmatprep.subr.mxu0 0.0
        %1229 = vmatpush1.msra.mxu0 0.0
        %1230 = vmatprep.subr.mxu0 0.0
        %1231 = vmatpush1.msra.mxu0 0.0
        %1232 = vmatprep.subr.mxu0 0.0
        %1233 = vmatpush1.msra.mxu0 0.0
        %1234 = vmatprep.subr.mxu0 0.0
        %1235 = vmatpush1.msra.mxu0 0.0
        %1236 = vmatprep.subr.mxu0 0.0
        %1237 = vmatpush1.msra.mxu0 0.0
        %1238 = vmatprep.subr.mxu0 0.0
        %1239 = vmatpush1.msra.mxu0 0.0
        %1240 = vmatprep.subr.mxu0 0.0
        %1241 = vmatpush1.msra.mxu0 0.0
        %1242 = vmatprep.subr.mxu0 0.0
        %1243 = vmatpush1.msra.mxu0 0.0
        %1244 = vmatprep.subr.mxu0 0.0
        %1245 = vmatpush1.msra.mxu0 0.0
        %1246 = vmatprep.subr.mxu0 0.0
        %1247 = vmatpush1.msra.mxu0 0.0
        %1248 = vmatprep.subr.mxu0 0.0
        %1249 = vmatpush1.msra.mxu0 0.0
        %1250 = vmatprep.subr.mxu0 0.0
        %1251 = vmatpush1.msra.mxu0 0.0
        %1252 = vmatprep.subr.mxu0 0.0
        %1253 = vmatpush1.msra.mxu0 0.0
        %1254 = vmatprep.subr.mxu0 0.0
        %1255 = vmatpush1.msra.mxu0 0.0
        %1256 = vmatprep.subr.mxu0 0.0
        %1257 = vmatpush1.msra.mxu0 0.0
        %1258 = vmatprep.subr.mxu0 0.0
        %1259 = vmatpush1.msra.mxu0 0.0
        %1260 = vmatprep.subr.mxu0 0.0
        %1261 = vmatpush1.msra.mxu0 0.0
        %1262 = vmatprep.subr.mxu0 0.0
        %1263 = vmatpush1.msra.mxu0 0.0
        %1264 = vmatprep.subr.mxu0 0.0
        %1265 = vmatpush1.msra.mxu0 0.0
        %1266 = vmatprep.subr.mxu0 0.0
        %1267 = vmatpush1.msra.mxu0 0.0
        %1268 = vmatprep.subr.mxu0 0.0
        %1269 = vmatpush1.msra.mxu0 0.0
        %1270 = vmatprep.subr.mxu0 0.0
        %1271 = vmatpush1.msra.mxu0 0.0
        %1272 = vmatprep.subr.mxu0 0.0
        %1273 = vmatpush1.msra.mxu0 0.0
        %1274 = vmatprep.mubr.f32.mxu0 0.0
        %v1275 = vand.u32 %v525, 4294901760
        %v1276 = vsub.f32 %v525, %v1275
        %1277 = vmatmul.mubr.f32.gmra.mrb[0].mxu0 %v1276
        %v1278 = vpop.f32.mrb[0].mxu0
        %v1279 = vadd.f32 %v1197, %v1278
        %v1280 = vpop.f32.mrb[0].mxu0
        %1281 = vmatprep.mubr.f32.mxu0 0.0
        %v1282 = vand.u32 %v528, 4294901760
        %v1283 = vsub.f32 %v528, %v1282
        %1284 = vmatmul.mubr.f32.gmra.mrb[0].mxu0 %v1283
        %v1285 = vpop.f32.mrb[0].mxu0
        %v1286 = vadd.f32 %v1203, %v1285
        %v1287 = vpop.f32.mrb[0].mxu0
        %1288 = vdwg.mxu0
        %1289 = vmatprep.subr.mxu0 0.0
        %v1290 = vand.u32 %v511, 4294901760
        %1291 = vmatpush1.msra.mxu0 %v1290
        %1292 = vmatprep.subr.mxu0 0.0
        %v1293 = vand.u32 %v512, 4294901760
        %1294 = vmatpush1.msra.mxu0 %v1293
        %1295 = vmatprep.subr.mxu0 0.0
        %1296 = vmatpush1.msra.mxu0 0.0
        %1297 = vmatprep.subr.mxu0 0.0
        %1298 = vmatpush1.msra.mxu0 0.0
        %1299 = vmatprep.subr.mxu0 0.0
        %1300 = vmatpush1.msra.mxu0 0.0
        %1301 = vmatprep.subr.mxu0 0.0
        %1302 = vmatpush1.msra.mxu0 0.0
        %1303 = vmatprep.subr.mxu0 0.0
        %1304 = vmatpush1.msra.mxu0 0.0
        %1305 = vmatprep.subr.mxu0 0.0
        %1306 = vmatpush1.msra.mxu0 0.0
        %1307 = vmatprep.subr.mxu0 0.0
        %1308 = vmatpush1.msra.mxu0 0.0
        %1309 = vmatprep.subr.mxu0 0.0
        %1310 = vmatpush1.msra.mxu0 0.0
        %1311 = vmatprep.subr.mxu0 0.0
        %1312 = vmatpush1.msra.mxu0 0.0
        %1313 = vmatprep.subr.mxu0 0.0
        %1314 = vmatpush1.msra.mxu0 0.0
        %1315 = vmatprep.subr.mxu0 0.0
        %1316 = vmatpush1.msra.mxu0 0.0
        %1317 = vmatprep.subr.mxu0 0.0
        %1318 = vmatpush1.msra.mxu0 0.0
        %1319 = vmatprep.subr.mxu0 0.0
        %1320 = vmatpush1.msra.mxu0 0.0
        %1321 = vmatprep.subr.mxu0 0.0
        %1322 = vmatpush1.msra.mxu0 0.0
        %1323 = vmatprep.subr.mxu0 0.0
        %1324 = vmatpush1.msra.mxu0 0.0
        %1325 = vmatprep.subr.mxu0 0.0
        %1326 = vmatpush1.msra.mxu0 0.0
        %1327 = vmatprep.subr.mxu0 0.0
        %1328 = vmatpush1.msra.mxu0 0.0
        %1329 = vmatprep.subr.mxu0 0.0
        %1330 = vmatpush1.msra.mxu0 0.0
        %1331 = vmatprep.subr.mxu0 0.0
        %1332 = vmatpush1.msra.mxu0 0.0
        %1333 = vmatprep.subr.mxu0 0.0
        %1334 = vmatpush1.msra.mxu0 0.0
        %1335 = vmatprep.subr.mxu0 0.0
        %1336 = vmatpush1.msra.mxu0 0.0
        %1337 = vmatprep.subr.mxu0 0.0
        %1338 = vmatpush1.msra.mxu0 0.0
        %1339 = vmatprep.subr.mxu0 0.0
        %1340 = vmatpush1.msra.mxu0 0.0
        %1341 = vmatprep.subr.mxu0 0.0
        %1342 = vmatpush1.msra.mxu0 0.0
        %1343 = vmatprep.subr.mxu0 0.0
        %1344 = vmatpush1.msra.mxu0 0.0
        %1345 = vmatprep.subr.mxu0 0.0
        %1346 = vmatpush1.msra.mxu0 0.0
        %1347 = vmatprep.subr.mxu0 0.0
        %1348 = vmatpush1.msra.mxu0 0.0
        %1349 = vmatprep.subr.mxu0 0.0
        %1350 = vmatpush1.msra.mxu0 0.0
        %1351 = vmatprep.subr.mxu0 0.0
        %1352 = vmatpush1.msra.mxu0 0.0
        %1353 = vmatprep.subr.mxu0 0.0
        %1354 = vmatpush1.msra.mxu0 0.0
        %1355 = vmatprep.mubr.f32.mxu0 0.0
        %v1356 = vand.u32 %v525, 4294901760
        %v1357 = vsub.f32 %v525, %v1356
        %v1358 = vand.u32 %v1357, 4294901760
        %1359 = vmatmul.mubr.f32.gmra.mrb[0].mxu0 %v1358
        %v1360 = vpop.f32.mrb[0].mxu0
        %v1361 = vadd.f32 %v1279, %v1360
        %v1362 = vpop.f32.mrb[0].mxu0
        %1363 = vmatprep.mubr.f32.mxu0 0.0
        %v1364 = vand.u32 %v528, 4294901760
        %v1365 = vsub.f32 %v528, %v1364
        %v1366 = vand.u32 %v1365, 4294901760
        %1367 = vmatmul.mubr.f32.gmra.mrb[0].mxu0 %v1366
        %v1368 = vpop.f32.mrb[0].mxu0
        %v1369 = vadd.f32 %v1286, %v1368
        %v1370 = vpop.f32.mrb[0].mxu0
        %1371 = vdwg.mxu0
        %1372 = vmatprep.subr.mxu0 0.0
        %v1373 = vand.u32 %v511, 4294901760
        %v1374 = vsub.f32 %v511, %v1373
        %v1375 = vand.u32 %v1374, 4294901760
        %1376 = vmatpush1.msra.mxu0 %v1375
        %1377 = vmatprep.subr.mxu0 0.0
        %v1378 = vand.u32 %v512, 4294901760
        %v1379 = vsub.f32 %v512, %v1378
        %v1380 = vand.u32 %v1379, 4294901760
        %1381 = vmatpush1.msra.mxu0 %v1380
        %1382 = vmatprep.subr.mxu0 0.0
        %1383 = vmatpush1.msra.mxu0 0.0
        %1384 = vmatprep.subr.mxu0 0.0
        %1385 = vmatpush1.msra.mxu0 0.0
        %1386 = vmatprep.subr.mxu0 0.0
        %1387 = vmatpush1.msra.mxu0 0.0
        %1388 = vmatprep.subr.mxu0 0.0
        %1389 = vmatpush1.msra.mxu0 0.0
        %1390 = vmatprep.subr.mxu0 0.0
        %1391 = vmatpush1.msra.mxu0 0.0
        %1392 = vmatprep.subr.mxu0 0.0
        %1393 = vmatpush1.msra.mxu0 0.0
        %1394 = vmatprep.subr.mxu0 0.0
        %1395 = vmatpush1.msra.mxu0 0.0
        %1396 = vmatprep.subr.mxu0 0.0
        %1397 = vmatpush1.msra.mxu0 0.0
        %1398 = vmatprep.subr.mxu0 0.0
        %1399 = vmatpush1.msra.mxu0 0.0
        %1400 = vmatprep.subr.mxu0 0.0
        %1401 = vmatpush1.msra.mxu0 0.0
        %1402 = vmatprep.subr.mxu0 0.0
        %1403 = vmatpush1.msra.mxu0 0.0
        %1404 = vmatprep.subr.mxu0 0.0
        %1405 = vmatpush1.msra.mxu0 0.0
        %1406 = vmatprep.subr.mxu0 0.0
        %1407 = vmatpush1.msra.mxu0 0.0
        %1408 = vmatprep.subr.mxu0 0.0
        %1409 = vmatpush1.msra.mxu0 0.0
        %1410 = vmatprep.subr.mxu0 0.0
        %1411 = vmatpush1.msra.mxu0 0.0
        %1412 = vmatprep.subr.mxu0 0.0
        %1413 = vmatpush1.msra.mxu0 0.0
        %1414 = vmatprep.subr.mxu0 0.0
        %1415 = vmatpush1.msra.mxu0 0.0
        %1416 = vmatprep.subr.mxu0 0.0
        %1417 = vmatpush1.msra.mxu0 0.0
        %1418 = vmatprep.subr.mxu0 0.0
        %1419 = vmatpush1.msra.mxu0 0.0
        %1420 = vmatprep.subr.mxu0 0.0
        %1421 = vmatpush1.msra.mxu0 0.0
        %1422 = vmatprep.subr.mxu0 0.0
        %1423 = vmatpush1.msra.mxu0 0.0
        %1424 = vmatprep.subr.mxu0 0.0
        %1425 = vmatpush1.msra.mxu0 0.0
        %1426 = vmatprep.subr.mxu0 0.0
        %1427 = vmatpush1.msra.mxu0 0.0
        %1428 = vmatprep.subr.mxu0 0.0
        %1429 = vmatpush1.msra.mxu0 0.0
        %1430 = vmatprep.subr.mxu0 0.0
        %1431 = vmatpush1.msra.mxu0 0.0
        %1432 = vmatprep.subr.mxu0 0.0
        %1433 = vmatpush1.msra.mxu0 0.0
        %1434 = vmatprep.subr.mxu0 0.0
        %1435 = vmatpush1.msra.mxu0 0.0
        %1436 = vmatprep.subr.mxu0 0.0
        %1437 = vmatpush1.msra.mxu0 0.0
        %1438 = vmatprep.subr.mxu0 0.0
        %1439 = vmatpush1.msra.mxu0 0.0
        %1440 = vmatprep.subr.mxu0 0.0
        %1441 = vmatpush1.msra.mxu0 0.0
        %1442 = vmatprep.mubr.f32.mxu0 0.0
        %v1443 = vand.u32 %v525, 4294901760
        %1444 = vmatmul.mubr.f32.gmra.mrb[0].mxu0 %v1443
        %v1445 = vpop.f32.mrb[0].mxu0
        %v1446 = vadd.f32 %v1361, %v1445
        %v1447 = vpop.f32.mrb[0].mxu0
        %1448 = vmatprep.mubr.f32.mxu0 0.0
        %v1449 = vand.u32 %v528, 4294901760
        %1450 = vmatmul.mubr.f32.gmra.mrb[0].mxu0 %v1449
        %v1451 = vpop.f32.mrb[0].mxu0
        %v1452 = vadd.f32 %v1369, %v1451
        %v1453 = vpop.f32.mrb[0].mxu0
        %1454 = vdwg.mxu0
        %1455 = vmatprep.subr.mxu0 0.0
        %v1456 = vand.u32 %v511, 4294901760
        %1457 = vmatpush1.msra.mxu0 %v1456
        %1458 = vmatprep.subr.mxu0 0.0
        %v1459 = vand.u32 %v512, 4294901760
        %1460 = vmatpush1.msra.mxu0 %v1459
        %1461 = vmatprep.subr.mxu0 0.0
        %1462 = vmatpush1.msra.mxu0 0.0
        %1463 = vmatprep.subr.mxu0 0.0
        %1464 = vmatpush1.msra.mxu0 0.0
        %1465 = vmatprep.subr.mxu0 0.0
        %1466 = vmatpush1.msra.mxu0 0.0
        %1467 = vmatprep.subr.mxu0 0.0
        %1468 = vmatpush1.msra.mxu0 0.0
        %1469 = vmatprep.subr.mxu0 0.0
        %1470 = vmatpush1.msra.mxu0 0.0
        %1471 = vmatprep.subr.mxu0 0.0
        %1472 = vmatpush1.msra.mxu0 0.0
        %1473 = vmatprep.subr.mxu0 0.0
        %1474 = vmatpush1.msra.mxu0 0.0
        %1475 = vmatprep.subr.mxu0 0.0
        %1476 = vmatpush1.msra.mxu0 0.0
        %1477 = vmatprep.subr.mxu0 0.0
        %1478 = vmatpush1.msra.mxu0 0.0
        %1479 = vmatprep.subr.mxu0 0.0
        %1480 = vmatpush1.msra.mxu0 0.0
        %1481 = vmatprep.subr.mxu0 0.0
        %1482 = vmatpush1.msra.mxu0 0.0
        %1483 = vmatprep.subr.mxu0 0.0
        %1484 = vmatpush1.msra.mxu0 0.0
        %1485 = vmatprep.subr.mxu0 0.0
        %1486 = vmatpush1.msra.mxu0 0.0
        %1487 = vmatprep.subr.mxu0 0.0
        %1488 = vmatpush1.msra.mxu0 0.0
        %1489 = vmatprep.subr.mxu0 0.0
        %1490 = vmatpush1.msra.mxu0 0.0
        %1491 = vmatprep.subr.mxu0 0.0
        %1492 = vmatpush1.msra.mxu0 0.0
        %1493 = vmatprep.subr.mxu0 0.0
        %1494 = vmatpush1.msra.mxu0 0.0
        %1495 = vmatprep.subr.mxu0 0.0
        %1496 = vmatpush1.msra.mxu0 0.0
        %1497 = vmatprep.subr.mxu0 0.0
        %1498 = vmatpush1.msra.mxu0 0.0
        %1499 = vmatprep.subr.mxu0 0.0
        %1500 = vmatpush1.msra.mxu0 0.0
        %1501 = vmatprep.subr.mxu0 0.0
        %1502 = vmatpush1.msra.mxu0 0.0
        %1503 = vmatprep.subr.mxu0 0.0
        %1504 = vmatpush1.msra.mxu0 0.0
        %1505 = vmatprep.subr.mxu0 0.0
        %1506 = vmatpush1.msra.mxu0 0.0
        %1507 = vmatprep.subr.mxu0 0.0
        %1508 = vmatpush1.msra.mxu0 0.0
        %1509 = vmatprep.subr.mxu0 0.0
        %1510 = vmatpush1.msra.mxu0 0.0
        %1511 = vmatprep.subr.mxu0 0.0
        %1512 = vmatpush1.msra.mxu0 0.0
        %1513 = vmatprep.subr.mxu0 0.0
        %1514 = vmatpush1.msra.mxu0 0.0
        %1515 = vmatprep.subr.mxu0 0.0
        %1516 = vmatpush1.msra.mxu0 0.0
        %1517 = vmatprep.subr.mxu0 0.0
        %1518 = vmatpush1.msra.mxu0 0.0
        %1519 = vmatprep.subr.mxu0 0.0
        %1520 = vmatpush1.msra.mxu0 0.0
        %1521 = vmatprep.mubr.f32.mxu0 0.0
        %v1522 = vand.u32 %v525, 4294901760
        %1523 = vmatmul.mubr.f32.gmra.mrb[0].mxu0 %v1522
        %v1524 = vpop.f32.mrb[0].mxu0
        %v1525 = vadd.f32 %v1446, %v1524
        %v1526 = vpop.f32.mrb[0].mxu0
        %1527 = vmatprep.mubr.f32.mxu0 0.0
        %v1528 = vand.u32 %v528, 4294901760
        %1529 = vmatmul.mubr.f32.gmra.mrb[0].mxu0 %v1528
        %v1530 = vpop.f32.mrb[0].mxu0
        %v1531 = vadd.f32 %v1452, %v1530
        %v1532 = vpop.f32.mrb[0].mxu0
        %1533 = vdwg.mxu0
        %1534 = vmatprep.subr.mxu0 0.0
        %v1535 = vand.u32 %v521, 4294901760
        %1536 = vmatpush1.msra.mxu0 %v1535
        %1537 = vmatprep.subr.mxu0 0.0
        %v1538 = vand.u32 %v522, 4294901760
        %1539 = vmatpush1.msra.mxu0 %v1538
        %1540 = vmatprep.subr.mxu0 0.0
        %1541 = vmatpush1.msra.mxu0 0.0
        %1542 = vmatprep.subr.mxu0 0.0
        %1543 = vmatpush1.msra.mxu0 0.0
        %1544 = vmatprep.subr.mxu0 0.0
        %1545 = vmatpush1.msra.mxu0 0.0
        %1546 = vmatprep.subr.mxu0 0.0
        %1547 = vmatpush1.msra.mxu0 0.0
        %1548 = vmatprep.subr.mxu0 0.0
        %1549 = vmatpush1.msra.mxu0 0.0
        %1550 = vmatprep.subr.mxu0 0.0
        %1551 = vmatpush1.msra.mxu0 0.0
        %1552 = vmatprep.subr.mxu0 0.0
        %1553 = vmatpush1.msra.mxu0 0.0
        %1554 = vmatprep.subr.mxu0 0.0
        %1555 = vmatpush1.msra.mxu0 0.0
        %1556 = vmatprep.subr.mxu0 0.0
        %1557 = vmatpush1.msra.mxu0 0.0
        %1558 = vmatprep.subr.mxu0 0.0
        %1559 = vmatpush1.msra.mxu0 0.0
        %1560 = vmatprep.subr.mxu0 0.0
        %1561 = vmatpush1.msra.mxu0 0.0
        %1562 = vmatprep.subr.mxu0 0.0
        %1563 = vmatpush1.msra.mxu0 0.0
        %1564 = vmatprep.subr.mxu0 0.0
        %1565 = vmatpush1.msra.mxu0 0.0
        %1566 = vmatprep.subr.mxu0 0.0
        %1567 = vmatpush1.msra.mxu0 0.0
        %1568 = vmatprep.subr.mxu0 0.0
        %1569 = vmatpush1.msra.mxu0 0.0
        %1570 = vmatprep.subr.mxu0 0.0
        %1571 = vmatpush1.msra.mxu0 0.0
        %1572 = vmatprep.subr.mxu0 0.0
        %1573 = vmatpush1.msra.mxu0 0.0
        %1574 = vmatprep.subr.mxu0 0.0
        %1575 = vmatpush1.msra.mxu0 0.0
        %1576 = vmatprep.subr.mxu0 0.0
        %1577 = vmatpush1.msra.mxu0 0.0
        %1578 = vmatprep.subr.mxu0 0.0
        %1579 = vmatpush1.msra.mxu0 0.0
        %1580 = vmatprep.subr.mxu0 0.0
        %1581 = vmatpush1.msra.mxu0 0.0
        %1582 = vmatprep.subr.mxu0 0.0
        %1583 = vmatpush1.msra.mxu0 0.0
        %1584 = vmatprep.subr.mxu0 0.0
        %1585 = vmatpush1.msra.mxu0 0.0
        %1586 = vmatprep.subr.mxu0 0.0
        %1587 = vmatpush1.msra.mxu0 0.0
        %1588 = vmatprep.subr.mxu0 0.0
        %1589 = vmatpush1.msra.mxu0 0.0
        %1590 = vmatprep.subr.mxu0 0.0
        %1591 = vmatpush1.msra.mxu0 0.0
        %1592 = vmatprep.subr.mxu0 0.0
        %1593 = vmatpush1.msra.mxu0 0.0
        %1594 = vmatprep.subr.mxu0 0.0
        %1595 = vmatpush1.msra.mxu0 0.0
        %1596 = vmatprep.subr.mxu0 0.0
        %1597 = vmatpush1.msra.mxu0 0.0
        %1598 = vmatprep.subr.mxu0 0.0
        %1599 = vmatpush1.msra.mxu0 0.0
        %1600 = vmatprep.mubr.f32.mxu0 0.0
        %v1601 = vand.u32 %v525, 4294901760
        %v1602 = vsub.f32 %v525, %v1601
        %v1603 = vand.u32 %v1602, 4294901760
        %v1604 = vsub.f32 %v1602, %v1603
        %v1605 = vand.u32 %v1604, 4294901760
        %1606 = vmatmul.mubr.f32.gmra.mrb[0].mxu0 %v1605
        %v1607 = vpop.f32.mrb[0].mxu0
        %v1608 = vadd.f32 0.0, %v1607
        %v1609 = vpop.f32.mrb[0].mxu0
        %1610 = vmatprep.mubr.f32.mxu0 0.0
        %v1611 = vand.u32 %v528, 4294901760
        %v1612 = vsub.f32 %v528, %v1611
        %v1613 = vand.u32 %v1612, 4294901760
        %v1614 = vsub.f32 %v1612, %v1613
        %v1615 = vand.u32 %v1614, 4294901760
        %1616 = vmatmul.mubr.f32.gmra.mrb[0].mxu0 %v1615
        %v1617 = vpop.f32.mrb[0].mxu0
        %v1618 = vadd.f32 0.0, %v1617
        %v1619 = vpop.f32.mrb[0].mxu0
        %1620 = vdwg.mxu0
        %1621 = vmatprep.subr.mxu0 0.0
        %v1622 = vand.u32 %v521, 4294901760
        %v1623 = vsub.f32 %v521, %v1622
        %v1624 = vand.u32 %v1623, 4294901760
        %v1625 = vsub.f32 %v1623, %v1624
        %v1626 = vand.u32 %v1625, 4294901760
        %1627 = vmatpush1.msra.mxu0 %v1626
        %1628 = vmatprep.subr.mxu0 0.0
        %v1629 = vand.u32 %v522, 4294901760
        %v1630 = vsub.f32 %v522, %v1629
        %v1631 = vand.u32 %v1630, 4294901760
        %v1632 = vsub.f32 %v1630, %v1631
        %v1633 = vand.u32 %v1632, 4294901760
        %1634 = vmatpush1.msra.mxu0 %v1633
        %1635 = vmatprep.subr.mxu0 0.0
        %1636 = vmatpush1.msra.mxu0 0.0
        %1637 = vmatprep.subr.mxu0 0.0
        %1638 = vmatpush1.msra.mxu0 0.0
        %1639 = vmatprep.subr.mxu0 0.0
        %1640 = vmatpush1.msra.mxu0 0.0
        %1641 = vmatprep.subr.mxu0 0.0
        %1642 = vmatpush1.msra.mxu0 0.0
        %1643 = vmatprep.subr.mxu0 0.0
        %1644 = vmatpush1.msra.mxu0 0.0
        %1645 = vmatprep.subr.mxu0 0.0
        %1646 = vmatpush1.msra.mxu0 0.0
        %1647 = vmatprep.subr.mxu0 0.0
        %1648 = vmatpush1.msra.mxu0 0.0
        %1649 = vmatprep.subr.mxu0 0.0
        %1650 = vmatpush1.msra.mxu0 0.0
        %1651 = vmatprep.subr.mxu0 0.0
        %1652 = vmatpush1.msra.mxu0 0.0
        %1653 = vmatprep.subr.mxu0 0.0
        %1654 = vmatpush1.msra.mxu0 0.0
        %1655 = vmatprep.subr.mxu0 0.0
        %1656 = vmatpush1.msra.mxu0 0.0
        %1657 = vmatprep.subr.mxu0 0.0
        %1658 = vmatpush1.msra.mxu0 0.0
        %1659 = vmatprep.subr.mxu0 0.0
        %1660 = vmatpush1.msra.mxu0 0.0
        %1661 = vmatprep.subr.mxu0 0.0
        %1662 = vmatpush1.msra.mxu0 0.0
        %1663 = vmatprep.subr.mxu0 0.0
        %1664 = vmatpush1.msra.mxu0 0.0
        %1665 = vmatprep.subr.mxu0 0.0
        %1666 = vmatpush1.msra.mxu0 0.0
        %1667 = vmatprep.subr.mxu0 0.0
        %1668 = vmatpush1.msra.mxu0 0.0
        %1669 = vmatprep.subr.mxu0 0.0
        %1670 = vmatpush1.msra.mxu0 0.0
        %1671 = vmatprep.subr.mxu0 0.0
        %1672 = vmatpush1.msra.mxu0 0.0
        %1673 = vmatprep.subr.mxu0 0.0
        %1674 = vmatpush1.msra.mxu0 0.0
        %1675 = vmatprep.subr.mxu0 0.0
        %1676 = vmatpush1.msra.mxu0 0.0
        %1677 = vmatprep.subr.mxu0 0.0
        %1678 = vmatpush1.msra.mxu0 0.0
        %1679 = vmatprep.subr.mxu0 0.0
        %1680 = vmatpush1.msra.mxu0 0.0
        %1681 = vmatprep.subr.mxu0 0.0
        %1682 = vmatpush1.msra.mxu0 0.0
        %1683 = vmatprep.subr.mxu0 0.0
        %1684 = vmatpush1.msra.mxu0 0.0
        %1685 = vmatprep.subr.mxu0 0.0
        %1686 = vmatpush1.msra.mxu0 0.0
        %1687 = vmatprep.subr.mxu0 0.0
        %1688 = vmatpush1.msra.mxu0 0.0
        %1689 = vmatprep.subr.mxu0 0.0
        %1690 = vmatpush1.msra.mxu0 0.0
        %1691 = vmatprep.subr.mxu0 0.0
        %1692 = vmatpush1.msra.mxu0 0.0
        %1693 = vmatprep.subr.mxu0 0.0
        %1694 = vmatpush1.msra.mxu0 0.0
        %1695 = vmatprep.mubr.f32.mxu0 0.0
        %v1696 = vand.u32 %v525, 4294901760
        %1697 = vmatmul.mubr.f32.gmra.mrb[0].mxu0 %v1696
        %v1698 = vpop.f32.mrb[0].mxu0
        %v1699 = vadd.f32 %v1608, %v1698
        %v1700 = vpop.f32.mrb[0].mxu0
        %1701 = vmatprep.mubr.f32.mxu0 0.0
        %v1702 = vand.u32 %v528, 4294901760
        %1703 = vmatmul.mubr.f32.gmra.mrb[0].mxu0 %v1702
        %v1704 = vpop.f32.mrb[0].mxu0
        %v1705 = vadd.f32 %v1618, %v1704
        %v1706 = vpop.f32.mrb[0].mxu0
        %1707 = vdwg.mxu0
        %1708 = vmatprep.subr.mxu0 0.0
        %v1709 = vand.u32 %v521, 4294901760
        %v1710 = vsub.f32 %v521, %v1709
        %1711 = vmatpush1.msra.mxu0 %v1710
        %1712 = vmatprep.subr.mxu0 0.0
        %v1713 = vand.u32 %v522, 4294901760
        %v1714 = vsub.f32 %v522, %v1713
        %1715 = vmatpush1.msra.mxu0 %v1714
        %1716 = vmatprep.subr.mxu0 0.0
        %1717 = vmatpush1.msra.mxu0 0.0
        %1718 = vmatprep.subr.mxu0 0.0
        %1719 = vmatpush1.msra.mxu0 0.0
        %1720 = vmatprep.subr.mxu0 0.0
        %1721 = vmatpush1.msra.mxu0 0.0
        %1722 = vmatprep.subr.mxu0 0.0
        %1723 = vmatpush1.msra.mxu0 0.0
        %1724 = vmatprep.subr.mxu0 0.0
        %1725 = vmatpush1.msra.mxu0 0.0
        %1726 = vmatprep.subr.mxu0 0.0
        %1727 = vmatpush1.msra.mxu0 0.0
        %1728 = vmatprep.subr.mxu0 0.0
        %1729 = vmatpush1.msra.mxu0 0.0
        %1730 = vmatprep.subr.mxu0 0.0
        %1731 = vmatpush1.msra.mxu0 0.0
        %1732 = vmatprep.subr.mxu0 0.0
        %1733 = vmatpush1.msra.mxu0 0.0
        %1734 = vmatprep.subr.mxu0 0.0
        %1735 = vmatpush1.msra.mxu0 0.0
        %1736 = vmatprep.subr.mxu0 0.0
        %1737 = vmatpush1.msra.mxu0 0.0
        %1738 = vmatprep.subr.mxu0 0.0
        %1739 = vmatpush1.msra.mxu0 0.0
        %1740 = vmatprep.subr.mxu0 0.0
        %1741 = vmatpush1.msra.mxu0 0.0
        %1742 = vmatprep.subr.mxu0 0.0
        %1743 = vmatpush1.msra.mxu0 0.0
        %1744 = vmatprep.subr.mxu0 0.0
        %1745 = vmatpush1.msra.mxu0 0.0
        %1746 = vmatprep.subr.mxu0 0.0
        %1747 = vmatpush1.msra.mxu0 0.0
        %1748 = vmatprep.subr.mxu0 0.0
        %1749 = vmatpush1.msra.mxu0 0.0
        %1750 = vmatprep.subr.mxu0 0.0
        %1751 = vmatpush1.msra.mxu0 0.0
        %1752 = vmatprep.subr.mxu0 0.0
        %1753 = vmatpush1.msra.mxu0 0.0
        %1754 = vmatprep.subr.mxu0 0.0
        %1755 = vmatpush1.msra.mxu0 0.0
        %1756 = vmatprep.subr.mxu0 0.0
        %1757 = vmatpush1.msra.mxu0 0.0
        %1758 = vmatprep.subr.mxu0 0.0
        %1759 = vmatpush1.msra.mxu0 0.0
        %1760 = vmatprep.subr.mxu0 0.0
        %1761 = vmatpush1.msra.mxu0 0.0
        %1762 = vmatprep.subr.mxu0 0.0
        %1763 = vmatpush1.msra.mxu0 0.0
        %1764 = vmatprep.subr.mxu0 0.0
        %1765 = vmatpush1.msra.mxu0 0.0
        %1766 = vmatprep.subr.mxu0 0.0
        %1767 = vmatpush1.msra.mxu0 0.0
        %1768 = vmatprep.subr.mxu0 0.0
        %1769 = vmatpush1.msra.mxu0 0.0
        %1770 = vmatprep.subr.mxu0 0.0
        %1771 = vmatpush1.msra.mxu0 0.0
        %1772 = vmatprep.subr.mxu0 0.0
        %1773 = vmatpush1.msra.mxu0 0.0
        %1774 = vmatprep.subr.mxu0 0.0
        %1775 = vmatpush1.msra.mxu0 0.0
        %1776 = vmatprep.mubr.f32.mxu0 0.0
        %v1777 = vand.u32 %v525, 4294901760
        %v1778 = vsub.f32 %v525, %v1777
        %1779 = vmatmul.mubr.f32.gmra.mrb[0].mxu0 %v1778
        %v1780 = vpop.f32.mrb[0].mxu0
        %v1781 = vadd.f32 %v1699, %v1780
        %v1782 = vpop.f32.mrb[0].mxu0
        %1783 = vmatprep.mubr.f32.mxu0 0.0
        %v1784 = vand.u32 %v528, 4294901760
        %v1785 = vsub.f32 %v528, %v1784
        %1786 = vmatmul.mubr.f32.gmra.mrb[0].mxu0 %v1785
        %v1787 = vpop.f32.mrb[0].mxu0
        %v1788 = vadd.f32 %v1705, %v1787
        %v1789 = vpop.f32.mrb[0].mxu0
        %1790 = vdwg.mxu0
        %1791 = vmatprep.subr.mxu0 0.0
        %v1792 = vand.u32 %v521, 4294901760
        %1793 = vmatpush1.msra.mxu0 %v1792
        %1794 = vmatprep.subr.mxu0 0.0
        %v1795 = vand.u32 %v522, 4294901760
        %1796 = vmatpush1.msra.mxu0 %v1795
        %1797 = vmatprep.subr.mxu0 0.0
        %1798 = vmatpush1.msra.mxu0 0.0
        %1799 = vmatprep.subr.mxu0 0.0
        %1800 = vmatpush1.msra.mxu0 0.0
        %1801 = vmatprep.subr.mxu0 0.0
        %1802 = vmatpush1.msra.mxu0 0.0
        %1803 = vmatprep.subr.mxu0 0.0
        %1804 = vmatpush1.msra.mxu0 0.0
        %1805 = vmatprep.subr.mxu0 0.0
        %1806 = vmatpush1.msra.mxu0 0.0
        %1807 = vmatprep.subr.mxu0 0.0
        %1808 = vmatpush1.msra.mxu0 0.0
        %1809 = vmatprep.subr.mxu0 0.0
        %1810 = vmatpush1.msra.mxu0 0.0
        %1811 = vmatprep.subr.mxu0 0.0
        %1812 = vmatpush1.msra.mxu0 0.0
        %1813 = vmatprep.subr.mxu0 0.0
        %1814 = vmatpush1.msra.mxu0 0.0
        %1815 = vmatprep.subr.mxu0 0.0
        %1816 = vmatpush1.msra.mxu0 0.0
        %1817 = vmatprep.subr.mxu0 0.0
        %1818 = vmatpush1.msra.mxu0 0.0
        %1819 = vmatprep.subr.mxu0 0.0
        %1820 = vmatpush1.msra.mxu0 0.0
        %1821 = vmatprep.subr.mxu0 0.0
        %1822 = vmatpush1.msra.mxu0 0.0
        %1823 = vmatprep.subr.mxu0 0.0
        %1824 = vmatpush1.msra.mxu0 0.0
        %1825 = vmatprep.subr.mxu0 0.0
        %1826 = vmatpush1.msra.mxu0 0.0
        %1827 = vmatprep.subr.mxu0 0.0
        %1828 = vmatpush1.msra.mxu0 0.0
        %1829 = vmatprep.subr.mxu0 0.0
        %1830 = vmatpush1.msra.mxu0 0.0
        %1831 = vmatprep.subr.mxu0 0.0
        %1832 = vmatpush1.msra.mxu0 0.0
        %1833 = vmatprep.subr.mxu0 0.0
        %1834 = vmatpush1.msra.mxu0 0.0
        %1835 = vmatprep.subr.mxu0 0.0
        %1836 = vmatpush1.msra.mxu0 0.0
        %1837 = vmatprep.subr.mxu0 0.0
        %1838 = vmatpush1.msra.mxu0 0.0
        %1839 = vmatprep.subr.mxu0 0.0
        %1840 = vmatpush1.msra.mxu0 0.0
        %1841 = vmatprep.subr.mxu0 0.0
        %1842 = vmatpush1.msra.mxu0 0.0
        %1843 = vmatprep.subr.mxu0 0.0
        %1844 = vmatpush1.msra.mxu0 0.0
        %1845 = vmatprep.subr.mxu0 0.0
        %1846 = vmatpush1.msra.mxu0 0.0
        %1847 = vmatprep.subr.mxu0 0.0
        %1848 = vmatpush1.msra.mxu0 0.0
        %1849 = vmatprep.subr.mxu0 0.0
        %1850 = vmatpush1.msra.mxu0 0.0
        %1851 = vmatprep.subr.mxu0 0.0
        %1852 = vmatpush1.msra.mxu0 0.0
        %1853 = vmatprep.subr.mxu0 0.0
        %1854 = vmatpush1.msra.mxu0 0.0
        %1855 = vmatprep.subr.mxu0 0.0
        %1856 = vmatpush1.msra.mxu0 0.0
        %1857 = vmatprep.mubr.f32.mxu0 0.0
        %v1858 = vand.u32 %v525, 4294901760
        %v1859 = vsub.f32 %v525, %v1858
        %v1860 = vand.u32 %v1859, 4294901760
        %1861 = vmatmul.mubr.f32.gmra.mrb[0].mxu0 %v1860
        %v1862 = vpop.f32.mrb[0].mxu0
        %v1863 = vadd.f32 %v1781, %v1862
        %v1864 = vpop.f32.mrb[0].mxu0
        %1865 = vmatprep.mubr.f32.mxu0 0.0
        %v1866 = vand.u32 %v528, 4294901760
        %v1867 = vsub.f32 %v528, %v1866
        %v1868 = vand.u32 %v1867, 4294901760
        %1869 = vmatmul.mubr.f32.gmra.mrb[0].mxu0 %v1868
        %v1870 = vpop.f32.mrb[0].mxu0
        %v1871 = vadd.f32 %v1788, %v1870
        %v1872 = vpop.f32.mrb[0].mxu0
        %1873 = vdwg.mxu0
        %1874 = vmatprep.subr.mxu0 0.0
        %v1875 = vand.u32 %v521, 4294901760
        %v1876 = vsub.f32 %v521, %v1875
        %v1877 = vand.u32 %v1876, 4294901760
        %1878 = vmatpush1.msra.mxu0 %v1877
        %1879 = vmatprep.subr.mxu0 0.0
        %v1880 = vand.u32 %v522, 4294901760
        %v1881 = vsub.f32 %v522, %v1880
        %v1882 = vand.u32 %v1881, 4294901760
        %1883 = vmatpush1.msra.mxu0 %v1882
        %1884 = vmatprep.subr.mxu0 0.0
        %1885 = vmatpush1.msra.mxu0 0.0
        %1886 = vmatprep.subr.mxu0 0.0
        %1887 = vmatpush1.msra.mxu0 0.0
        %1888 = vmatprep.subr.mxu0 0.0
        %1889 = vmatpush1.msra.mxu0 0.0
        %1890 = vmatprep.subr.mxu0 0.0
        %1891 = vmatpush1.msra.mxu0 0.0
        %1892 = vmatprep.subr.mxu0 0.0
        %1893 = vmatpush1.msra.mxu0 0.0
        %1894 = vmatprep.subr.mxu0 0.0
        %1895 = vmatpush1.msra.mxu0 0.0
        %1896 = vmatprep.subr.mxu0 0.0
        %1897 = vmatpush1.msra.mxu0 0.0
        %1898 = vmatprep.subr.mxu0 0.0
        %1899 = vmatpush1.msra.mxu0 0.0
        %1900 = vmatprep.subr.mxu0 0.0
        %1901 = vmatpush1.msra.mxu0 0.0
        %1902 = vmatprep.subr.mxu0 0.0
        %1903 = vmatpush1.msra.mxu0 0.0
        %1904 = vmatprep.subr.mxu0 0.0
        %1905 = vmatpush1.msra.mxu0 0.0
        %1906 = vmatprep.subr.mxu0 0.0
        %1907 = vmatpush1.msra.mxu0 0.0
        %1908 = vmatprep.subr.mxu0 0.0
        %1909 = vmatpush1.msra.mxu0 0.0
        %1910 = vmatprep.subr.mxu0 0.0
        %1911 = vmatpush1.msra.mxu0 0.0
        %1912 = vmatprep.subr.mxu0 0.0
        %1913 = vmatpush1.msra.mxu0 0.0
        %1914 = vmatprep.subr.mxu0 0.0
        %1915 = vmatpush1.msra.mxu0 0.0
        %1916 = vmatprep.subr.mxu0 0.0
        %1917 = vmatpush1.msra.mxu0 0.0
        %1918 = vmatprep.subr.mxu0 0.0
        %1919 = vmatpush1.msra.mxu0 0.0
        %1920 = vmatprep.subr.mxu0 0.0
        %1921 = vmatpush1.msra.mxu0 0.0
        %1922 = vmatprep.subr.mxu0 0.0
        %1923 = vmatpush1.msra.mxu0 0.0
        %1924 = vmatprep.subr.mxu0 0.0
        %1925 = vmatpush1.msra.mxu0 0.0
        %1926 = vmatprep.subr.mxu0 0.0
        %1927 = vmatpush1.msra.mxu0 0.0
        %1928 = vmatprep.subr.mxu0 0.0
        %1929 = vmatpush1.msra.mxu0 0.0
        %1930 = vmatprep.subr.mxu0 0.0
        %1931 = vmatpush1.msra.mxu0 0.0
        %1932 = vmatprep.subr.mxu0 0.0
        %1933 = vmatpush1.msra.mxu0 0.0
        %1934 = vmatprep.subr.mxu0 0.0
        %1935 = vmatpush1.msra.mxu0 0.0
        %1936 = vmatprep.subr.mxu0 0.0
        %1937 = vmatpush1.msra.mxu0 0.0
        %1938 = vmatprep.subr.mxu0 0.0
        %1939 = vmatpush1.msra.mxu0 0.0
        %1940 = vmatprep.subr.mxu0 0.0
        %1941 = vmatpush1.msra.mxu0 0.0
        %1942 = vmatprep.subr.mxu0 0.0
        %1943 = vmatpush1.msra.mxu0 0.0
        %1944 = vmatprep.mubr.f32.mxu0 0.0
        %v1945 = vand.u32 %v525, 4294901760
        %1946 = vmatmul.mubr.f32.gmra.mrb[0].mxu0 %v1945
        %v1947 = vpop.f32.mrb[0].mxu0
        %v1948 = vadd.f32 %v1863, %v1947
        %v1949 = vpop.f32.mrb[0].mxu0
        %1950 = vmatprep.mubr.f32.mxu0 0.0
        %v1951 = vand.u32 %v528, 4294901760
        %1952 = vmatmul.mubr.f32.gmra.mrb[0].mxu0 %v1951
        %v1953 = vpop.f32.mrb[0].mxu0
        %v1954 = vadd.f32 %v1871, %v1953
        %v1955 = vpop.f32.mrb[0].mxu0
        %1956 = vdwg.mxu0
        %1957 = vmatprep.subr.mxu0 0.0
        %v1958 = vand.u32 %v521, 4294901760
        %1959 = vmatpush1.msra.mxu0 %v1958
        %1960 = vmatprep.subr.mxu0 0.0
        %v1961 = vand.u32 %v522, 4294901760
        %1962 = vmatpush1.msra.mxu0 %v1961
        %1963 = vmatprep.subr.mxu0 0.0
        %1964 = vmatpush1.msra.mxu0 0.0
        %1965 = vmatprep.subr.mxu0 0.0
        %1966 = vmatpush1.msra.mxu0 0.0
        %1967 = vmatprep.subr.mxu0 0.0
        %1968 = vmatpush1.msra.mxu0 0.0
        %1969 = vmatprep.subr.mxu0 0.0
        %1970 = vmatpush1.msra.mxu0 0.0
        %1971 = vmatprep.subr.mxu0 0.0
        %1972 = vmatpush1.msra.mxu0 0.0
        %1973 = vmatprep.subr.mxu0 0.0
        %1974 = vmatpush1.msra.mxu0 0.0
        %1975 = vmatprep.subr.mxu0 0.0
        %1976 = vmatpush1.msra.mxu0 0.0
        %1977 = vmatprep.subr.mxu0 0.0
        %1978 = vmatpush1.msra.mxu0 0.0
        %1979 = vmatprep.subr.mxu0 0.0
        %1980 = vmatpush1.msra.mxu0 0.0
        %1981 = vmatprep.subr.mxu0 0.0
        %1982 = vmatpush1.msra.mxu0 0.0
        %1983 = vmatprep.subr.mxu0 0.0
        %1984 = vmatpush1.msra.mxu0 0.0
        %1985 = vmatprep.subr.mxu0 0.0
        %1986 = vmatpush1.msra.mxu0 0.0
        %1987 = vmatprep.subr.mxu0 0.0
        %1988 = vmatpush1.msra.mxu0 0.0
        %1989 = vmatprep.subr.mxu0 0.0
        %1990 = vmatpush1.msra.mxu0 0.0
        %1991 = vmatprep.subr.mxu0 0.0
        %1992 = vmatpush1.msra.mxu0 0.0
        %1993 = vmatprep.subr.mxu0 0.0
        %1994 = vmatpush1.msra.mxu0 0.0
        %1995 = vmatprep.subr.mxu0 0.0
        %1996 = vmatpush1.msra.mxu0 0.0
        %1997 = vmatprep.subr.mxu0 0.0
        %1998 = vmatpush1.msra.mxu0 0.0
        %1999 = vmatprep.subr.mxu0 0.0
        %2000 = vmatpush1.msra.mxu0 0.0
        %2001 = vmatprep.subr.mxu0 0.0
        %2002 = vmatpush1.msra.mxu0 0.0
        %2003 = vmatprep.subr.mxu0 0.0
        %2004 = vmatpush1.msra.mxu0 0.0
        %2005 = vmatprep.subr.mxu0 0.0
        %2006 = vmatpush1.msra.mxu0 0.0
        %2007 = vmatprep.subr.mxu0 0.0
        %2008 = vmatpush1.msra.mxu0 0.0
        %2009 = vmatprep.subr.mxu0 0.0
        %2010 = vmatpush1.msra.mxu0 0.0
        %2011 = vmatprep.subr.mxu0 0.0
        %2012 = vmatpush1.msra.mxu0 0.0
        %2013 = vmatprep.subr.mxu0 0.0
        %2014 = vmatpush1.msra.mxu0 0.0
        %2015 = vmatprep.subr.mxu0 0.0
        %2016 = vmatpush1.msra.mxu0 0.0
        %2017 = vmatprep.subr.mxu0 0.0
        %2018 = vmatpush1.msra.mxu0 0.0
        %2019 = vmatprep.subr.mxu0 0.0
        %2020 = vmatpush1.msra.mxu0 0.0
        %2021 = vmatprep.subr.mxu0 0.0
        %2022 = vmatpush1.msra.mxu0 0.0
        %2023 = vmatprep.mubr.f32.mxu0 0.0
        %v2024 = vand.u32 %v525, 4294901760
        %2025 = vmatmul.mubr.f32.gmra.mrb[0].mxu0 %v2024
        %v2026 = vpop.f32.mrb[0].mxu0
        %v2027 = vadd.f32 %v1948, %v2026
        %v2028 = vpop.f32.mrb[0].mxu0
        %2029 = vmatprep.mubr.f32.mxu0 0.0
        %v2030 = vand.u32 %v528, 4294901760
        %2031 = vmatmul.mubr.f32.gmra.mrb[0].mxu0 %v2030
        %v2032 = vpop.f32.mrb[0].mxu0
        %v2033 = vadd.f32 %v1954, %v2032
        %v2034 = vpop.f32.mrb[0].mxu0
        %2035 = vdwg.mxu0
        %v2037 = vsel %vm523, %v1023, 0
        %v2040 = vsel %vm523, %v1029, 0
        %v2043 = vsel %vm523, %v1525, 0
        %v2046 = vsel %vm523, %v1531, 0
        %v2049 = vsel %vm523, %v2027, 0
        %v2052 = vsel %vm523, %v2033, 0
        %2054 = vmatprep.subr.mxu0 0.0
        %v2055 = vand.u32 %v449, 4294901760
        %2056 = vmatpush1.msra.mxu0 %v2055
        %2057 = vmatprep.subr.mxu0 0.0
        %v2058 = vand.u32 %v450, 4294901760
        %2059 = vmatpush1.msra.mxu0 %v2058
        %2060 = vmatprep.subr.mxu0 0.0
        %2061 = vmatpush1.msra.mxu0 0.0
        %2062 = vmatprep.subr.mxu0 0.0
        %2063 = vmatpush1.msra.mxu0 0.0
        %2064 = vmatprep.subr.mxu0 0.0
        %2065 = vmatpush1.msra.mxu0 0.0
        %2066 = vmatprep.subr.mxu0 0.0
        %2067 = vmatpush1.msra.mxu0 0.0
        %2068 = vmatprep.subr.mxu0 0.0
        %2069 = vmatpush1.msra.mxu0 0.0
        %2070 = vmatprep.subr.mxu0 0.0
        %2071 = vmatpush1.msra.mxu0 0.0
        %2072 = vmatprep.subr.mxu0 0.0
        %2073 = vmatpush1.msra.mxu0 0.0
        %2074 = vmatprep.subr.mxu0 0.0
        %2075 = vmatpush1.msra.mxu0 0.0
        %2076 = vmatprep.subr.mxu0 0.0
        %2077 = vmatpush1.msra.mxu0 0.0
        %2078 = vmatprep.subr.mxu0 0.0
        %2079 = vmatpush1.msra.mxu0 0.0
        %2080 = vmatprep.subr.mxu0 0.0
        %2081 = vmatpush1.msra.mxu0 0.0
        %2082 = vmatprep.subr.mxu0 0.0
        %2083 = vmatpush1.msra.mxu0 0.0
        %2084 = vmatprep.subr.mxu0 0.0
        %2085 = vmatpush1.msra.mxu0 0.0
        %2086 = vmatprep.subr.mxu0 0.0
        %2087 = vmatpush1.msra.mxu0 0.0
        %2088 = vmatprep.subr.mxu0 0.0
        %2089 = vmatpush1.msra.mxu0 0.0
        %2090 = vmatprep.subr.mxu0 0.0
        %2091 = vmatpush1.msra.mxu0 0.0
        %2092 = vmatprep.subr.mxu0 0.0
        %2093 = vmatpush1.msra.mxu0 0.0
        %2094 = vmatprep.subr.mxu0 0.0
        %2095 = vmatpush1.msra.mxu0 0.0
        %2096 = vmatprep.subr.mxu0 0.0
        %2097 = vmatpush1.msra.mxu0 0.0
        %2098 = vmatprep.subr.mxu0 0.0
        %2099 = vmatpush1.msra.mxu0 0.0
        %2100 = vmatprep.subr.mxu0 0.0
        %2101 = vmatpush1.msra.mxu0 0.0
        %2102 = vmatprep.subr.mxu0 0.0
        %2103 = vmatpush1.msra.mxu0 0.0
        %2104 = vmatprep.subr.mxu0 0.0
        %2105 = vmatpush1.msra.mxu0 0.0
        %2106 = vmatprep.subr.mxu0 0.0
        %2107 = vmatpush1.msra.mxu0 0.0
        %2108 = vmatprep.subr.mxu0 0.0
        %2109 = vmatpush1.msra.mxu0 0.0
        %2110 = vmatprep.subr.mxu0 0.0
        %2111 = vmatpush1.msra.mxu0 0.0
        %2112 = vmatprep.subr.mxu0 0.0
        %2113 = vmatpush1.msra.mxu0 0.0
        %2114 = vmatprep.subr.mxu0 0.0
        %2115 = vmatpush1.msra.mxu0 0.0
        %2116 = vmatprep.subr.mxu0 0.0
        %2117 = vmatpush1.msra.mxu0 0.0
        %2118 = vmatprep.subr.mxu0 0.0
        %2119 = vmatpush1.msra.mxu0 0.0
        %2120 = vmatprep.mubr.f32.mxu0 0.0
        %v2121 = vand.u32 %v2037, 4294901760
        %v2122 = vsub.f32 %v2037, %v2121
        %v2123 = vand.u32 %v2122, 4294901760
        %v2124 = vsub.f32 %v2122, %v2123
        %v2125 = vand.u32 %v2124, 4294901760
        %2126 = vmatmul.mubr.f32.gmra.mrb[0].mxu0 %v2125
        %v2127 = vpop.f32.mrb[0].mxu0
        %v2128 = vadd.f32 0.0, %v2127
        %v2129 = vpop.f32.mrb[0].mxu0
        %2130 = vmatprep.mubr.f32.mxu0 0.0
        %v2131 = vand.u32 %v2040, 4294901760
        %v2132 = vsub.f32 %v2040, %v2131
        %v2133 = vand.u32 %v2132, 4294901760
        %v2134 = vsub.f32 %v2132, %v2133
        %v2135 = vand.u32 %v2134, 4294901760
        %2136 = vmatmul.mubr.f32.gmra.mrb[0].mxu0 %v2135
        %v2137 = vpop.f32.mrb[0].mxu0
        %v2138 = vadd.f32 0.0, %v2137
        %v2139 = vpop.f32.mrb[0].mxu0
        %2140 = vmatprep.mubr.f32.mxu0 0.0
        %v2141 = vand.u32 %v2043, 4294901760
        %v2142 = vsub.f32 %v2043, %v2141
        %v2143 = vand.u32 %v2142, 4294901760
        %v2144 = vsub.f32 %v2142, %v2143
        %v2145 = vand.u32 %v2144, 4294901760
        %2146 = vmatmul.mubr.f32.gmra.mrb[0].mxu0 %v2145
        %v2147 = vpop.f32.mrb[0].mxu0
        %v2148 = vadd.f32 0.0, %v2147
        %v2149 = vpop.f32.mrb[0].mxu0
        %2150 = vmatprep.mubr.f32.mxu0 0.0
        %v2151 = vand.u32 %v2046, 4294901760
        %v2152 = vsub.f32 %v2046, %v2151
        %v2153 = vand.u32 %v2152, 4294901760
        %v2154 = vsub.f32 %v2152, %v2153
        %v2155 = vand.u32 %v2154, 4294901760
        %2156 = vmatmul.mubr.f32.gmra.mrb[0].mxu0 %v2155
        %v2157 = vpop.f32.mrb[0].mxu0
        %v2158 = vadd.f32 0.0, %v2157
        %v2159 = vpop.f32.mrb[0].mxu0
        %2160 = vmatprep.mubr.f32.mxu0 0.0
        %v2161 = vand.u32 %v2049, 4294901760
        %v2162 = vsub.f32 %v2049, %v2161
        %v2163 = vand.u32 %v2162, 4294901760
        %v2164 = vsub.f32 %v2162, %v2163
        %v2165 = vand.u32 %v2164, 4294901760
        %2166 = vmatmul.mubr.f32.gmra.mrb[0].mxu0 %v2165
        %v2167 = vpop.f32.mrb[0].mxu0
        %v2168 = vadd.f32 0.0, %v2167
        %v2169 = vpop.f32.mrb[0].mxu0
        %2170 = vmatprep.mubr.f32.mxu0 0.0
        %v2171 = vand.u32 %v2052, 4294901760
        %v2172 = vsub.f32 %v2052, %v2171
        %v2173 = vand.u32 %v2172, 4294901760
        %v2174 = vsub.f32 %v2172, %v2173
        %v2175 = vand.u32 %v2174, 4294901760
        %2176 = vmatmul.mubr.f32.gmra.mrb[0].mxu0 %v2175
        %v2177 = vpop.f32.mrb[0].mxu0
        %v2178 = vadd.f32 0.0, %v2177
        %v2179 = vpop.f32.mrb[0].mxu0
        %2180 = vdwg.mxu0
        %2181 = vmatprep.subr.mxu0 0.0
        %v2182 = vand.u32 %v449, 4294901760
        %v2183 = vsub.f32 %v449, %v2182
        %v2184 = vand.u32 %v2183, 4294901760
        %v2185 = vsub.f32 %v2183, %v2184
        %v2186 = vand.u32 %v2185, 4294901760
        %2187 = vmatpush1.msra.mxu0 %v2186
        %2188 = vmatprep.subr.mxu0 0.0
        %v2189 = vand.u32 %v450, 4294901760
        %v2190 = vsub.f32 %v450, %v2189
        %v2191 = vand.u32 %v2190, 4294901760
        %v2192 = vsub.f32 %v2190, %v2191
        %v2193 = vand.u32 %v2192, 4294901760
        %2194 = vmatpush1.msra.mxu0 %v2193
        %2195 = vmatprep.subr.mxu0 0.0
        %2196 = vmatpush1.msra.mxu0 0.0
        %2197 = vmatprep.subr.mxu0 0.0
        %2198 = vmatpush1.msra.mxu0 0.0
        %2199 = vmatprep.subr.mxu0 0.0
        %2200 = vmatpush1.msra.mxu0 0.0
        %2201 = vmatprep.subr.mxu0 0.0
        %2202 = vmatpush1.msra.mxu0 0.0
        %2203 = vmatprep.subr.mxu0 0.0
        %2204 = vmatpush1.msra.mxu0 0.0
        %2205 = vmatprep.subr.mxu0 0.0
        %2206 = vmatpush1.msra.mxu0 0.0
        %2207 = vmatprep.subr.mxu0 0.0
        %2208 = vmatpush1.msra.mxu0 0.0
        %2209 = vmatprep.subr.mxu0 0.0
        %2210 = vmatpush1.msra.mxu0 0.0
        %2211 = vmatprep.subr.mxu0 0.0
        %2212 = vmatpush1.msra.mxu0 0.0
        %2213 = vmatprep.subr.mxu0 0.0
        %2214 = vmatpush1.msra.mxu0 0.0
        %2215 = vmatprep.subr.mxu0 0.0
        %2216 = vmatpush1.msra.mxu0 0.0
        %2217 = vmatprep.subr.mxu0 0.0
        %2218 = vmatpush1.msra.mxu0 0.0
        %2219 = vmatprep.subr.mxu0 0.0
        %2220 = vmatpush1.msra.mxu0 0.0
        %2221 = vmatprep.subr.mxu0 0.0
        %2222 = vmatpush1.msra.mxu0 0.0
        %2223 = vmatprep.subr.mxu0 0.0
        %2224 = vmatpush1.msra.mxu0 0.0
        %2225 = vmatprep.subr.mxu0 0.0
        %2226 = vmatpush1.msra.mxu0 0.0
        %2227 = vmatprep.subr.mxu0 0.0
        %2228 = vmatpush1.msra.mxu0 0.0
        %2229 = vmatprep.subr.mxu0 0.0
        %2230 = vmatpush1.msra.mxu0 0.0
        %2231 = vmatprep.subr.mxu0 0.0
        %2232 = vmatpush1.msra.mxu0 0.0
        %2233 = vmatprep.subr.mxu0 0.0
        %2234 = vmatpush1.msra.mxu0 0.0
        %2235 = vmatprep.subr.mxu0 0.0
        %2236 = vmatpush1.msra.mxu0 0.0
        %2237 = vmatprep.subr.mxu0 0.0
        %2238 = vmatpush1.msra.mxu0 0.0
        %2239 = vmatprep.subr.mxu0 0.0
        %2240 = vmatpush1.msra.mxu0 0.0
        %2241 = vmatprep.subr.mxu0 0.0
        %2242 = vmatpush1.msra.mxu0 0.0
        %2243 = vmatprep.subr.mxu0 0.0
        %2244 = vmatpush1.msra.mxu0 0.0
        %2245 = vmatprep.subr.mxu0 0.0
        %2246 = vmatpush1.msra.mxu0 0.0
        %2247 = vmatprep.subr.mxu0 0.0
        %2248 = vmatpush1.msra.mxu0 0.0
        %2249 = vmatprep.subr.mxu0 0.0
        %2250 = vmatpush1.msra.mxu0 0.0
        %2251 = vmatprep.subr.mxu0 0.0
        %2252 = vmatpush1.msra.mxu0 0.0
        %2253 = vmatprep.subr.mxu0 0.0
        %2254 = vmatpush1.msra.mxu0 0.0
        %2255 = vmatprep.mubr.f32.mxu0 0.0
        %v2256 = vand.u32 %v2037, 4294901760
        %2257 = vmatmul.mubr.f32.gmra.mrb[0].mxu0 %v2256
        %v2258 = vpop.f32.mrb[0].mxu0
        %v2259 = vadd.f32 %v2128, %v2258
        %v2260 = vpop.f32.mrb[0].mxu0
        %2261 = vmatprep.mubr.f32.mxu0 0.0
        %v2262 = vand.u32 %v2040, 4294901760
        %2263 = vmatmul.mubr.f32.gmra.mrb[0].mxu0 %v2262
        %v2264 = vpop.f32.mrb[0].mxu0
        %v2265 = vadd.f32 %v2138, %v2264
        %v2266 = vpop.f32.mrb[0].mxu0
        %2267 = vmatprep.mubr.f32.mxu0 0.0
        %v2268 = vand.u32 %v2043, 4294901760
        %2269 = vmatmul.mubr.f32.gmra.mrb[0].mxu0 %v2268
        %v2270 = vpop.f32.mrb[0].mxu0
        %v2271 = vadd.f32 %v2148, %v2270
        %v2272 = vpop.f32.mrb[0].mxu0
        %2273 = vmatprep.mubr.f32.mxu0 0.0
        %v2274 = vand.u32 %v2046, 4294901760
        %2275 = vmatmul.mubr.f32.gmra.mrb[0].mxu0 %v2274
        %v2276 = vpop.f32.mrb[0].mxu0
        %v2277 = vadd.f32 %v2158, %v2276
        %v2278 = vpop.f32.mrb[0].mxu0
        %2279 = vmatprep.mubr.f32.mxu0 0.0
        %v2280 = vand.u32 %v2049, 4294901760
        %2281 = vmatmul.mubr.f32.gmra.mrb[0].mxu0 %v2280
        %v2282 = vpop.f32.mrb[0].mxu0
        %v2283 = vadd.f32 %v2168, %v2282
        %v2284 = vpop.f32.mrb[0].mxu0
        %2285 = vmatprep.mubr.f32.mxu0 0.0
        %v2286 = vand.u32 %v2052, 4294901760
        %2287 = vmatmul.mubr.f32.gmra.mrb[0].mxu0 %v2286
        %v2288 = vpop.f32.mrb[0].mxu0
        %v2289 = vadd.f32 %v2178, %v2288
        %v2290 = vpop.f32.mrb[0].mxu0
        %2291 = vdwg.mxu0
        %2292 = vmatprep.subr.mxu0 0.0
        %v2293 = vand.u32 %v449, 4294901760
        %v2294 = vsub.f32 %v449, %v2293
        %2295 = vmatpush1.msra.mxu0 %v2294
        %2296 = vmatprep.subr.mxu0 0.0
        %v2297 = vand.u32 %v450, 4294901760
        %v2298 = vsub.f32 %v450, %v2297
        %2299 = vmatpush1.msra.mxu0 %v2298
        %2300 = vmatprep.subr.mxu0 0.0
        %2301 = vmatpush1.msra.mxu0 0.0
        %2302 = vmatprep.subr.mxu0 0.0
        %2303 = vmatpush1.msra.mxu0 0.0
        %2304 = vmatprep.subr.mxu0 0.0
        %2305 = vmatpush1.msra.mxu0 0.0
        %2306 = vmatprep.subr.mxu0 0.0
        %2307 = vmatpush1.msra.mxu0 0.0
        %2308 = vmatprep.subr.mxu0 0.0
        %2309 = vmatpush1.msra.mxu0 0.0
        %2310 = vmatprep.subr.mxu0 0.0
        %2311 = vmatpush1.msra.mxu0 0.0
        %2312 = vmatprep.subr.mxu0 0.0
        %2313 = vmatpush1.msra.mxu0 0.0
        %2314 = vmatprep.subr.mxu0 0.0
        %2315 = vmatpush1.msra.mxu0 0.0
        %2316 = vmatprep.subr.mxu0 0.0
        %2317 = vmatpush1.msra.mxu0 0.0
        %2318 = vmatprep.subr.mxu0 0.0
        %2319 = vmatpush1.msra.mxu0 0.0
        %2320 = vmatprep.subr.mxu0 0.0
        %2321 = vmatpush1.msra.mxu0 0.0
        %2322 = vmatprep.subr.mxu0 0.0
        %2323 = vmatpush1.msra.mxu0 0.0
        %2324 = vmatprep.subr.mxu0 0.0
        %2325 = vmatpush1.msra.mxu0 0.0
        %2326 = vmatprep.subr.mxu0 0.0
        %2327 = vmatpush1.msra.mxu0 0.0
        %2328 = vmatprep.subr.mxu0 0.0
        %2329 = vmatpush1.msra.mxu0 0.0
        %2330 = vmatprep.subr.mxu0 0.0
        %2331 = vmatpush1.msra.mxu0 0.0
        %2332 = vmatprep.subr.mxu0 0.0
        %2333 = vmatpush1.msra.mxu0 0.0
        %2334 = vmatprep.subr.mxu0 0.0
        %2335 = vmatpush1.msra.mxu0 0.0
        %2336 = vmatprep.subr.mxu0 0.0
        %2337 = vmatpush1.msra.mxu0 0.0
        %2338 = vmatprep.subr.mxu0 0.0
        %2339 = vmatpush1.msra.mxu0 0.0
        %2340 = vmatprep.subr.mxu0 0.0
        %2341 = vmatpush1.msra.mxu0 0.0
        %2342 = vmatprep.subr.mxu0 0.0
        %2343 = vmatpush1.msra.mxu0 0.0
        %2344 = vmatprep.subr.mxu0 0.0
        %2345 = vmatpush1.msra.mxu0 0.0
        %2346 = vmatprep.subr.mxu0 0.0
        %2347 = vmatpush1.msra.mxu0 0.0
        %2348 = vmatprep.subr.mxu0 0.0
        %2349 = vmatpush1.msra.mxu0 0.0
        %2350 = vmatprep.subr.mxu0 0.0
        %2351 = vmatpush1.msra.mxu0 0.0
        %2352 = vmatprep.subr.mxu0 0.0
        %2353 = vmatpush1.msra.mxu0 0.0
        %2354 = vmatprep.subr.mxu0 0.0
        %2355 = vmatpush1.msra.mxu0 0.0
        %2356 = vmatprep.subr.mxu0 0.0
        %2357 = vmatpush1.msra.mxu0 0.0
        %2358 = vmatprep.subr.mxu0 0.0
        %2359 = vmatpush1.msra.mxu0 0.0
        %2360 = vmatprep.mubr.f32.mxu0 0.0
        %v2361 = vand.u32 %v2037, 4294901760
        %v2362 = vsub.f32 %v2037, %v2361
        %2363 = vmatmul.mubr.f32.gmra.mrb[0].mxu0 %v2362
        %v2364 = vpop.f32.mrb[0].mxu0
        %v2365 = vadd.f32 %v2259, %v2364
        %v2366 = vpop.f32.mrb[0].mxu0
        %2367 = vmatprep.mubr.f32.mxu0 0.0
        %v2368 = vand.u32 %v2040, 4294901760
        %v2369 = vsub.f32 %v2040, %v2368
        %2370 = vmatmul.mubr.f32.gmra.mrb[0].mxu0 %v2369
        %v2371 = vpop.f32.mrb[0].mxu0
        %v2372 = vadd.f32 %v2265, %v2371
        %v2373 = vpop.f32.mrb[0].mxu0
        %2374 = vmatprep.mubr.f32.mxu0 0.0
        %v2375 = vand.u32 %v2043, 4294901760
        %v2376 = vsub.f32 %v2043, %v2375
        %2377 = vmatmul.mubr.f32.gmra.mrb[0].mxu0 %v2376
        %v2378 = vpop.f32.mrb[0].mxu0
        %v2379 = vadd.f32 %v2271, %v2378
        %v2380 = vpop.f32.mrb[0].mxu0
        %2381 = vmatprep.mubr.f32.mxu0 0.0
        %v2382 = vand.u32 %v2046, 4294901760
        %v2383 = vsub.f32 %v2046, %v2382
        %2384 = vmatmul.mubr.f32.gmra.mrb[0].mxu0 %v2383
        %v2385 = vpop.f32.mrb[0].mxu0
        %v2386 = vadd.f32 %v2277, %v2385
        %v2387 = vpop.f32.mrb[0].mxu0
        %2388 = vmatprep.mubr.f32.mxu0 0.0
        %v2389 = vand.u32 %v2049, 4294901760
        %v2390 = vsub.f32 %v2049, %v2389
        %2391 = vmatmul.mubr.f32.gmra.mrb[0].mxu0 %v2390
        %v2392 = vpop.f32.mrb[0].mxu0
        %v2393 = vadd.f32 %v2283, %v2392
        %v2394 = vpop.f32.mrb[0].mxu0
        %2395 = vmatprep.mubr.f32.mxu0 0.0
        %v2396 = vand.u32 %v2052, 4294901760
        %v2397 = vsub.f32 %v2052, %v2396
        %2398 = vmatmul.mubr.f32.gmra.mrb[0].mxu0 %v2397
        %v2399 = vpop.f32.mrb[0].mxu0
        %v2400 = vadd.f32 %v2289, %v2399
        %v2401 = vpop.f32.mrb[0].mxu0
        %2402 = vdwg.mxu0
        %2403 = vmatprep.subr.mxu0 0.0
        %v2404 = vand.u32 %v449, 4294901760
        %2405 = vmatpush1.msra.mxu0 %v2404
        %2406 = vmatprep.subr.mxu0 0.0
        %v2407 = vand.u32 %v450, 4294901760
        %2408 = vmatpush1.msra.mxu0 %v2407
        %2409 = vmatprep.subr.mxu0 0.0
        %2410 = vmatpush1.msra.mxu0 0.0
        %2411 = vmatprep.subr.mxu0 0.0
        %2412 = vmatpush1.msra.mxu0 0.0
        %2413 = vmatprep.subr.mxu0 0.0
        %2414 = vmatpush1.msra.mxu0 0.0
        %2415 = vmatprep.subr.mxu0 0.0
        %2416 = vmatpush1.msra.mxu0 0.0
        %2417 = vmatprep.subr.mxu0 0.0
        %2418 = vmatpush1.msra.mxu0 0.0
        %2419 = vmatprep.subr.mxu0 0.0
        %2420 = vmatpush1.msra.mxu0 0.0
        %2421 = vmatprep.subr.mxu0 0.0
        %2422 = vmatpush1.msra.mxu0 0.0
        %2423 = vmatprep.subr.mxu0 0.0
        %2424 = vmatpush1.msra.mxu0 0.0
        %2425 = vmatprep.subr.mxu0 0.0
        %2426 = vmatpush1.msra.mxu0 0.0
        %2427 = vmatprep.subr.mxu0 0.0
        %2428 = vmatpush1.msra.mxu0 0.0
        %2429 = vmatprep.subr.mxu0 0.0
        %2430 = vmatpush1.msra.mxu0 0.0
        %2431 = vmatprep.subr.mxu0 0.0
        %2432 = vmatpush1.msra.mxu0 0.0
        %2433 = vmatprep.subr.mxu0 0.0
        %2434 = vmatpush1.msra.mxu0 0.0
        %2435 = vmatprep.subr.mxu0 0.0
        %2436 = vmatpush1.msra.mxu0 0.0
        %2437 = vmatprep.subr.mxu0 0.0
        %2438 = vmatpush1.msra.mxu0 0.0
        %2439 = vmatprep.subr.mxu0 0.0
        %2440 = vmatpush1.msra.mxu0 0.0
        %2441 = vmatprep.subr.mxu0 0.0
        %2442 = vmatpush1.msra.mxu0 0.0
        %2443 = vmatprep.subr.mxu0 0.0
        %2444 = vmatpush1.msra.mxu0 0.0
        %2445 = vmatprep.subr.mxu0 0.0
        %2446 = vmatpush1.msra.mxu0 0.0
        %2447 = vmatprep.subr.mxu0 0.0
        %2448 = vmatpush1.msra.mxu0 0.0
        %2449 = vmatprep.subr.mxu0 0.0
        %2450 = vmatpush1.msra.mxu0 0.0
        %2451 = vmatprep.subr.mxu0 0.0
        %2452 = vmatpush1.msra.mxu0 0.0
        %2453 = vmatprep.subr.mxu0 0.0
        %2454 = vmatpush1.msra.mxu0 0.0
        %2455 = vmatprep.subr.mxu0 0.0
        %2456 = vmatpush1.msra.mxu0 0.0
        %2457 = vmatprep.subr.mxu0 0.0
        %2458 = vmatpush1.msra.mxu0 0.0
        %2459 = vmatprep.subr.mxu0 0.0
        %2460 = vmatpush1.msra.mxu0 0.0
        %2461 = vmatprep.subr.mxu0 0.0
        %2462 = vmatpush1.msra.mxu0 0.0
        %2463 = vmatprep.subr.mxu0 0.0
        %2464 = vmatpush1.msra.mxu0 0.0
        %2465 = vmatprep.subr.mxu0 0.0
        %2466 = vmatpush1.msra.mxu0 0.0
        %2467 = vmatprep.subr.mxu0 0.0
        %2468 = vmatpush1.msra.mxu0 0.0
        %2469 = vmatprep.mubr.f32.mxu0 0.0
        %v2470 = vand.u32 %v2037, 4294901760
        %v2471 = vsub.f32 %v2037, %v2470
        %v2472 = vand.u32 %v2471, 4294901760
        %2473 = vmatmul.mubr.f32.gmra.mrb[0].mxu0 %v2472
        %v2474 = vpop.f32.mrb[0].mxu0
        %v2475 = vadd.f32 %v2365, %v2474
        %v2476 = vpop.f32.mrb[0].mxu0
        %2477 = vmatprep.mubr.f32.mxu0 0.0
        %v2478 = vand.u32 %v2040, 4294901760
        %v2479 = vsub.f32 %v2040, %v2478
        %v2480 = vand.u32 %v2479, 4294901760
        %2481 = vmatmul.mubr.f32.gmra.mrb[0].mxu0 %v2480
        %v2482 = vpop.f32.mrb[0].mxu0
        %v2483 = vadd.f32 %v2372, %v2482
        %v2484 = vpop.f32.mrb[0].mxu0
        %2485 = vmatprep.mubr.f32.mxu0 0.0
        %v2486 = vand.u32 %v2043, 4294901760
        %v2487 = vsub.f32 %v2043, %v2486
        %v2488 = vand.u32 %v2487, 4294901760
        %2489 = vmatmul.mubr.f32.gmra.mrb[0].mxu0 %v2488
        %v2490 = vpop.f32.mrb[0].mxu0
        %v2491 = vadd.f32 %v2379, %v2490
        %v2492 = vpop.f32.mrb[0].mxu0
        %2493 = vmatprep.mubr.f32.mxu0 0.0
        %v2494 = vand.u32 %v2046, 4294901760
        %v2495 = vsub.f32 %v2046, %v2494
        %v2496 = vand.u32 %v2495, 4294901760
        %2497 = vmatmul.mubr.f32.gmra.mrb[0].mxu0 %v2496
        %v2498 = vpop.f32.mrb[0].mxu0
        %v2499 = vadd.f32 %v2386, %v2498
        %v2500 = vpop.f32.mrb[0].mxu0
        %2501 = vmatprep.mubr.f32.mxu0 0.0
        %v2502 = vand.u32 %v2049, 4294901760
        %v2503 = vsub.f32 %v2049, %v2502
        %v2504 = vand.u32 %v2503, 4294901760
        %2505 = vmatmul.mubr.f32.gmra.mrb[0].mxu0 %v2504
        %v2506 = vpop.f32.mrb[0].mxu0
        %v2507 = vadd.f32 %v2393, %v2506
        %v2508 = vpop.f32.mrb[0].mxu0
        %2509 = vmatprep.mubr.f32.mxu0 0.0
        %v2510 = vand.u32 %v2052, 4294901760
        %v2511 = vsub.f32 %v2052, %v2510
        %v2512 = vand.u32 %v2511, 4294901760
        %2513 = vmatmul.mubr.f32.gmra.mrb[0].mxu0 %v2512
        %v2514 = vpop.f32.mrb[0].mxu0
        %v2515 = vadd.f32 %v2400, %v2514
        %v2516 = vpop.f32.mrb[0].mxu0
        %2517 = vdwg.mxu0
        %2518 = vmatprep.subr.mxu0 0.0
        %v2519 = vand.u32 %v449, 4294901760
        %v2520 = vsub.f32 %v449, %v2519
        %v2521 = vand.u32 %v2520, 4294901760
        %2522 = vmatpush1.msra.mxu0 %v2521
        %2523 = vmatprep.subr.mxu0 0.0
        %v2524 = vand.u32 %v450, 4294901760
        %v2525 = vsub.f32 %v450, %v2524
        %v2526 = vand.u32 %v2525, 4294901760
        %2527 = vmatpush1.msra.mxu0 %v2526
        %2528 = vmatprep.subr.mxu0 0.0
        %2529 = vmatpush1.msra.mxu0 0.0
        %2530 = vmatprep.subr.mxu0 0.0
        %2531 = vmatpush1.msra.mxu0 0.0
        %2532 = vmatprep.subr.mxu0 0.0
        %2533 = vmatpush1.msra.mxu0 0.0
        %2534 = vmatprep.subr.mxu0 0.0
        %2535 = vmatpush1.msra.mxu0 0.0
        %2536 = vmatprep.subr.mxu0 0.0
        %2537 = vmatpush1.msra.mxu0 0.0
        %2538 = vmatprep.subr.mxu0 0.0
        %2539 = vmatpush1.msra.mxu0 0.0
        %2540 = vmatprep.subr.mxu0 0.0
        %2541 = vmatpush1.msra.mxu0 0.0
        %2542 = vmatprep.subr.mxu0 0.0
        %2543 = vmatpush1.msra.mxu0 0.0
        %2544 = vmatprep.subr.mxu0 0.0
        %2545 = vmatpush1.msra.mxu0 0.0
        %2546 = vmatprep.subr.mxu0 0.0
        %2547 = vmatpush1.msra.mxu0 0.0
        %2548 = vmatprep.subr.mxu0 0.0
        %2549 = vmatpush1.msra.mxu0 0.0
        %2550 = vmatprep.subr.mxu0 0.0
        %2551 = vmatpush1.msra.mxu0 0.0
        %2552 = vmatprep.subr.mxu0 0.0
        %2553 = vmatpush1.msra.mxu0 0.0
        %2554 = vmatprep.subr.mxu0 0.0
        %2555 = vmatpush1.msra.mxu0 0.0
        %2556 = vmatprep.subr.mxu0 0.0
        %2557 = vmatpush1.msra.mxu0 0.0
        %2558 = vmatprep.subr.mxu0 0.0
        %2559 = vmatpush1.msra.mxu0 0.0
        %2560 = vmatprep.subr.mxu0 0.0
        %2561 = vmatpush1.msra.mxu0 0.0
        %2562 = vmatprep.subr.mxu0 0.0
        %2563 = vmatpush1.msra.mxu0 0.0
        %2564 = vmatprep.subr.mxu0 0.0
        %2565 = vmatpush1.msra.mxu0 0.0
        %2566 = vmatprep.subr.mxu0 0.0
        %2567 = vmatpush1.msra.mxu0 0.0
        %2568 = vmatprep.subr.mxu0 0.0
        %2569 = vmatpush1.msra.mxu0 0.0
        %2570 = vmatprep.subr.mxu0 0.0
        %2571 = vmatpush1.msra.mxu0 0.0
        %2572 = vmatprep.subr.mxu0 0.0
        %2573 = vmatpush1.msra.mxu0 0.0
        %2574 = vmatprep.subr.mxu0 0.0
        %2575 = vmatpush1.msra.mxu0 0.0
        %2576 = vmatprep.subr.mxu0 0.0
        %2577 = vmatpush1.msra.mxu0 0.0
        %2578 = vmatprep.subr.mxu0 0.0
        %2579 = vmatpush1.msra.mxu0 0.0
        %2580 = vmatprep.subr.mxu0 0.0
        %2581 = vmatpush1.msra.mxu0 0.0
        %2582 = vmatprep.subr.mxu0 0.0
        %2583 = vmatpush1.msra.mxu0 0.0
        %2584 = vmatprep.subr.mxu0 0.0
        %2585 = vmatpush1.msra.mxu0 0.0
        %2586 = vmatprep.subr.mxu0 0.0
        %2587 = vmatpush1.msra.mxu0 0.0
        %2588 = vmatprep.mubr.f32.mxu0 0.0
        %v2589 = vand.u32 %v2037, 4294901760
        %2590 = vmatmul.mubr.f32.gmra.mrb[0].mxu0 %v2589
        %v2591 = vpop.f32.mrb[0].mxu0
        %v2592 = vadd.f32 %v2475, %v2591
        %v2593 = vpop.f32.mrb[0].mxu0
        %2594 = vmatprep.mubr.f32.mxu0 0.0
        %v2595 = vand.u32 %v2040, 4294901760
        %2596 = vmatmul.mubr.f32.gmra.mrb[0].mxu0 %v2595
        %v2597 = vpop.f32.mrb[0].mxu0
        %v2598 = vadd.f32 %v2483, %v2597
        %v2599 = vpop.f32.mrb[0].mxu0
        %2600 = vmatprep.mubr.f32.mxu0 0.0
        %v2601 = vand.u32 %v2043, 4294901760
        %2602 = vmatmul.mubr.f32.gmra.mrb[0].mxu0 %v2601
        %v2603 = vpop.f32.mrb[0].mxu0
        %v2604 = vadd.f32 %v2491, %v2603
        %v2605 = vpop.f32.mrb[0].mxu0
        %2606 = vmatprep.mubr.f32.mxu0 0.0
        %v2607 = vand.u32 %v2046, 4294901760
        %2608 = vmatmul.mubr.f32.gmra.mrb[0].mxu0 %v2607
        %v2609 = vpop.f32.mrb[0].mxu0
        %v2610 = vadd.f32 %v2499, %v2609
        %v2611 = vpop.f32.mrb[0].mxu0
        %2612 = vmatprep.mubr.f32.mxu0 0.0
        %v2613 = vand.u32 %v2049, 4294901760
        %2614 = vmatmul.mubr.f32.gmra.mrb[0].mxu0 %v2613
        %v2615 = vpop.f32.mrb[0].mxu0
        %v2616 = vadd.f32 %v2507, %v2615
        %v2617 = vpop.f32.mrb[0].mxu0
        %2618 = vmatprep.mubr.f32.mxu0 0.0
        %v2619 = vand.u32 %v2052, 4294901760
        %2620 = vmatmul.mubr.f32.gmra.mrb[0].mxu0 %v2619
        %v2621 = vpop.f32.mrb[0].mxu0
        %v2622 = vadd.f32 %v2515, %v2621
        %v2623 = vpop.f32.mrb[0].mxu0
        %2624 = vdwg.mxu0
        %2625 = vmatprep.subr.mxu0 0.0
        %v2626 = vand.u32 %v449, 4294901760
        %2627 = vmatpush1.msra.mxu0 %v2626
        %2628 = vmatprep.subr.mxu0 0.0
        %v2629 = vand.u32 %v450, 4294901760
        %2630 = vmatpush1.msra.mxu0 %v2629
        %2631 = vmatprep.subr.mxu0 0.0
        %2632 = vmatpush1.msra.mxu0 0.0
        %2633 = vmatprep.subr.mxu0 0.0
        %2634 = vmatpush1.msra.mxu0 0.0
        %2635 = vmatprep.subr.mxu0 0.0
        %2636 = vmatpush1.msra.mxu0 0.0
        %2637 = vmatprep.subr.mxu0 0.0
        %2638 = vmatpush1.msra.mxu0 0.0
        %2639 = vmatprep.subr.mxu0 0.0
        %2640 = vmatpush1.msra.mxu0 0.0
        %2641 = vmatprep.subr.mxu0 0.0
        %2642 = vmatpush1.msra.mxu0 0.0
        %2643 = vmatprep.subr.mxu0 0.0
        %2644 = vmatpush1.msra.mxu0 0.0
        %2645 = vmatprep.subr.mxu0 0.0
        %2646 = vmatpush1.msra.mxu0 0.0
        %2647 = vmatprep.subr.mxu0 0.0
        %2648 = vmatpush1.msra.mxu0 0.0
        %2649 = vmatprep.subr.mxu0 0.0
        %2650 = vmatpush1.msra.mxu0 0.0
        %2651 = vmatprep.subr.mxu0 0.0
        %2652 = vmatpush1.msra.mxu0 0.0
        %2653 = vmatprep.subr.mxu0 0.0
        %2654 = vmatpush1.msra.mxu0 0.0
        %2655 = vmatprep.subr.mxu0 0.0
        %2656 = vmatpush1.msra.mxu0 0.0
        %2657 = vmatprep.subr.mxu0 0.0
        %2658 = vmatpush1.msra.mxu0 0.0
        %2659 = vmatprep.subr.mxu0 0.0
        %2660 = vmatpush1.msra.mxu0 0.0
        %2661 = vmatprep.subr.mxu0 0.0
        %2662 = vmatpush1.msra.mxu0 0.0
        %2663 = vmatprep.subr.mxu0 0.0
        %2664 = vmatpush1.msra.mxu0 0.0
        %2665 = vmatprep.subr.mxu0 0.0
        %2666 = vmatpush1.msra.mxu0 0.0
        %2667 = vmatprep.subr.mxu0 0.0
        %2668 = vmatpush1.msra.mxu0 0.0
        %2669 = vmatprep.subr.mxu0 0.0
        %2670 = vmatpush1.msra.mxu0 0.0
        %2671 = vmatprep.subr.mxu0 0.0
        %2672 = vmatpush1.msra.mxu0 0.0
        %2673 = vmatprep.subr.mxu0 0.0
        %2674 = vmatpush1.msra.mxu0 0.0
        %2675 = vmatprep.subr.mxu0 0.0
        %2676 = vmatpush1.msra.mxu0 0.0
        %2677 = vmatprep.subr.mxu0 0.0
        %2678 = vmatpush1.msra.mxu0 0.0
        %2679 = vmatprep.subr.mxu0 0.0
        %2680 = vmatpush1.msra.mxu0 0.0
        %2681 = vmatprep.subr.mxu0 0.0
        %2682 = vmatpush1.msra.mxu0 0.0
        %2683 = vmatprep.subr.mxu0 0.0
        %2684 = vmatpush1.msra.mxu0 0.0
        %2685 = vmatprep.subr.mxu0 0.0
        %2686 = vmatpush1.msra.mxu0 0.0
        %2687 = vmatprep.subr.mxu0 0.0
        %2688 = vmatpush1.msra.mxu0 0.0
        %2689 = vmatprep.subr.mxu0 0.0
        %2690 = vmatpush1.msra.mxu0 0.0
        %2691 = vmatprep.mubr.f32.mxu0 0.0
        %v2692 = vand.u32 %v2037, 4294901760
        %2693 = vmatmul.mubr.f32.gmra.mrb[0].mxu0 %v2692
        %v2694 = vpop.f32.mrb[0].mxu0
        %v2695 = vadd.f32 %v2592, %v2694
        %v2696 = vpop.f32.mrb[0].mxu0
        %2697 = vmatprep.mubr.f32.mxu0 0.0
        %v2698 = vand.u32 %v2040, 4294901760
        %2699 = vmatmul.mubr.f32.gmra.mrb[0].mxu0 %v2698
        %v2700 = vpop.f32.mrb[0].mxu0
        %v2701 = vadd.f32 %v2598, %v2700
        %v2702 = vpop.f32.mrb[0].mxu0
        %2703 = vmatprep.mubr.f32.mxu0 0.0
        %v2704 = vand.u32 %v2043, 4294901760
        %2705 = vmatmul.mubr.f32.gmra.mrb[0].mxu0 %v2704
        %v2706 = vpop.f32.mrb[0].mxu0
        %v2707 = vadd.f32 %v2604, %v2706
        %v2708 = vpop.f32.mrb[0].mxu0
        %2709 = vmatprep.mubr.f32.mxu0 0.0
        %v2710 = vand.u32 %v2046, 4294901760
        %2711 = vmatmul.mubr.f32.gmra.mrb[0].mxu0 %v2710
        %v2712 = vpop.f32.mrb[0].mxu0
        %v2713 = vadd.f32 %v2610, %v2712
        %v2714 = vpop.f32.mrb[0].mxu0
        %2715 = vmatprep.mubr.f32.mxu0 0.0
        %v2716 = vand.u32 %v2049, 4294901760
        %2717 = vmatmul.mubr.f32.gmra.mrb[0].mxu0 %v2716
        %v2718 = vpop.f32.mrb[0].mxu0
        %v2719 = vadd.f32 %v2616, %v2718
        %v2720 = vpop.f32.mrb[0].mxu0
        %2721 = vmatprep.mubr.f32.mxu0 0.0
        %v2722 = vand.u32 %v2052, 4294901760
        %2723 = vmatmul.mubr.f32.gmra.mrb[0].mxu0 %v2722
        %v2724 = vpop.f32.mrb[0].mxu0
        %v2725 = vadd.f32 %v2622, %v2724
        %v2726 = vpop.f32.mrb[0].mxu0
        %2727 = vdwg.mxu0
        %v2728 = vld [vmem:[#allocation12] sm:$0xff]
        %s2729 = scalar_lea.vmem [#allocation12], 8
        %v2730 = vld [vmem:[%s2729] sm:$0xff]
        %v2731 = vld [vmem:[#allocation13] sm:$0xff]
        %s2732 = scalar_lea.vmem [#allocation13], 8
        %v2733 = vld [vmem:[%s2732] sm:$0xff]
        %v2734 = vmul.f32 %v2695, %v2731
        %v2735 = vmul.f32 %v2701, %v2731
        %v2736 = vmul.f32 %v2707, %v2733
        %v2737 = vmul.f32 %v2713, %v2733
        %v2738 = vmul.f32 %v2719, %v2733
        %v2739 = vmul.f32 %v2725, %v2733
        %v2740 = vround.ne.pseudo %v2734
        %v2741 = vround.ne.pseudo %v2735
        %v2742 = vround.ne.pseudo %v2736
        %v2743 = vround.ne.pseudo %v2737
        %v2744 = vround.ne.pseudo %v2738
        %v2745 = vround.ne.pseudo %v2739
        %v2746 = vmul.f32 %v2740, %v2728
        %v2747 = vmul.f32 %v2741, %v2728
        %v2748 = vmul.f32 %v2742, %v2730
        %v2749 = vmul.f32 %v2743, %v2730
        %v2750 = vmul.f32 %v2744, %v2730
        %v2751 = vmul.f32 %v2745, %v2730
        %v2753 = vsel %vm523, %v2746, 0
        %v2756 = vsel %vm523, %v2747, 0
        %v2759 = vsel %vm523, %v2748, 0
        %v2762 = vsel %vm523, %v2749, 0
        %v2765 = vsel %vm523, %v2750, 0
        %v2768 = vsel %vm523, %v2751, 0
        %2770 = vmatprep.subr.mxu0 0.0
        %v2771 = vand.u32 %v447, 4294901760
        %2772 = vmatpush1.msra.mxu0 %v2771
        %2773 = vmatprep.subr.mxu0 0.0
        %v2774 = vand.u32 %v448, 4294901760
        %2775 = vmatpush1.msra.mxu0 %v2774
        %2776 = vmatprep.subr.mxu0 0.0
        %2777 = vmatpush1.msra.mxu0 0.0
        %2778 = vmatprep.subr.mxu0 0.0
        %2779 = vmatpush1.msra.mxu0 0.0
        %2780 = vmatprep.subr.mxu0 0.0
        %2781 = vmatpush1.msra.mxu0 0.0
        %2782 = vmatprep.subr.mxu0 0.0
        %2783 = vmatpush1.msra.mxu0 0.0
        %2784 = vmatprep.subr.mxu0 0.0
        %2785 = vmatpush1.msra.mxu0 0.0
        %2786 = vmatprep.subr.mxu0 0.0
        %2787 = vmatpush1.msra.mxu0 0.0
        %2788 = vmatprep.subr.mxu0 0.0
        %2789 = vmatpush1.msra.mxu0 0.0
        %2790 = vmatprep.subr.mxu0 0.0
        %2791 = vmatpush1.msra.mxu0 0.0
        %2792 = vmatprep.subr.mxu0 0.0
        %2793 = vmatpush1.msra.mxu0 0.0
        %2794 = vmatprep.subr.mxu0 0.0
        %2795 = vmatpush1.msra.mxu0 0.0
        %2796 = vmatprep.subr.mxu0 0.0
        %2797 = vmatpush1.msra.mxu0 0.0
        %2798 = vmatprep.subr.mxu0 0.0
        %2799 = vmatpush1.msra.mxu0 0.0
        %2800 = vmatprep.subr.mxu0 0.0
        %2801 = vmatpush1.msra.mxu0 0.0
        %2802 = vmatprep.subr.mxu0 0.0
        %2803 = vmatpush1.msra.mxu0 0.0
        %2804 = vmatprep.subr.mxu0 0.0
        %2805 = vmatpush1.msra.mxu0 0.0
        %2806 = vmatprep.subr.mxu0 0.0
        %2807 = vmatpush1.msra.mxu0 0.0
        %2808 = vmatprep.subr.mxu0 0.0
        %2809 = vmatpush1.msra.mxu0 0.0
        %2810 = vmatprep.subr.mxu0 0.0
        %2811 = vmatpush1.msra.mxu0 0.0
        %2812 = vmatprep.subr.mxu0 0.0
        %2813 = vmatpush1.msra.mxu0 0.0
        %2814 = vmatprep.subr.mxu0 0.0
        %2815 = vmatpush1.msra.mxu0 0.0
        %2816 = vmatprep.subr.mxu0 0.0
        %2817 = vmatpush1.msra.mxu0 0.0
        %2818 = vmatprep.subr.mxu0 0.0
        %2819 = vmatpush1.msra.mxu0 0.0
        %2820 = vmatprep.subr.mxu0 0.0
        %2821 = vmatpush1.msra.mxu0 0.0
        %2822 = vmatprep.subr.mxu0 0.0
        %2823 = vmatpush1.msra.mxu0 0.0
        %2824 = vmatprep.subr.mxu0 0.0
        %2825 = vmatpush1.msra.mxu0 0.0
        %2826 = vmatprep.subr.mxu0 0.0
        %2827 = vmatpush1.msra.mxu0 0.0
        %2828 = vmatprep.subr.mxu0 0.0
        %2829 = vmatpush1.msra.mxu0 0.0
        %2830 = vmatprep.subr.mxu0 0.0
        %2831 = vmatpush1.msra.mxu0 0.0
        %2832 = vmatprep.subr.mxu0 0.0
        %2833 = vmatpush1.msra.mxu0 0.0
        %2834 = vmatprep.subr.mxu0 0.0
        %2835 = vmatpush1.msra.mxu0 0.0
        %2836 = vmatprep.mubr.f32.mxu0 0.0
        %v2837 = vand.u32 %v2753, 4294901760
        %v2838 = vsub.f32 %v2753, %v2837
        %v2839 = vand.u32 %v2838, 4294901760
        %v2840 = vsub.f32 %v2838, %v2839
        %v2841 = vand.u32 %v2840, 4294901760
        %2842 = vmatmul.mubr.f32.gmra.mrb[0].mxu0 %v2841
        %v2843 = vpop.f32.mrb[0].mxu0
        %v2844 = vadd.f32 0.0, %v2843
        %v2845 = vpop.f32.mrb[0].mxu0
        %2846 = vmatprep.mubr.f32.mxu0 0.0
        %v2847 = vand.u32 %v2756, 4294901760
        %v2848 = vsub.f32 %v2756, %v2847
        %v2849 = vand.u32 %v2848, 4294901760
        %v2850 = vsub.f32 %v2848, %v2849
        %v2851 = vand.u32 %v2850, 4294901760
        %2852 = vmatmul.mubr.f32.gmra.mrb[0].mxu0 %v2851
        %v2853 = vpop.f32.mrb[0].mxu0
        %v2854 = vadd.f32 0.0, %v2853
        %v2855 = vpop.f32.mrb[0].mxu0
        %2856 = vmatprep.mubr.f32.mxu0 0.0
        %v2857 = vand.u32 %v2759, 4294901760
        %v2858 = vsub.f32 %v2759, %v2857
        %v2859 = vand.u32 %v2858, 4294901760
        %v2860 = vsub.f32 %v2858, %v2859
        %v2861 = vand.u32 %v2860, 4294901760
        %2862 = vmatmul.mubr.f32.gmra.mrb[0].mxu0 %v2861
        %v2863 = vpop.f32.mrb[0].mxu0
        %v2864 = vadd.f32 0.0, %v2863
        %v2865 = vpop.f32.mrb[0].mxu0
        %2866 = vmatprep.mubr.f32.mxu0 0.0
        %v2867 = vand.u32 %v2762, 4294901760
        %v2868 = vsub.f32 %v2762, %v2867
        %v2869 = vand.u32 %v2868, 4294901760
        %v2870 = vsub.f32 %v2868, %v2869
        %v2871 = vand.u32 %v2870, 4294901760
        %2872 = vmatmul.mubr.f32.gmra.mrb[0].mxu0 %v2871
        %v2873 = vpop.f32.mrb[0].mxu0
        %v2874 = vadd.f32 0.0, %v2873
        %v2875 = vpop.f32.mrb[0].mxu0
        %2876 = vmatprep.mubr.f32.mxu0 0.0
        %v2877 = vand.u32 %v2765, 4294901760
        %v2878 = vsub.f32 %v2765, %v2877
        %v2879 = vand.u32 %v2878, 4294901760
        %v2880 = vsub.f32 %v2878, %v2879
        %v2881 = vand.u32 %v2880, 4294901760
        %2882 = vmatmul.mubr.f32.gmra.mrb[0].mxu0 %v2881
        %v2883 = vpop.f32.mrb[0].mxu0
        %v2884 = vadd.f32 0.0, %v2883
        %v2885 = vpop.f32.mrb[0].mxu0
        %2886 = vmatprep.mubr.f32.mxu0 0.0
        %v2887 = vand.u32 %v2768, 4294901760
        %v2888 = vsub.f32 %v2768, %v2887
        %v2889 = vand.u32 %v2888, 4294901760
        %v2890 = vsub.f32 %v2888, %v2889
        %v2891 = vand.u32 %v2890, 4294901760
        %2892 = vmatmul.mubr.f32.gmra.mrb[0].mxu0 %v2891
        %v2893 = vpop.f32.mrb[0].mxu0
        %v2894 = vadd.f32 0.0, %v2893
        %v2895 = vpop.f32.mrb[0].mxu0
        %2896 = vdwg.mxu0
        %2897 = vmatprep.subr.mxu0 0.0
        %v2898 = vand.u32 %v447, 4294901760
        %v2899 = vsub.f32 %v447, %v2898
        %v2900 = vand.u32 %v2899, 4294901760
        %v2901 = vsub.f32 %v2899, %v2900
        %v2902 = vand.u32 %v2901, 4294901760
        %2903 = vmatpush1.msra.mxu0 %v2902
        %2904 = vmatprep.subr.mxu0 0.0
        %v2905 = vand.u32 %v448, 4294901760
        %v2906 = vsub.f32 %v448, %v2905
        %v2907 = vand.u32 %v2906, 4294901760
        %v2908 = vsub.f32 %v2906, %v2907
        %v2909 = vand.u32 %v2908, 4294901760
        %2910 = vmatpush1.msra.mxu0 %v2909
        %2911 = vmatprep.subr.mxu0 0.0
        %2912 = vmatpush1.msra.mxu0 0.0
        %2913 = vmatprep.subr.mxu0 0.0
        %2914 = vmatpush1.msra.mxu0 0.0
        %2915 = vmatprep.subr.mxu0 0.0
        %2916 = vmatpush1.msra.mxu0 0.0
        %2917 = vmatprep.subr.mxu0 0.0
        %2918 = vmatpush1.msra.mxu0 0.0
        %2919 = vmatprep.subr.mxu0 0.0
        %2920 = vmatpush1.msra.mxu0 0.0
        %2921 = vmatprep.subr.mxu0 0.0
        %2922 = vmatpush1.msra.mxu0 0.0
        %2923 = vmatprep.subr.mxu0 0.0
        %2924 = vmatpush1.msra.mxu0 0.0
        %2925 = vmatprep.subr.mxu0 0.0
        %2926 = vmatpush1.msra.mxu0 0.0
        %2927 = vmatprep.subr.mxu0 0.0
        %2928 = vmatpush1.msra.mxu0 0.0
        %2929 = vmatprep.subr.mxu0 0.0
        %2930 = vmatpush1.msra.mxu0 0.0
        %2931 = vmatprep.subr.mxu0 0.0
        %2932 = vmatpush1.msra.mxu0 0.0
        %2933 = vmatprep.subr.mxu0 0.0
        %2934 = vmatpush1.msra.mxu0 0.0
        %2935 = vmatprep.subr.mxu0 0.0
        %2936 = vmatpush1.msra.mxu0 0.0
        %2937 = vmatprep.subr.mxu0 0.0
        %2938 = vmatpush1.msra.mxu0 0.0
        %2939 = vmatprep.subr.mxu0 0.0
        %2940 = vmatpush1.msra.mxu0 0.0
        %2941 = vmatprep.subr.mxu0 0.0
        %2942 = vmatpush1.msra.mxu0 0.0
        %2943 = vmatprep.subr.mxu0 0.0
        %2944 = vmatpush1.msra.mxu0 0.0
        %2945 = vmatprep.subr.mxu0 0.0
        %2946 = vmatpush1.msra.mxu0 0.0
        %2947 = vmatprep.subr.mxu0 0.0
        %2948 = vmatpush1.msra.mxu0 0.0
        %2949 = vmatprep.subr.mxu0 0.0
        %2950 = vmatpush1.msra.mxu0 0.0
        %2951 = vmatprep.subr.mxu0 0.0
        %2952 = vmatpush1.msra.mxu0 0.0
        %2953 = vmatprep.subr.mxu0 0.0
        %2954 = vmatpush1.msra.mxu0 0.0
        %2955 = vmatprep.subr.mxu0 0.0
        %2956 = vmatpush1.msra.mxu0 0.0
        %2957 = vmatprep.subr.mxu0 0.0
        %2958 = vmatpush1.msra.mxu0 0.0
        %2959 = vmatprep.subr.mxu0 0.0
        %2960 = vmatpush1.msra.mxu0 0.0
        %2961 = vmatprep.subr.mxu0 0.0
        %2962 = vmatpush1.msra.mxu0 0.0
        %2963 = vmatprep.subr.mxu0 0.0
        %2964 = vmatpush1.msra.mxu0 0.0
        %2965 = vmatprep.subr.mxu0 0.0
        %2966 = vmatpush1.msra.mxu0 0.0
        %2967 = vmatprep.subr.mxu0 0.0
        %2968 = vmatpush1.msra.mxu0 0.0
        %2969 = vmatprep.subr.mxu0 0.0
        %2970 = vmatpush1.msra.mxu0 0.0
        %2971 = vmatprep.mubr.f32.mxu0 0.0
        %v2972 = vand.u32 %v2753, 4294901760
        %2973 = vmatmul.mubr.f32.gmra.mrb[0].mxu0 %v2972
        %v2974 = vpop.f32.mrb[0].mxu0
        %v2975 = vadd.f32 %v2844, %v2974
        %v2976 = vpop.f32.mrb[0].mxu0
        %2977 = vmatprep.mubr.f32.mxu0 0.0
        %v2978 = vand.u32 %v2756, 4294901760
        %2979 = vmatmul.mubr.f32.gmra.mrb[0].mxu0 %v2978
        %v2980 = vpop.f32.mrb[0].mxu0
        %v2981 = vadd.f32 %v2854, %v2980
        %v2982 = vpop.f32.mrb[0].mxu0
        %2983 = vmatprep.mubr.f32.mxu0 0.0
        %v2984 = vand.u32 %v2759, 4294901760
        %2985 = vmatmul.mubr.f32.gmra.mrb[0].mxu0 %v2984
        %v2986 = vpop.f32.mrb[0].mxu0
        %v2987 = vadd.f32 %v2864, %v2986
        %v2988 = vpop.f32.mrb[0].mxu0
        %2989 = vmatprep.mubr.f32.mxu0 0.0
        %v2990 = vand.u32 %v2762, 4294901760
        %2991 = vmatmul.mubr.f32.gmra.mrb[0].mxu0 %v2990
        %v2992 = vpop.f32.mrb[0].mxu0
        %v2993 = vadd.f32 %v2874, %v2992
        %v2994 = vpop.f32.mrb[0].mxu0
        %2995 = vmatprep.mubr.f32.mxu0 0.0
        %v2996 = vand.u32 %v2765, 4294901760
        %2997 = vmatmul.mubr.f32.gmra.mrb[0].mxu0 %v2996
        %v2998 = vpop.f32.mrb[0].mxu0
        %v2999 = vadd.f32 %v2884, %v2998
        %v3000 = vpop.f32.mrb[0].mxu0
        %3001 = vmatprep.mubr.f32.mxu0 0.0
        %v3002 = vand.u32 %v2768, 4294901760
        %3003 = vmatmul.mubr.f32.gmra.mrb[0].mxu0 %v3002
        %v3004 = vpop.f32.mrb[0].mxu0
        %v3005 = vadd.f32 %v2894, %v3004
        %v3006 = vpop.f32.mrb[0].mxu0
        %3007 = vdwg.mxu0
        %3008 = vmatprep.subr.mxu0 0.0
        %v3009 = vand.u32 %v447, 4294901760
        %v3010 = vsub.f32 %v447, %v3009
        %3011 = vmatpush1.msra.mxu0 %v3010
        %3012 = vmatprep.subr.mxu0 0.0
        %v3013 = vand.u32 %v448, 4294901760
        %v3014 = vsub.f32 %v448, %v3013
        %3015 = vmatpush1.msra.mxu0 %v3014
        %3016 = vmatprep.subr.mxu0 0.0
        %3017 = vmatpush1.msra.mxu0 0.0
        %3018 = vmatprep.subr.mxu0 0.0
        %3019 = vmatpush1.msra.mxu0 0.0
        %3020 = vmatprep.subr.mxu0 0.0
        %3021 = vmatpush1.msra.mxu0 0.0
        %3022 = vmatprep.subr.mxu0 0.0
        %3023 = vmatpush1.msra.mxu0 0.0
        %3024 = vmatprep.subr.mxu0 0.0
        %3025 = vmatpush1.msra.mxu0 0.0
        %3026 = vmatprep.subr.mxu0 0.0
        %3027 = vmatpush1.msra.mxu0 0.0
        %3028 = vmatprep.subr.mxu0 0.0
        %3029 = vmatpush1.msra.mxu0 0.0
        %3030 = vmatprep.subr.mxu0 0.0
        %3031 = vmatpush1.msra.mxu0 0.0
        %3032 = vmatprep.subr.mxu0 0.0
        %3033 = vmatpush1.msra.mxu0 0.0
        %3034 = vmatprep.subr.mxu0 0.0
        %3035 = vmatpush1.msra.mxu0 0.0
        %3036 = vmatprep.subr.mxu0 0.0
        %3037 = vmatpush1.msra.mxu0 0.0
        %3038 = vmatprep.subr.mxu0 0.0
        %3039 = vmatpush1.msra.mxu0 0.0
        %3040 = vmatprep.subr.mxu0 0.0
        %3041 = vmatpush1.msra.mxu0 0.0
        %3042 = vmatprep.subr.mxu0 0.0
        %3043 = vmatpush1.msra.mxu0 0.0
        %3044 = vmatprep.subr.mxu0 0.0
        %3045 = vmatpush1.msra.mxu0 0.0
        %3046 = vmatprep.subr.mxu0 0.0
        %3047 = vmatpush1.msra.mxu0 0.0
        %3048 = vmatprep.subr.mxu0 0.0
        %3049 = vmatpush1.msra.mxu0 0.0
        %3050 = vmatprep.subr.mxu0 0.0
        %3051 = vmatpush1.msra.mxu0 0.0
        %3052 = vmatprep.subr.mxu0 0.0
        %3053 = vmatpush1.msra.mxu0 0.0
        %3054 = vmatprep.subr.mxu0 0.0
        %3055 = vmatpush1.msra.mxu0 0.0
        %3056 = vmatprep.subr.mxu0 0.0
        %3057 = vmatpush1.msra.mxu0 0.0
        %3058 = vmatprep.subr.mxu0 0.0
        %3059 = vmatpush1.msra.mxu0 0.0
        %3060 = vmatprep.subr.mxu0 0.0
        %3061 = vmatpush1.msra.mxu0 0.0
        %3062 = vmatprep.subr.mxu0 0.0
        %3063 = vmatpush1.msra.mxu0 0.0
        %3064 = vmatprep.subr.mxu0 0.0
        %3065 = vmatpush1.msra.mxu0 0.0
        %3066 = vmatprep.subr.mxu0 0.0
        %3067 = vmatpush1.msra.mxu0 0.0
        %3068 = vmatprep.subr.mxu0 0.0
        %3069 = vmatpush1.msra.mxu0 0.0
        %3070 = vmatprep.subr.mxu0 0.0
        %3071 = vmatpush1.msra.mxu0 0.0
        %3072 = vmatprep.subr.mxu0 0.0
        %3073 = vmatpush1.msra.mxu0 0.0
        %3074 = vmatprep.subr.mxu0 0.0
        %3075 = vmatpush1.msra.mxu0 0.0
        %3076 = vmatprep.mubr.f32.mxu0 0.0
        %v3077 = vand.u32 %v2753, 4294901760
        %v3078 = vsub.f32 %v2753, %v3077
        %3079 = vmatmul.mubr.f32.gmra.mrb[0].mxu0 %v3078
        %v3080 = vpop.f32.mrb[0].mxu0
        %v3081 = vadd.f32 %v2975, %v3080
        %v3082 = vpop.f32.mrb[0].mxu0
        %3083 = vmatprep.mubr.f32.mxu0 0.0
        %v3084 = vand.u32 %v2756, 4294901760
        %v3085 = vsub.f32 %v2756, %v3084
        %3086 = vmatmul.mubr.f32.gmra.mrb[0].mxu0 %v3085
        %v3087 = vpop.f32.mrb[0].mxu0
        %v3088 = vadd.f32 %v2981, %v3087
        %v3089 = vpop.f32.mrb[0].mxu0
        %3090 = vmatprep.mubr.f32.mxu0 0.0
        %v3091 = vand.u32 %v2759, 4294901760
        %v3092 = vsub.f32 %v2759, %v3091
        %3093 = vmatmul.mubr.f32.gmra.mrb[0].mxu0 %v3092
        %v3094 = vpop.f32.mrb[0].mxu0
        %v3095 = vadd.f32 %v2987, %v3094
        %v3096 = vpop.f32.mrb[0].mxu0
        %3097 = vmatprep.mubr.f32.mxu0 0.0
        %v3098 = vand.u32 %v2762, 4294901760
        %v3099 = vsub.f32 %v2762, %v3098
        %3100 = vmatmul.mubr.f32.gmra.mrb[0].mxu0 %v3099
        %v3101 = vpop.f32.mrb[0].mxu0
        %v3102 = vadd.f32 %v2993, %v3101
        %v3103 = vpop.f32.mrb[0].mxu0
        %3104 = vmatprep.mubr.f32.mxu0 0.0
        %v3105 = vand.u32 %v2765, 4294901760
        %v3106 = vsub.f32 %v2765, %v3105
        %3107 = vmatmul.mubr.f32.gmra.mrb[0].mxu0 %v3106
        %v3108 = vpop.f32.mrb[0].mxu0
        %v3109 = vadd.f32 %v2999, %v3108
        %v3110 = vpop.f32.mrb[0].mxu0
        %3111 = vmatprep.mubr.f32.mxu0 0.0
        %v3112 = vand.u32 %v2768, 4294901760
        %v3113 = vsub.f32 %v2768, %v3112
        %3114 = vmatmul.mubr.f32.gmra.mrb[0].mxu0 %v3113
        %v3115 = vpop.f32.mrb[0].mxu0
        %v3116 = vadd.f32 %v3005, %v3115
        %v3117 = vpop.f32.mrb[0].mxu0
        %3118 = vdwg.mxu0
        %3119 = vmatprep.subr.mxu0 0.0
        %v3120 = vand.u32 %v447, 4294901760
        %3121 = vmatpush1.msra.mxu0 %v3120
        %3122 = vmatprep.subr.mxu0 0.0
        %v3123 = vand.u32 %v448, 4294901760
        %3124 = vmatpush1.msra.mxu0 %v3123
        %3125 = vmatprep.subr.mxu0 0.0
        %3126 = vmatpush1.msra.mxu0 0.0
        %3127 = vmatprep.subr.mxu0 0.0
        %3128 = vmatpush1.msra.mxu0 0.0
        %3129 = vmatprep.subr.mxu0 0.0
        %3130 = vmatpush1.msra.mxu0 0.0
        %3131 = vmatprep.subr.mxu0 0.0
        %3132 = vmatpush1.msra.mxu0 0.0
        %3133 = vmatprep.subr.mxu0 0.0
        %3134 = vmatpush1.msra.mxu0 0.0
        %3135 = vmatprep.subr.mxu0 0.0
        %3136 = vmatpush1.msra.mxu0 0.0
        %3137 = vmatprep.subr.mxu0 0.0
        %3138 = vmatpush1.msra.mxu0 0.0
        %3139 = vmatprep.subr.mxu0 0.0
        %3140 = vmatpush1.msra.mxu0 0.0
        %3141 = vmatprep.subr.mxu0 0.0
        %3142 = vmatpush1.msra.mxu0 0.0
        %3143 = vmatprep.subr.mxu0 0.0
        %3144 = vmatpush1.msra.mxu0 0.0
        %3145 = vmatprep.subr.mxu0 0.0
        %3146 = vmatpush1.msra.mxu0 0.0
        %3147 = vmatprep.subr.mxu0 0.0
        %3148 = vmatpush1.msra.mxu0 0.0
        %3149 = vmatprep.subr.mxu0 0.0
        %3150 = vmatpush1.msra.mxu0 0.0
        %3151 = vmatprep.subr.mxu0 0.0
        %3152 = vmatpush1.msra.mxu0 0.0
        %3153 = vmatprep.subr.mxu0 0.0
        %3154 = vmatpush1.msra.mxu0 0.0
        %3155 = vmatprep.subr.mxu0 0.0
        %3156 = vmatpush1.msra.mxu0 0.0
        %3157 = vmatprep.subr.mxu0 0.0
        %3158 = vmatpush1.msra.mxu0 0.0
        %3159 = vmatprep.subr.mxu0 0.0
        %3160 = vmatpush1.msra.mxu0 0.0
        %3161 = vmatprep.subr.mxu0 0.0
        %3162 = vmatpush1.msra.mxu0 0.0
        %3163 = vmatprep.subr.mxu0 0.0
        %3164 = vmatpush1.msra.mxu0 0.0
        %3165 = vmatprep.subr.mxu0 0.0
        %3166 = vmatpush1.msra.mxu0 0.0
        %3167 = vmatprep.subr.mxu0 0.0
        %3168 = vmatpush1.msra.mxu0 0.0
        %3169 = vmatprep.subr.mxu0 0.0
        %3170 = vmatpush1.msra.mxu0 0.0
        %3171 = vmatprep.subr.mxu0 0.0
        %3172 = vmatpush1.msra.mxu0 0.0
        %3173 = vmatprep.subr.mxu0 0.0
        %3174 = vmatpush1.msra.mxu0 0.0
        %3175 = vmatprep.subr.mxu0 0.0
        %3176 = vmatpush1.msra.mxu0 0.0
        %3177 = vmatprep.subr.mxu0 0.0
        %3178 = vmatpush1.msra.mxu0 0.0
        %3179 = vmatprep.subr.mxu0 0.0
        %3180 = vmatpush1.msra.mxu0 0.0
        %3181 = vmatprep.subr.mxu0 0.0
        %3182 = vmatpush1.msra.mxu0 0.0
        %3183 = vmatprep.subr.mxu0 0.0
        %3184 = vmatpush1.msra.mxu0 0.0
        %3185 = vmatprep.mubr.f32.mxu0 0.0
        %v3186 = vand.u32 %v2753, 4294901760
        %v3187 = vsub.f32 %v2753, %v3186
        %v3188 = vand.u32 %v3187, 4294901760
        %3189 = vmatmul.mubr.f32.gmra.mrb[0].mxu0 %v3188
        %v3190 = vpop.f32.mrb[0].mxu0
        %v3191 = vadd.f32 %v3081, %v3190
        %v3192 = vpop.f32.mrb[0].mxu0
        %3193 = vmatprep.mubr.f32.mxu0 0.0
        %v3194 = vand.u32 %v2756, 4294901760
        %v3195 = vsub.f32 %v2756, %v3194
        %v3196 = vand.u32 %v3195, 4294901760
        %3197 = vmatmul.mubr.f32.gmra.mrb[0].mxu0 %v3196
        %v3198 = vpop.f32.mrb[0].mxu0
        %v3199 = vadd.f32 %v3088, %v3198
        %v3200 = vpop.f32.mrb[0].mxu0
        %3201 = vmatprep.mubr.f32.mxu0 0.0
        %v3202 = vand.u32 %v2759, 4294901760
        %v3203 = vsub.f32 %v2759, %v3202
        %v3204 = vand.u32 %v3203, 4294901760
        %3205 = vmatmul.mubr.f32.gmra.mrb[0].mxu0 %v3204
        %v3206 = vpop.f32.mrb[0].mxu0
        %v3207 = vadd.f32 %v3095, %v3206
        %v3208 = vpop.f32.mrb[0].mxu0
        %3209 = vmatprep.mubr.f32.mxu0 0.0
        %v3210 = vand.u32 %v2762, 4294901760
        %v3211 = vsub.f32 %v2762, %v3210
        %v3212 = vand.u32 %v3211, 4294901760
        %3213 = vmatmul.mubr.f32.gmra.mrb[0].mxu0 %v3212
        %v3214 = vpop.f32.mrb[0].mxu0
        %v3215 = vadd.f32 %v3102, %v3214
        %v3216 = vpop.f32.mrb[0].mxu0
        %3217 = vmatprep.mubr.f32.mxu0 0.0
        %v3218 = vand.u32 %v2765, 4294901760
        %v3219 = vsub.f32 %v2765, %v3218
        %v3220 = vand.u32 %v3219, 4294901760
        %3221 = vmatmul.mubr.f32.gmra.mrb[0].mxu0 %v3220
        %v3222 = vpop.f32.mrb[0].mxu0
        %v3223 = vadd.f32 %v3109, %v3222
        %v3224 = vpop.f32.mrb[0].mxu0
        %3225 = vmatprep.mubr.f32.mxu0 0.0
        %v3226 = vand.u32 %v2768, 4294901760
        %v3227 = vsub.f32 %v2768, %v3226
        %v3228 = vand.u32 %v3227, 4294901760
        %3229 = vmatmul.mubr.f32.gmra.mrb[0].mxu0 %v3228
        %v3230 = vpop.f32.mrb[0].mxu0
        %v3231 = vadd.f32 %v3116, %v3230
        %v3232 = vpop.f32.mrb[0].mxu0
        %3233 = vdwg.mxu0
        %3234 = vmatprep.subr.mxu0 0.0
        %v3235 = vand.u32 %v447, 4294901760
        %v3236 = vsub.f32 %v447, %v3235
        %v3237 = vand.u32 %v3236, 4294901760
        %3238 = vmatpush1.msra.mxu0 %v3237
        %3239 = vmatprep.subr.mxu0 0.0
        %v3240 = vand.u32 %v448, 4294901760
        %v3241 = vsub.f32 %v448, %v3240
        %v3242 = vand.u32 %v3241, 4294901760
        %3243 = vmatpush1.msra.mxu0 %v3242
        %3244 = vmatprep.subr.mxu0 0.0
        %3245 = vmatpush1.msra.mxu0 0.0
        %3246 = vmatprep.subr.mxu0 0.0
        %3247 = vmatpush1.msra.mxu0 0.0
        %3248 = vmatprep.subr.mxu0 0.0
        %3249 = vmatpush1.msra.mxu0 0.0
        %3250 = vmatprep.subr.mxu0 0.0
        %3251 = vmatpush1.msra.mxu0 0.0
        %3252 = vmatprep.subr.mxu0 0.0
        %3253 = vmatpush1.msra.mxu0 0.0
        %3254 = vmatprep.subr.mxu0 0.0
        %3255 = vmatpush1.msra.mxu0 0.0
        %3256 = vmatprep.subr.mxu0 0.0
        %3257 = vmatpush1.msra.mxu0 0.0
        %3258 = vmatprep.subr.mxu0 0.0
        %3259 = vmatpush1.msra.mxu0 0.0
        %3260 = vmatprep.subr.mxu0 0.0
        %3261 = vmatpush1.msra.mxu0 0.0
        %3262 = vmatprep.subr.mxu0 0.0
        %3263 = vmatpush1.msra.mxu0 0.0
        %3264 = vmatprep.subr.mxu0 0.0
        %3265 = vmatpush1.msra.mxu0 0.0
        %3266 = vmatprep.subr.mxu0 0.0
        %3267 = vmatpush1.msra.mxu0 0.0
        %3268 = vmatprep.subr.mxu0 0.0
        %3269 = vmatpush1.msra.mxu0 0.0
        %3270 = vmatprep.subr.mxu0 0.0
        %3271 = vmatpush1.msra.mxu0 0.0
        %3272 = vmatprep.subr.mxu0 0.0
        %3273 = vmatpush1.msra.mxu0 0.0
        %3274 = vmatprep.subr.mxu0 0.0
        %3275 = vmatpush1.msra.mxu0 0.0
        %3276 = vmatprep.subr.mxu0 0.0
        %3277 = vmatpush1.msra.mxu0 0.0
        %3278 = vmatprep.subr.mxu0 0.0
        %3279 = vmatpush1.msra.mxu0 0.0
        %3280 = vmatprep.subr.mxu0 0.0
        %3281 = vmatpush1.msra.mxu0 0.0
        %3282 = vmatprep.subr.mxu0 0.0
        %3283 = vmatpush1.msra.mxu0 0.0
        %3284 = vmatprep.subr.mxu0 0.0
        %3285 = vmatpush1.msra.mxu0 0.0
        %3286 = vmatprep.subr.mxu0 0.0
        %3287 = vmatpush1.msra.mxu0 0.0
        %3288 = vmatprep.subr.mxu0 0.0
        %3289 = vmatpush1.msra.mxu0 0.0
        %3290 = vmatprep.subr.mxu0 0.0
        %3291 = vmatpush1.msra.mxu0 0.0
        %3292 = vmatprep.subr.mxu0 0.0
        %3293 = vmatpush1.msra.mxu0 0.0
        %3294 = vmatprep.subr.mxu0 0.0
        %3295 = vmatpush1.msra.mxu0 0.0
        %3296 = vmatprep.subr.mxu0 0.0
        %3297 = vmatpush1.msra.mxu0 0.0
        %3298 = vmatprep.subr.mxu0 0.0
        %3299 = vmatpush1.msra.mxu0 0.0
        %3300 = vmatprep.subr.mxu0 0.0
        %3301 = vmatpush1.msra.mxu0 0.0
        %3302 = vmatprep.subr.mxu0 0.0
        %3303 = vmatpush1.msra.mxu0 0.0
        %3304 = vmatprep.mubr.f32.mxu0 0.0
        %v3305 = vand.u32 %v2753, 4294901760
        %3306 = vmatmul.mubr.f32.gmra.mrb[0].mxu0 %v3305
        %v3307 = vpop.f32.mrb[0].mxu0
        %v3308 = vadd.f32 %v3191, %v3307
        %v3309 = vpop.f32.mrb[0].mxu0
        %3310 = vmatprep.mubr.f32.mxu0 0.0
        %v3311 = vand.u32 %v2756, 4294901760
        %3312 = vmatmul.mubr.f32.gmra.mrb[0].mxu0 %v3311
        %v3313 = vpop.f32.mrb[0].mxu0
        %v3314 = vadd.f32 %v3199, %v3313
        %v3315 = vpop.f32.mrb[0].mxu0
        %3316 = vmatprep.mubr.f32.mxu0 0.0
        %v3317 = vand.u32 %v2759, 4294901760
        %3318 = vmatmul.mubr.f32.gmra.mrb[0].mxu0 %v3317
        %v3319 = vpop.f32.mrb[0].mxu0
        %v3320 = vadd.f32 %v3207, %v3319
        %v3321 = vpop.f32.mrb[0].mxu0
        %3322 = vmatprep.mubr.f32.mxu0 0.0
        %v3323 = vand.u32 %v2762, 4294901760
        %3324 = vmatmul.mubr.f32.gmra.mrb[0].mxu0 %v3323
        %v3325 = vpop.f32.mrb[0].mxu0
        %v3326 = vadd.f32 %v3215, %v3325
        %v3327 = vpop.f32.mrb[0].mxu0
        %3328 = vmatprep.mubr.f32.mxu0 0.0
        %v3329 = vand.u32 %v2765, 4294901760
        %3330 = vmatmul.mubr.f32.gmra.mrb[0].mxu0 %v3329
        %v3331 = vpop.f32.mrb[0].mxu0
        %v3332 = vadd.f32 %v3223, %v3331
        %v3333 = vpop.f32.mrb[0].mxu0
        %3334 = vmatprep.mubr.f32.mxu0 0.0
        %v3335 = vand.u32 %v2768, 4294901760
        %3336 = vmatmul.mubr.f32.gmra.mrb[0].mxu0 %v3335
        %v3337 = vpop.f32.mrb[0].mxu0
        %v3338 = vadd.f32 %v3231, %v3337
        %v3339 = vpop.f32.mrb[0].mxu0
        %3340 = vdwg.mxu0
        %3341 = vmatprep.subr.mxu0 0.0
        %v3342 = vand.u32 %v447, 4294901760
        %3343 = vmatpush1.msra.mxu0 %v3342
        %3344 = vmatprep.subr.mxu0 0.0
        %v3345 = vand.u32 %v448, 4294901760
        %3346 = vmatpush1.msra.mxu0 %v3345
        %3347 = vmatprep.subr.mxu0 0.0
        %3348 = vmatpush1.msra.mxu0 0.0
        %3349 = vmatprep.subr.mxu0 0.0
        %3350 = vmatpush1.msra.mxu0 0.0
        %3351 = vmatprep.subr.mxu0 0.0
        %3352 = vmatpush1.msra.mxu0 0.0
        %3353 = vmatprep.subr.mxu0 0.0
        %3354 = vmatpush1.msra.mxu0 0.0
        %3355 = vmatprep.subr.mxu0 0.0
        %3356 = vmatpush1.msra.mxu0 0.0
        %3357 = vmatprep.subr.mxu0 0.0
        %3358 = vmatpush1.msra.mxu0 0.0
        %3359 = vmatprep.subr.mxu0 0.0
        %3360 = vmatpush1.msra.mxu0 0.0
        %3361 = vmatprep.subr.mxu0 0.0
        %3362 = vmatpush1.msra.mxu0 0.0
        %3363 = vmatprep.subr.mxu0 0.0
        %3364 = vmatpush1.msra.mxu0 0.0
        %3365 = vmatprep.subr.mxu0 0.0
        %3366 = vmatpush1.msra.mxu0 0.0
        %3367 = vmatprep.subr.mxu0 0.0
        %3368 = vmatpush1.msra.mxu0 0.0
        %3369 = vmatprep.subr.mxu0 0.0
        %3370 = vmatpush1.msra.mxu0 0.0
        %3371 = vmatprep.subr.mxu0 0.0
        %3372 = vmatpush1.msra.mxu0 0.0
        %3373 = vmatprep.subr.mxu0 0.0
        %3374 = vmatpush1.msra.mxu0 0.0
        %3375 = vmatprep.subr.mxu0 0.0
        %3376 = vmatpush1.msra.mxu0 0.0
        %3377 = vmatprep.subr.mxu0 0.0
        %3378 = vmatpush1.msra.mxu0 0.0
        %3379 = vmatprep.subr.mxu0 0.0
        %3380 = vmatpush1.msra.mxu0 0.0
        %3381 = vmatprep.subr.mxu0 0.0
        %3382 = vmatpush1.msra.mxu0 0.0
        %3383 = vmatprep.subr.mxu0 0.0
        %3384 = vmatpush1.msra.mxu0 0.0
        %3385 = vmatprep.subr.mxu0 0.0
        %3386 = vmatpush1.msra.mxu0 0.0
        %3387 = vmatprep.subr.mxu0 0.0
        %3388 = vmatpush1.msra.mxu0 0.0
        %3389 = vmatprep.subr.mxu0 0.0
        %3390 = vmatpush1.msra.mxu0 0.0
        %3391 = vmatprep.subr.mxu0 0.0
        %3392 = vmatpush1.msra.mxu0 0.0
        %3393 = vmatprep.subr.mxu0 0.0
        %3394 = vmatpush1.msra.mxu0 0.0
        %3395 = vmatprep.subr.mxu0 0.0
        %3396 = vmatpush1.msra.mxu0 0.0
        %3397 = vmatprep.subr.mxu0 0.0
        %3398 = vmatpush1.msra.mxu0 0.0
        %3399 = vmatprep.subr.mxu0 0.0
        %3400 = vmatpush1.msra.mxu0 0.0
        %3401 = vmatprep.subr.mxu0 0.0
        %3402 = vmatpush1.msra.mxu0 0.0
        %3403 = vmatprep.subr.mxu0 0.0
        %3404 = vmatpush1.msra.mxu0 0.0
        %3405 = vmatprep.subr.mxu0 0.0
        %3406 = vmatpush1.msra.mxu0 0.0
        %3407 = vmatprep.mubr.f32.mxu0 0.0
        %v3408 = vand.u32 %v2753, 4294901760
        %3409 = vmatmul.mubr.f32.gmra.mrb[0].mxu0 %v3408
        %v3410 = vpop.f32.mrb[0].mxu0
        %v3411 = vadd.f32 %v3308, %v3410
        %v3412 = vpop.f32.mrb[0].mxu0
        %3413 = vmatprep.mubr.f32.mxu0 0.0
        %v3414 = vand.u32 %v2756, 4294901760
        %3415 = vmatmul.mubr.f32.gmra.mrb[0].mxu0 %v3414
        %v3416 = vpop.f32.mrb[0].mxu0
        %v3417 = vadd.f32 %v3314, %v3416
        %v3418 = vpop.f32.mrb[0].mxu0
        %3419 = vmatprep.mubr.f32.mxu0 0.0
        %v3420 = vand.u32 %v2759, 4294901760
        %3421 = vmatmul.mubr.f32.gmra.mrb[0].mxu0 %v3420
        %v3422 = vpop.f32.mrb[0].mxu0
        %v3423 = vadd.f32 %v3320, %v3422
        %v3424 = vpop.f32.mrb[0].mxu0
        %3425 = vmatprep.mubr.f32.mxu0 0.0
        %v3426 = vand.u32 %v2762, 4294901760
        %3427 = vmatmul.mubr.f32.gmra.mrb[0].mxu0 %v3426
        %v3428 = vpop.f32.mrb[0].mxu0
        %v3429 = vadd.f32 %v3326, %v3428
        %v3430 = vpop.f32.mrb[0].mxu0
        %3431 = vmatprep.mubr.f32.mxu0 0.0
        %v3432 = vand.u32 %v2765, 4294901760
        %3433 = vmatmul.mubr.f32.gmra.mrb[0].mxu0 %v3432
        %v3434 = vpop.f32.mrb[0].mxu0
        %v3435 = vadd.f32 %v3332, %v3434
        %v3436 = vpop.f32.mrb[0].mxu0
        %3437 = vmatprep.mubr.f32.mxu0 0.0
        %v3438 = vand.u32 %v2768, 4294901760
        %3439 = vmatmul.mubr.f32.gmra.mrb[0].mxu0 %v3438
        %v3440 = vpop.f32.mrb[0].mxu0
        %v3441 = vadd.f32 %v3338, %v3440
        %v3442 = vpop.f32.mrb[0].mxu0
        %3443 = vdwg.mxu0
        %v3445 = vsel %vm523, %v445, 0
        %v3448 = vsel %vm523, %v446, 0
        %3450 = vmatprep.subr.mxu0 0.0
        %v3451 = vand.u32 %v3411, 4294901760
        %3452 = vmatpush1.msra.mxu0 %v3451
        %3453 = vmatprep.subr.mxu0 0.0
        %v3454 = vand.u32 %v3417, 4294901760
        %3455 = vmatpush1.msra.mxu0 %v3454
        %3456 = vmatprep.subr.mxu0 0.0
        %3457 = vmatpush1.msra.mxu0 0.0
        %3458 = vmatprep.subr.mxu0 0.0
        %3459 = vmatpush1.msra.mxu0 0.0
        %3460 = vmatprep.subr.mxu0 0.0
        %3461 = vmatpush1.msra.mxu0 0.0
        %3462 = vmatprep.subr.mxu0 0.0
        %3463 = vmatpush1.msra.mxu0 0.0
        %3464 = vmatprep.subr.mxu0 0.0
        %3465 = vmatpush1.msra.mxu0 0.0
        %3466 = vmatprep.subr.mxu0 0.0
        %3467 = vmatpush1.msra.mxu0 0.0
        %3468 = vmatprep.subr.mxu0 0.0
        %3469 = vmatpush1.msra.mxu0 0.0
        %3470 = vmatprep.subr.mxu0 0.0
        %3471 = vmatpush1.msra.mxu0 0.0
        %3472 = vmatprep.subr.mxu0 0.0
        %3473 = vmatpush1.msra.mxu0 0.0
        %3474 = vmatprep.subr.mxu0 0.0
        %3475 = vmatpush1.msra.mxu0 0.0
        %3476 = vmatprep.subr.mxu0 0.0
        %3477 = vmatpush1.msra.mxu0 0.0
        %3478 = vmatprep.subr.mxu0 0.0
        %3479 = vmatpush1.msra.mxu0 0.0
        %3480 = vmatprep.subr.mxu0 0.0
        %3481 = vmatpush1.msra.mxu0 0.0
        %3482 = vmatprep.subr.mxu0 0.0
        %3483 = vmatpush1.msra.mxu0 0.0
        %3484 = vmatprep.subr.mxu0 0.0
        %3485 = vmatpush1.msra.mxu0 0.0
        %3486 = vmatprep.subr.mxu0 0.0
        %3487 = vmatpush1.msra.mxu0 0.0
        %3488 = vmatprep.subr.mxu0 0.0
        %3489 = vmatpush1.msra.mxu0 0.0
        %3490 = vmatprep.subr.mxu0 0.0
        %3491 = vmatpush1.msra.mxu0 0.0
        %3492 = vmatprep.subr.mxu0 0.0
        %3493 = vmatpush1.msra.mxu0 0.0
        %3494 = vmatprep.subr.mxu0 0.0
        %3495 = vmatpush1.msra.mxu0 0.0
        %3496 = vmatprep.subr.mxu0 0.0
        %3497 = vmatpush1.msra.mxu0 0.0
        %3498 = vmatprep.subr.mxu0 0.0
        %3499 = vmatpush1.msra.mxu0 0.0
        %3500 = vmatprep.subr.mxu0 0.0
        %3501 = vmatpush1.msra.mxu0 0.0
        %3502 = vmatprep.subr.mxu0 0.0
        %3503 = vmatpush1.msra.mxu0 0.0
        %3504 = vmatprep.subr.mxu0 0.0
        %3505 = vmatpush1.msra.mxu0 0.0
        %3506 = vmatprep.subr.mxu0 0.0
        %3507 = vmatpush1.msra.mxu0 0.0
        %3508 = vmatprep.subr.mxu0 0.0
        %3509 = vmatpush1.msra.mxu0 0.0
        %3510 = vmatprep.subr.mxu0 0.0
        %3511 = vmatpush1.msra.mxu0 0.0
        %3512 = vmatprep.subr.mxu0 0.0
        %3513 = vmatpush1.msra.mxu0 0.0
        %3514 = vmatprep.subr.mxu0 0.0
        %3515 = vmatpush1.msra.mxu0 0.0
        %3516 = vmatprep.mubr.f32.mxu0 0.0
        %v3517 = vand.u32 %v3445, 4294901760
        %v3518 = vsub.f32 %v3445, %v3517
        %v3519 = vand.u32 %v3518, 4294901760
        %v3520 = vsub.f32 %v3518, %v3519
        %v3521 = vand.u32 %v3520, 4294901760
        %3522 = vmatmul.mubr.f32.gmra.mrb[0].mxu0 %v3521
        %v3523 = vpop.f32.mrb[0].mxu0
        %v3524 = vadd.f32 128.0, %v3523
        %v3525 = vpop.f32.mrb[0].mxu0
        %3526 = vmatprep.mubr.f32.mxu0 0.0
        %v3527 = vand.u32 %v3448, 4294901760
        %v3528 = vsub.f32 %v3448, %v3527
        %v3529 = vand.u32 %v3528, 4294901760
        %v3530 = vsub.f32 %v3528, %v3529
        %v3531 = vand.u32 %v3530, 4294901760
        %3532 = vmatmul.mubr.f32.gmra.mrb[0].mxu0 %v3531
        %v3533 = vpop.f32.mrb[0].mxu0
        %v3534 = vadd.f32 128.0, %v3533
        %v3535 = vpop.f32.mrb[0].mxu0
        %3536 = vdwg.mxu0
        %3537 = vmatprep.subr.mxu0 0.0
        %v3538 = vand.u32 %v3411, 4294901760
        %v3539 = vsub.f32 %v3411, %v3538
        %v3540 = vand.u32 %v3539, 4294901760
        %v3541 = vsub.f32 %v3539, %v3540
        %v3542 = vand.u32 %v3541, 4294901760
        %3543 = vmatpush1.msra.mxu0 %v3542
        %3544 = vmatprep.subr.mxu0 0.0
        %v3545 = vand.u32 %v3417, 4294901760
        %v3546 = vsub.f32 %v3417, %v3545
        %v3547 = vand.u32 %v3546, 4294901760
        %v3548 = vsub.f32 %v3546, %v3547
        %v3549 = vand.u32 %v3548, 4294901760
        %3550 = vmatpush1.msra.mxu0 %v3549
        %3551 = vmatprep.subr.mxu0 0.0
        %3552 = vmatpush1.msra.mxu0 0.0
        %3553 = vmatprep.subr.mxu0 0.0
        %3554 = vmatpush1.msra.mxu0 0.0
        %3555 = vmatprep.subr.mxu0 0.0
        %3556 = vmatpush1.msra.mxu0 0.0
        %3557 = vmatprep.subr.mxu0 0.0
        %3558 = vmatpush1.msra.mxu0 0.0
        %3559 = vmatprep.subr.mxu0 0.0
        %3560 = vmatpush1.msra.mxu0 0.0
        %3561 = vmatprep.subr.mxu0 0.0
        %3562 = vmatpush1.msra.mxu0 0.0
        %3563 = vmatprep.subr.mxu0 0.0
        %3564 = vmatpush1.msra.mxu0 0.0
        %3565 = vmatprep.subr.mxu0 0.0
        %3566 = vmatpush1.msra.mxu0 0.0
        %3567 = vmatprep.subr.mxu0 0.0
        %3568 = vmatpush1.msra.mxu0 0.0
        %3569 = vmatprep.subr.mxu0 0.0
        %3570 = vmatpush1.msra.mxu0 0.0
        %3571 = vmatprep.subr.mxu0 0.0
        %3572 = vmatpush1.msra.mxu0 0.0
        %3573 = vmatprep.subr.mxu0 0.0
        %3574 = vmatpush1.msra.mxu0 0.0
        %3575 = vmatprep.subr.mxu0 0.0
        %3576 = vmatpush1.msra.mxu0 0.0
        %3577 = vmatprep.subr.mxu0 0.0
        %3578 = vmatpush1.msra.mxu0 0.0
        %3579 = vmatprep.subr.mxu0 0.0
        %3580 = vmatpush1.msra.mxu0 0.0
        %3581 = vmatprep.subr.mxu0 0.0
        %3582 = vmatpush1.msra.mxu0 0.0
        %3583 = vmatprep.subr.mxu0 0.0
        %3584 = vmatpush1.msra.mxu0 0.0
        %3585 = vmatprep.subr.mxu0 0.0
        %3586 = vmatpush1.msra.mxu0 0.0
        %3587 = vmatprep.subr.mxu0 0.0
        %3588 = vmatpush1.msra.mxu0 0.0
        %3589 = vmatprep.subr.mxu0 0.0
        %3590 = vmatpush1.msra.mxu0 0.0
        %3591 = vmatprep.subr.mxu0 0.0
        %3592 = vmatpush1.msra.mxu0 0.0
        %3593 = vmatprep.subr.mxu0 0.0
        %3594 = vmatpush1.msra.mxu0 0.0
        %3595 = vmatprep.subr.mxu0 0.0
        %3596 = vmatpush1.msra.mxu0 0.0
        %3597 = vmatprep.subr.mxu0 0.0
        %3598 = vmatpush1.msra.mxu0 0.0
        %3599 = vmatprep.subr.mxu0 0.0
        %3600 = vmatpush1.msra.mxu0 0.0
        %3601 = vmatprep.subr.mxu0 0.0
        %3602 = vmatpush1.msra.mxu0 0.0
        %3603 = vmatprep.subr.mxu0 0.0
        %3604 = vmatpush1.msra.mxu0 0.0
        %3605 = vmatprep.subr.mxu0 0.0
        %3606 = vmatpush1.msra.mxu0 0.0
        %3607 = vmatprep.subr.mxu0 0.0
        %3608 = vmatpush1.msra.mxu0 0.0
        %3609 = vmatprep.subr.mxu0 0.0
        %3610 = vmatpush1.msra.mxu0 0.0
        %3611 = vmatprep.mubr.f32.mxu0 0.0
        %v3612 = vand.u32 %v3445, 4294901760
        %3613 = vmatmul.mubr.f32.gmra.mrb[0].mxu0 %v3612
        %v3614 = vpop.f32.mrb[0].mxu0
        %v3615 = vadd.f32 %v3524, %v3614
        %v3616 = vpop.f32.mrb[0].mxu0
        %3617 = vmatprep.mubr.f32.mxu0 0.0
        %v3618 = vand.u32 %v3448, 4294901760
        %3619 = vmatmul.mubr.f32.gmra.mrb[0].mxu0 %v3618
        %v3620 = vpop.f32.mrb[0].mxu0
        %v3621 = vadd.f32 %v3534, %v3620
        %v3622 = vpop.f32.mrb[0].mxu0
        %3623 = vdwg.mxu0
        %3624 = vmatprep.subr.mxu0 0.0
        %v3625 = vand.u32 %v3411, 4294901760
        %v3626 = vsub.f32 %v3411, %v3625
        %3627 = vmatpush1.msra.mxu0 %v3626
        %3628 = vmatprep.subr.mxu0 0.0
        %v3629 = vand.u32 %v3417, 4294901760
        %v3630 = vsub.f32 %v3417, %v3629
        %3631 = vmatpush1.msra.mxu0 %v3630
        %3632 = vmatprep.subr.mxu0 0.0
        %3633 = vmatpush1.msra.mxu0 0.0
        %3634 = vmatprep.subr.mxu0 0.0
        %3635 = vmatpush1.msra.mxu0 0.0
        %3636 = vmatprep.subr.mxu0 0.0
        %3637 = vmatpush1.msra.mxu0 0.0
        %3638 = vmatprep.subr.mxu0 0.0
        %3639 = vmatpush1.msra.mxu0 0.0
        %3640 = vmatprep.subr.mxu0 0.0
        %3641 = vmatpush1.msra.mxu0 0.0
        %3642 = vmatprep.subr.mxu0 0.0
        %3643 = vmatpush1.msra.mxu0 0.0
        %3644 = vmatprep.subr.mxu0 0.0
        %3645 = vmatpush1.msra.mxu0 0.0
        %3646 = vmatprep.subr.mxu0 0.0
        %3647 = vmatpush1.msra.mxu0 0.0
        %3648 = vmatprep.subr.mxu0 0.0
        %3649 = vmatpush1.msra.mxu0 0.0
        %3650 = vmatprep.subr.mxu0 0.0
        %3651 = vmatpush1.msra.mxu0 0.0
        %3652 = vmatprep.subr.mxu0 0.0
        %3653 = vmatpush1.msra.mxu0 0.0
        %3654 = vmatprep.subr.mxu0 0.0
        %3655 = vmatpush1.msra.mxu0 0.0
        %3656 = vmatprep.subr.mxu0 0.0
        %3657 = vmatpush1.msra.mxu0 0.0
        %3658 = vmatprep.subr.mxu0 0.0
        %3659 = vmatpush1.msra.mxu0 0.0
        %3660 = vmatprep.subr.mxu0 0.0
        %3661 = vmatpush1.msra.mxu0 0.0
        %3662 = vmatprep.subr.mxu0 0.0
        %3663 = vmatpush1.msra.mxu0 0.0
        %3664 = vmatprep.subr.mxu0 0.0
        %3665 = vmatpush1.msra.mxu0 0.0
        %3666 = vmatprep.subr.mxu0 0.0
        %3667 = vmatpush1.msra.mxu0 0.0
        %3668 = vmatprep.subr.mxu0 0.0
        %3669 = vmatpush1.msra.mxu0 0.0
        %3670 = vmatprep.subr.mxu0 0.0
        %3671 = vmatpush1.msra.mxu0 0.0
        %3672 = vmatprep.subr.mxu0 0.0
        %3673 = vmatpush1.msra.mxu0 0.0
        %3674 = vmatprep.subr.mxu0 0.0
        %3675 = vmatpush1.msra.mxu0 0.0
        %3676 = vmatprep.subr.mxu0 0.0
        %3677 = vmatpush1.msra.mxu0 0.0
        %3678 = vmatprep.subr.mxu0 0.0
        %3679 = vmatpush1.msra.mxu0 0.0
        %3680 = vmatprep.subr.mxu0 0.0
        %3681 = vmatpush1.msra.mxu0 0.0
        %3682 = vmatprep.subr.mxu0 0.0
        %3683 = vmatpush1.msra.mxu0 0.0
        %3684 = vmatprep.subr.mxu0 0.0
        %3685 = vmatpush1.msra.mxu0 0.0
        %3686 = vmatprep.subr.mxu0 0.0
        %3687 = vmatpush1.msra.mxu0 0.0
        %3688 = vmatprep.subr.mxu0 0.0
        %3689 = vmatpush1.msra.mxu0 0.0
        %3690 = vmatprep.subr.mxu0 0.0
        %3691 = vmatpush1.msra.mxu0 0.0
        %3692 = vmatprep.mubr.f32.mxu0 0.0
        %v3693 = vand.u32 %v3445, 4294901760
        %v3694 = vsub.f32 %v3445, %v3693
        %3695 = vmatmul.mubr.f32.gmra.mrb[0].mxu0 %v3694
        %v3696 = vpop.f32.mrb[0].mxu0
        %v3697 = vadd.f32 %v3615, %v3696
        %v3698 = vpop.f32.mrb[0].mxu0
        %3699 = vmatprep.mubr.f32.mxu0 0.0
        %v3700 = vand.u32 %v3448, 4294901760
        %v3701 = vsub.f32 %v3448, %v3700
        %3702 = vmatmul.mubr.f32.gmra.mrb[0].mxu0 %v3701
        %v3703 = vpop.f32.mrb[0].mxu0
        %v3704 = vadd.f32 %v3621, %v3703
        %v3705 = vpop.f32.mrb[0].mxu0
        %3706 = vdwg.mxu0
        %3707 = vmatprep.subr.mxu0 0.0
        %v3708 = vand.u32 %v3411, 4294901760
        %3709 = vmatpush1.msra.mxu0 %v3708
        %3710 = vmatprep.subr.mxu0 0.0
        %v3711 = vand.u32 %v3417, 4294901760
        %3712 = vmatpush1.msra.mxu0 %v3711
        %3713 = vmatprep.subr.mxu0 0.0
        %3714 = vmatpush1.msra.mxu0 0.0
        %3715 = vmatprep.subr.mxu0 0.0
        %3716 = vmatpush1.msra.mxu0 0.0
        %3717 = vmatprep.subr.mxu0 0.0
        %3718 = vmatpush1.msra.mxu0 0.0
        %3719 = vmatprep.subr.mxu0 0.0
        %3720 = vmatpush1.msra.mxu0 0.0
        %3721 = vmatprep.subr.mxu0 0.0
        %3722 = vmatpush1.msra.mxu0 0.0
        %3723 = vmatprep.subr.mxu0 0.0
        %3724 = vmatpush1.msra.mxu0 0.0
        %3725 = vmatprep.subr.mxu0 0.0
        %3726 = vmatpush1.msra.mxu0 0.0
        %3727 = vmatprep.subr.mxu0 0.0
        %3728 = vmatpush1.msra.mxu0 0.0
        %3729 = vmatprep.subr.mxu0 0.0
        %3730 = vmatpush1.msra.mxu0 0.0
        %3731 = vmatprep.subr.mxu0 0.0
        %3732 = vmatpush1.msra.mxu0 0.0
        %3733 = vmatprep.subr.mxu0 0.0
        %3734 = vmatpush1.msra.mxu0 0.0
        %3735 = vmatprep.subr.mxu0 0.0
        %3736 = vmatpush1.msra.mxu0 0.0
        %3737 = vmatprep.subr.mxu0 0.0
        %3738 = vmatpush1.msra.mxu0 0.0
        %3739 = vmatprep.subr.mxu0 0.0
        %3740 = vmatpush1.msra.mxu0 0.0
        %3741 = vmatprep.subr.mxu0 0.0
        %3742 = vmatpush1.msra.mxu0 0.0
        %3743 = vmatprep.subr.mxu0 0.0
        %3744 = vmatpush1.msra.mxu0 0.0
        %3745 = vmatprep.subr.mxu0 0.0
        %3746 = vmatpush1.msra.mxu0 0.0
        %3747 = vmatprep.subr.mxu0 0.0
        %3748 = vmatpush1.msra.mxu0 0.0
        %3749 = vmatprep.subr.mxu0 0.0
        %3750 = vmatpush1.msra.mxu0 0.0
        %3751 = vmatprep.subr.mxu0 0.0
        %3752 = vmatpush1.msra.mxu0 0.0
        %3753 = vmatprep.subr.mxu0 0.0
        %3754 = vmatpush1.msra.mxu0 0.0
        %3755 = vmatprep.subr.mxu0 0.0
        %3756 = vmatpush1.msra.mxu0 0.0
        %3757 = vmatprep.subr.mxu0 0.0
        %3758 = vmatpush1.msra.mxu0 0.0
        %3759 = vmatprep.subr.mxu0 0.0
        %3760 = vmatpush1.msra.mxu0 0.0
        %3761 = vmatprep.subr.mxu0 0.0
        %3762 = vmatpush1.msra.mxu0 0.0
        %3763 = vmatprep.subr.mxu0 0.0
        %3764 = vmatpush1.msra.mxu0 0.0
        %3765 = vmatprep.subr.mxu0 0.0
        %3766 = vmatpush1.msra.mxu0 0.0
        %3767 = vmatprep.subr.mxu0 0.0
        %3768 = vmatpush1.msra.mxu0 0.0
        %3769 = vmatprep.subr.mxu0 0.0
        %3770 = vmatpush1.msra.mxu0 0.0
        %3771 = vmatprep.subr.mxu0 0.0
        %3772 = vmatpush1.msra.mxu0 0.0
        %3773 = vmatprep.mubr.f32.mxu0 0.0
        %v3774 = vand.u32 %v3445, 4294901760
        %v3775 = vsub.f32 %v3445, %v3774
        %v3776 = vand.u32 %v3775, 4294901760
        %3777 = vmatmul.mubr.f32.gmra.mrb[0].mxu0 %v3776
        %v3778 = vpop.f32.mrb[0].mxu0
        %v3779 = vadd.f32 %v3697, %v3778
        %v3780 = vpop.f32.mrb[0].mxu0
        %3781 = vmatprep.mubr.f32.mxu0 0.0
        %v3782 = vand.u32 %v3448, 4294901760
        %v3783 = vsub.f32 %v3448, %v3782
        %v3784 = vand.u32 %v3783, 4294901760
        %3785 = vmatmul.mubr.f32.gmra.mrb[0].mxu0 %v3784
        %v3786 = vpop.f32.mrb[0].mxu0
        %v3787 = vadd.f32 %v3704, %v3786
        %v3788 = vpop.f32.mrb[0].mxu0
        %3789 = vdwg.mxu0
        %3790 = vmatprep.subr.mxu0 0.0
        %v3791 = vand.u32 %v3411, 4294901760
        %v3792 = vsub.f32 %v3411, %v3791
        %v3793 = vand.u32 %v3792, 4294901760
        %3794 = vmatpush1.msra.mxu0 %v3793
        %3795 = vmatprep.subr.mxu0 0.0
        %v3796 = vand.u32 %v3417, 4294901760
        %v3797 = vsub.f32 %v3417, %v3796
        %v3798 = vand.u32 %v3797, 4294901760
        %3799 = vmatpush1.msra.mxu0 %v3798
        %3800 = vmatprep.subr.mxu0 0.0
        %3801 = vmatpush1.msra.mxu0 0.0
        %3802 = vmatprep.subr.mxu0 0.0
        %3803 = vmatpush1.msra.mxu0 0.0
        %3804 = vmatprep.subr.mxu0 0.0
        %3805 = vmatpush1.msra.mxu0 0.0
        %3806 = vmatprep.subr.mxu0 0.0
        %3807 = vmatpush1.msra.mxu0 0.0
        %3808 = vmatprep.subr.mxu0 0.0
        %3809 = vmatpush1.msra.mxu0 0.0
        %3810 = vmatprep.subr.mxu0 0.0
        %3811 = vmatpush1.msra.mxu0 0.0
        %3812 = vmatprep.subr.mxu0 0.0
        %3813 = vmatpush1.msra.mxu0 0.0
        %3814 = vmatprep.subr.mxu0 0.0
        %3815 = vmatpush1.msra.mxu0 0.0
        %3816 = vmatprep.subr.mxu0 0.0
        %3817 = vmatpush1.msra.mxu0 0.0
        %3818 = vmatprep.subr.mxu0 0.0
        %3819 = vmatpush1.msra.mxu0 0.0
        %3820 = vmatprep.subr.mxu0 0.0
        %3821 = vmatpush1.msra.mxu0 0.0
        %3822 = vmatprep.subr.mxu0 0.0
        %3823 = vmatpush1.msra.mxu0 0.0
        %3824 = vmatprep.subr.mxu0 0.0
        %3825 = vmatpush1.msra.mxu0 0.0
        %3826 = vmatprep.subr.mxu0 0.0
        %3827 = vmatpush1.msra.mxu0 0.0
        %3828 = vmatprep.subr.mxu0 0.0
        %3829 = vmatpush1.msra.mxu0 0.0
        %3830 = vmatprep.subr.mxu0 0.0
        %3831 = vmatpush1.msra.mxu0 0.0
        %3832 = vmatprep.subr.mxu0 0.0
        %3833 = vmatpush1.msra.mxu0 0.0
        %3834 = vmatprep.subr.mxu0 0.0
        %3835 = vmatpush1.msra.mxu0 0.0
        %3836 = vmatprep.subr.mxu0 0.0
        %3837 = vmatpush1.msra.mxu0 0.0
        %3838 = vmatprep.subr.mxu0 0.0
        %3839 = vmatpush1.msra.mxu0 0.0
        %3840 = vmatprep.subr.mxu0 0.0
        %3841 = vmatpush1.msra.mxu0 0.0
        %3842 = vmatprep.subr.mxu0 0.0
        %3843 = vmatpush1.msra.mxu0 0.0
        %3844 = vmatprep.subr.mxu0 0.0
        %3845 = vmatpush1.msra.mxu0 0.0
        %3846 = vmatprep.subr.mxu0 0.0
        %3847 = vmatpush1.msra.mxu0 0.0
        %3848 = vmatprep.subr.mxu0 0.0
        %3849 = vmatpush1.msra.mxu0 0.0
        %3850 = vmatprep.subr.mxu0 0.0
        %3851 = vmatpush1.msra.mxu0 0.0
        %3852 = vmatprep.subr.mxu0 0.0
        %3853 = vmatpush1.msra.mxu0 0.0
        %3854 = vmatprep.subr.mxu0 0.0
        %3855 = vmatpush1.msra.mxu0 0.0
        %3856 = vmatprep.subr.mxu0 0.0
        %3857 = vmatpush1.msra.mxu0 0.0
        %3858 = vmatprep.subr.mxu0 0.0
        %3859 = vmatpush1.msra.mxu0 0.0
        %3860 = vmatprep.mubr.f32.mxu0 0.0
        %v3861 = vand.u32 %v3445, 4294901760
        %3862 = vmatmul.mubr.f32.gmra.mrb[0].mxu0 %v3861
        %v3863 = vpop.f32.mrb[0].mxu0
        %v3864 = vadd.f32 %v3779, %v3863
        %v3865 = vpop.f32.mrb[0].mxu0
        %3866 = vmatprep.mubr.f32.mxu0 0.0
        %v3867 = vand.u32 %v3448, 4294901760
        %3868 = vmatmul.mubr.f32.gmra.mrb[0].mxu0 %v3867
        %v3869 = vpop.f32.mrb[0].mxu0
        %v3870 = vadd.f32 %v3787, %v3869
        %v3871 = vpop.f32.mrb[0].mxu0
        %3872 = vdwg.mxu0
        %3873 = vmatprep.subr.mxu0 0.0
        %v3874 = vand.u32 %v3411, 4294901760
        %3875 = vmatpush1.msra.mxu0 %v3874
        %3876 = vmatprep.subr.mxu0 0.0
        %v3877 = vand.u32 %v3417, 4294901760
        %3878 = vmatpush1.msra.mxu0 %v3877
        %3879 = vmatprep.subr.mxu0 0.0
        %3880 = vmatpush1.msra.mxu0 0.0
        %3881 = vmatprep.subr.mxu0 0.0
        %3882 = vmatpush1.msra.mxu0 0.0
        %3883 = vmatprep.subr.mxu0 0.0
        %3884 = vmatpush1.msra.mxu0 0.0
        %3885 = vmatprep.subr.mxu0 0.0
        %3886 = vmatpush1.msra.mxu0 0.0
        %3887 = vmatprep.subr.mxu0 0.0
        %3888 = vmatpush1.msra.mxu0 0.0
        %3889 = vmatprep.subr.mxu0 0.0
        %3890 = vmatpush1.msra.mxu0 0.0
        %3891 = vmatprep.subr.mxu0 0.0
        %3892 = vmatpush1.msra.mxu0 0.0
        %3893 = vmatprep.subr.mxu0 0.0
        %3894 = vmatpush1.msra.mxu0 0.0
        %3895 = vmatprep.subr.mxu0 0.0
        %3896 = vmatpush1.msra.mxu0 0.0
        %3897 = vmatprep.subr.mxu0 0.0
        %3898 = vmatpush1.msra.mxu0 0.0
        %3899 = vmatprep.subr.mxu0 0.0
        %3900 = vmatpush1.msra.mxu0 0.0
        %3901 = vmatprep.subr.mxu0 0.0
        %3902 = vmatpush1.msra.mxu0 0.0
        %3903 = vmatprep.subr.mxu0 0.0
        %3904 = vmatpush1.msra.mxu0 0.0
        %3905 = vmatprep.subr.mxu0 0.0
        %3906 = vmatpush1.msra.mxu0 0.0
        %3907 = vmatprep.subr.mxu0 0.0
        %3908 = vmatpush1.msra.mxu0 0.0
        %3909 = vmatprep.subr.mxu0 0.0
        %3910 = vmatpush1.msra.mxu0 0.0
        %3911 = vmatprep.subr.mxu0 0.0
        %3912 = vmatpush1.msra.mxu0 0.0
        %3913 = vmatprep.subr.mxu0 0.0
        %3914 = vmatpush1.msra.mxu0 0.0
        %3915 = vmatprep.subr.mxu0 0.0
        %3916 = vmatpush1.msra.mxu0 0.0
        %3917 = vmatprep.subr.mxu0 0.0
        %3918 = vmatpush1.msra.mxu0 0.0
        %3919 = vmatprep.subr.mxu0 0.0
        %3920 = vmatpush1.msra.mxu0 0.0
        %3921 = vmatprep.subr.mxu0 0.0
        %3922 = vmatpush1.msra.mxu0 0.0
        %3923 = vmatprep.subr.mxu0 0.0
        %3924 = vmatpush1.msra.mxu0 0.0
        %3925 = vmatprep.subr.mxu0 0.0
        %3926 = vmatpush1.msra.mxu0 0.0
        %3927 = vmatprep.subr.mxu0 0.0
        %3928 = vmatpush1.msra.mxu0 0.0
        %3929 = vmatprep.subr.mxu0 0.0
        %3930 = vmatpush1.msra.mxu0 0.0
        %3931 = vmatprep.subr.mxu0 0.0
        %3932 = vmatpush1.msra.mxu0 0.0
        %3933 = vmatprep.subr.mxu0 0.0
        %3934 = vmatpush1.msra.mxu0 0.0
        %3935 = vmatprep.subr.mxu0 0.0
        %3936 = vmatpush1.msra.mxu0 0.0
        %3937 = vmatprep.subr.mxu0 0.0
        %3938 = vmatpush1.msra.mxu0 0.0
        %3939 = vmatprep.mubr.f32.mxu0 0.0
        %v3940 = vand.u32 %v3445, 4294901760
        %3941 = vmatmul.mubr.f32.gmra.mrb[0].mxu0 %v3940
        %v3942 = vpop.f32.mrb[0].mxu0
        %v3943 = vadd.f32 %v3864, %v3942
        %v3944 = vpop.f32.mrb[0].mxu0
        %3945 = vmatprep.mubr.f32.mxu0 0.0
        %v3946 = vand.u32 %v3448, 4294901760
        %3947 = vmatmul.mubr.f32.gmra.mrb[0].mxu0 %v3946
        %v3948 = vpop.f32.mrb[0].mxu0
        %v3949 = vadd.f32 %v3870, %v3948
        %v3950 = vpop.f32.mrb[0].mxu0
        %3951 = vdwg.mxu0
        %3952 = vmatprep.subr.mxu0 0.0
        %v3953 = vand.u32 %v3423, 4294901760
        %3954 = vmatpush1.msra.mxu0 %v3953
        %3955 = vmatprep.subr.mxu0 0.0
        %v3956 = vand.u32 %v3429, 4294901760
        %3957 = vmatpush1.msra.mxu0 %v3956
        %3958 = vmatprep.subr.mxu0 0.0
        %3959 = vmatpush1.msra.mxu0 0.0
        %3960 = vmatprep.subr.mxu0 0.0
        %3961 = vmatpush1.msra.mxu0 0.0
        %3962 = vmatprep.subr.mxu0 0.0
        %3963 = vmatpush1.msra.mxu0 0.0
        %3964 = vmatprep.subr.mxu0 0.0
        %3965 = vmatpush1.msra.mxu0 0.0
        %3966 = vmatprep.subr.mxu0 0.0
        %3967 = vmatpush1.msra.mxu0 0.0
        %3968 = vmatprep.subr.mxu0 0.0
        %3969 = vmatpush1.msra.mxu0 0.0
        %3970 = vmatprep.subr.mxu0 0.0
        %3971 = vmatpush1.msra.mxu0 0.0
        %3972 = vmatprep.subr.mxu0 0.0
        %3973 = vmatpush1.msra.mxu0 0.0
        %3974 = vmatprep.subr.mxu0 0.0
        %3975 = vmatpush1.msra.mxu0 0.0
        %3976 = vmatprep.subr.mxu0 0.0
        %3977 = vmatpush1.msra.mxu0 0.0
        %3978 = vmatprep.subr.mxu0 0.0
        %3979 = vmatpush1.msra.mxu0 0.0
        %3980 = vmatprep.subr.mxu0 0.0
        %3981 = vmatpush1.msra.mxu0 0.0
        %3982 = vmatprep.subr.mxu0 0.0
        %3983 = vmatpush1.msra.mxu0 0.0
        %3984 = vmatprep.subr.mxu0 0.0
        %3985 = vmatpush1.msra.mxu0 0.0
        %3986 = vmatprep.subr.mxu0 0.0
        %3987 = vmatpush1.msra.mxu0 0.0
        %3988 = vmatprep.subr.mxu0 0.0
        %3989 = vmatpush1.msra.mxu0 0.0
        %3990 = vmatprep.subr.mxu0 0.0
        %3991 = vmatpush1.msra.mxu0 0.0
        %3992 = vmatprep.subr.mxu0 0.0
        %3993 = vmatpush1.msra.mxu0 0.0
        %3994 = vmatprep.subr.mxu0 0.0
        %3995 = vmatpush1.msra.mxu0 0.0
        %3996 = vmatprep.subr.mxu0 0.0
        %3997 = vmatpush1.msra.mxu0 0.0
        %3998 = vmatprep.subr.mxu0 0.0
        %3999 = vmatpush1.msra.mxu0 0.0
        %4000 = vmatprep.subr.mxu0 0.0
        %4001 = vmatpush1.msra.mxu0 0.0
        %4002 = vmatprep.subr.mxu0 0.0
        %4003 = vmatpush1.msra.mxu0 0.0
        %4004 = vmatprep.subr.mxu0 0.0
        %4005 = vmatpush1.msra.mxu0 0.0
        %4006 = vmatprep.subr.mxu0 0.0
        %4007 = vmatpush1.msra.mxu0 0.0
        %4008 = vmatprep.subr.mxu0 0.0
        %4009 = vmatpush1.msra.mxu0 0.0
        %4010 = vmatprep.subr.mxu0 0.0
        %4011 = vmatpush1.msra.mxu0 0.0
        %4012 = vmatprep.subr.mxu0 0.0
        %4013 = vmatpush1.msra.mxu0 0.0
        %4014 = vmatprep.subr.mxu0 0.0
        %4015 = vmatpush1.msra.mxu0 0.0
        %4016 = vmatprep.subr.mxu0 0.0
        %4017 = vmatpush1.msra.mxu0 0.0
        %4018 = vmatprep.mubr.f32.mxu0 0.0
        %v4019 = vand.u32 %v3445, 4294901760
        %v4020 = vsub.f32 %v3445, %v4019
        %v4021 = vand.u32 %v4020, 4294901760
        %v4022 = vsub.f32 %v4020, %v4021
        %v4023 = vand.u32 %v4022, 4294901760
        %4024 = vmatmul.mubr.f32.gmra.mrb[0].mxu0 %v4023
        %v4025 = vpop.f32.mrb[0].mxu0
        %v4026 = vadd.f32 0.0, %v4025
        %v4027 = vpop.f32.mrb[0].mxu0
        %4028 = vmatprep.mubr.f32.mxu0 0.0
        %v4029 = vand.u32 %v3448, 4294901760
        %v4030 = vsub.f32 %v3448, %v4029
        %v4031 = vand.u32 %v4030, 4294901760
        %v4032 = vsub.f32 %v4030, %v4031
        %v4033 = vand.u32 %v4032, 4294901760
        %4034 = vmatmul.mubr.f32.gmra.mrb[0].mxu0 %v4033
        %v4035 = vpop.f32.mrb[0].mxu0
        %v4036 = vadd.f32 0.0, %v4035
        %v4037 = vpop.f32.mrb[0].mxu0
        %4038 = vdwg.mxu0
        %4039 = vmatprep.subr.mxu0 0.0
        %v4040 = vand.u32 %v3423, 4294901760
        %v4041 = vsub.f32 %v3423, %v4040
        %v4042 = vand.u32 %v4041, 4294901760
        %v4043 = vsub.f32 %v4041, %v4042
        %v4044 = vand.u32 %v4043, 4294901760
        %4045 = vmatpush1.msra.mxu0 %v4044
        %4046 = vmatprep.subr.mxu0 0.0
        %v4047 = vand.u32 %v3429, 4294901760
        %v4048 = vsub.f32 %v3429, %v4047
        %v4049 = vand.u32 %v4048, 4294901760
        %v4050 = vsub.f32 %v4048, %v4049
        %v4051 = vand.u32 %v4050, 4294901760
        %4052 = vmatpush1.msra.mxu0 %v4051
        %4053 = vmatprep.subr.mxu0 0.0
        %4054 = vmatpush1.msra.mxu0 0.0
        %4055 = vmatprep.subr.mxu0 0.0
        %4056 = vmatpush1.msra.mxu0 0.0
        %4057 = vmatprep.subr.mxu0 0.0
        %4058 = vmatpush1.msra.mxu0 0.0
        %4059 = vmatprep.subr.mxu0 0.0
        %4060 = vmatpush1.msra.mxu0 0.0
        %4061 = vmatprep.subr.mxu0 0.0
        %4062 = vmatpush1.msra.mxu0 0.0
        %4063 = vmatprep.subr.mxu0 0.0
        %4064 = vmatpush1.msra.mxu0 0.0
        %4065 = vmatprep.subr.mxu0 0.0
        %4066 = vmatpush1.msra.mxu0 0.0
        %4067 = vmatprep.subr.mxu0 0.0
        %4068 = vmatpush1.msra.mxu0 0.0
        %4069 = vmatprep.subr.mxu0 0.0
        %4070 = vmatpush1.msra.mxu0 0.0
        %4071 = vmatprep.subr.mxu0 0.0
        %4072 = vmatpush1.msra.mxu0 0.0
        %4073 = vmatprep.subr.mxu0 0.0
        %4074 = vmatpush1.msra.mxu0 0.0
        %4075 = vmatprep.subr.mxu0 0.0
        %4076 = vmatpush1.msra.mxu0 0.0
        %4077 = vmatprep.subr.mxu0 0.0
        %4078 = vmatpush1.msra.mxu0 0.0
        %4079 = vmatprep.subr.mxu0 0.0
        %4080 = vmatpush1.msra.mxu0 0.0
        %4081 = vmatprep.subr.mxu0 0.0
        %4082 = vmatpush1.msra.mxu0 0.0
        %4083 = vmatprep.subr.mxu0 0.0
        %4084 = vmatpush1.msra.mxu0 0.0
        %4085 = vmatprep.subr.mxu0 0.0
        %4086 = vmatpush1.msra.mxu0 0.0
        %4087 = vmatprep.subr.mxu0 0.0
        %4088 = vmatpush1.msra.mxu0 0.0
        %4089 = vmatprep.subr.mxu0 0.0
        %4090 = vmatpush1.msra.mxu0 0.0
        %4091 = vmatprep.subr.mxu0 0.0
        %4092 = vmatpush1.msra.mxu0 0.0
        %4093 = vmatprep.subr.mxu0 0.0
        %4094 = vmatpush1.msra.mxu0 0.0
        %4095 = vmatprep.subr.mxu0 0.0
        %4096 = vmatpush1.msra.mxu0 0.0
        %4097 = vmatprep.subr.mxu0 0.0
        %4098 = vmatpush1.msra.mxu0 0.0
        %4099 = vmatprep.subr.mxu0 0.0
        %4100 = vmatpush1.msra.mxu0 0.0
        %4101 = vmatprep.subr.mxu0 0.0
        %4102 = vmatpush1.msra.mxu0 0.0
        %4103 = vmatprep.subr.mxu0 0.0
        %4104 = vmatpush1.msra.mxu0 0.0
        %4105 = vmatprep.subr.mxu0 0.0
        %4106 = vmatpush1.msra.mxu0 0.0
        %4107 = vmatprep.subr.mxu0 0.0
        %4108 = vmatpush1.msra.mxu0 0.0
        %4109 = vmatprep.subr.mxu0 0.0
        %4110 = vmatpush1.msra.mxu0 0.0
        %4111 = vmatprep.subr.mxu0 0.0
        %4112 = vmatpush1.msra.mxu0 0.0
        %4113 = vmatprep.mubr.f32.mxu0 0.0
        %v4114 = vand.u32 %v3445, 4294901760
        %4115 = vmatmul.mubr.f32.gmra.mrb[0].mxu0 %v4114
        %v4116 = vpop.f32.mrb[0].mxu0
        %v4117 = vadd.f32 %v4026, %v4116
        %v4118 = vpop.f32.mrb[0].mxu0
        %4119 = vmatprep.mubr.f32.mxu0 0.0
        %v4120 = vand.u32 %v3448, 4294901760
        %4121 = vmatmul.mubr.f32.gmra.mrb[0].mxu0 %v4120
        %v4122 = vpop.f32.mrb[0].mxu0
        %v4123 = vadd.f32 %v4036, %v4122
        %v4124 = vpop.f32.mrb[0].mxu0
        %4125 = vdwg.mxu0
        %4126 = vmatprep.subr.mxu0 0.0
        %v4127 = vand.u32 %v3423, 4294901760
        %v4128 = vsub.f32 %v3423, %v4127
        %4129 = vmatpush1.msra.mxu0 %v4128
        %4130 = vmatprep.subr.mxu0 0.0
        %v4131 = vand.u32 %v3429, 4294901760
        %v4132 = vsub.f32 %v3429, %v4131
        %4133 = vmatpush1.msra.mxu0 %v4132
        %4134 = vmatprep.subr.mxu0 0.0
        %4135 = vmatpush1.msra.mxu0 0.0
        %4136 = vmatprep.subr.mxu0 0.0
        %4137 = vmatpush1.msra.mxu0 0.0
        %4138 = vmatprep.subr.mxu0 0.0
        %4139 = vmatpush1.msra.mxu0 0.0
        %4140 = vmatprep.subr.mxu0 0.0
        %4141 = vmatpush1.msra.mxu0 0.0
        %4142 = vmatprep.subr.mxu0 0.0
        %4143 = vmatpush1.msra.mxu0 0.0
        %4144 = vmatprep.subr.mxu0 0.0
        %4145 = vmatpush1.msra.mxu0 0.0
        %4146 = vmatprep.subr.mxu0 0.0
        %4147 = vmatpush1.msra.mxu0 0.0
        %4148 = vmatprep.subr.mxu0 0.0
        %4149 = vmatpush1.msra.mxu0 0.0
        %4150 = vmatprep.subr.mxu0 0.0
        %4151 = vmatpush1.msra.mxu0 0.0
        %4152 = vmatprep.subr.mxu0 0.0
        %4153 = vmatpush1.msra.mxu0 0.0
        %4154 = vmatprep.subr.mxu0 0.0
        %4155 = vmatpush1.msra.mxu0 0.0
        %4156 = vmatprep.subr.mxu0 0.0
        %4157 = vmatpush1.msra.mxu0 0.0
        %4158 = vmatprep.subr.mxu0 0.0
        %4159 = vmatpush1.msra.mxu0 0.0
        %4160 = vmatprep.subr.mxu0 0.0
        %4161 = vmatpush1.msra.mxu0 0.0
        %4162 = vmatprep.subr.mxu0 0.0
        %4163 = vmatpush1.msra.mxu0 0.0
        %4164 = vmatprep.subr.mxu0 0.0
        %4165 = vmatpush1.msra.mxu0 0.0
        %4166 = vmatprep.subr.mxu0 0.0
        %4167 = vmatpush1.msra.mxu0 0.0
        %4168 = vmatprep.subr.mxu0 0.0
        %4169 = vmatpush1.msra.mxu0 0.0
        %4170 = vmatprep.subr.mxu0 0.0
        %4171 = vmatpush1.msra.mxu0 0.0
        %4172 = vmatprep.subr.mxu0 0.0
        %4173 = vmatpush1.msra.mxu0 0.0
        %4174 = vmatprep.subr.mxu0 0.0
        %4175 = vmatpush1.msra.mxu0 0.0
        %4176 = vmatprep.subr.mxu0 0.0
        %4177 = vmatpush1.msra.mxu0 0.0
        %4178 = vmatprep.subr.mxu0 0.0
        %4179 = vmatpush1.msra.mxu0 0.0
        %4180 = vmatprep.subr.mxu0 0.0
        %4181 = vmatpush1.msra.mxu0 0.0
        %4182 = vmatprep.subr.mxu0 0.0
        %4183 = vmatpush1.msra.mxu0 0.0
        %4184 = vmatprep.subr.mxu0 0.0
        %4185 = vmatpush1.msra.mxu0 0.0
        %4186 = vmatprep.subr.mxu0 0.0
        %4187 = vmatpush1.msra.mxu0 0.0
        %4188 = vmatprep.subr.mxu0 0.0
        %4189 = vmatpush1.msra.mxu0 0.0
        %4190 = vmatprep.subr.mxu0 0.0
        %4191 = vmatpush1.msra.mxu0 0.0
        %4192 = vmatprep.subr.mxu0 0.0
        %4193 = vmatpush1.msra.mxu0 0.0
        %4194 = vmatprep.mubr.f32.mxu0 0.0
        %v4195 = vand.u32 %v3445, 4294901760
        %v4196 = vsub.f32 %v3445, %v4195
        %4197 = vmatmul.mubr.f32.gmra.mrb[0].mxu0 %v4196
        %v4198 = vpop.f32.mrb[0].mxu0
        %v4199 = vadd.f32 %v4117, %v4198
        %v4200 = vpop.f32.mrb[0].mxu0
        %4201 = vmatprep.mubr.f32.mxu0 0.0
        %v4202 = vand.u32 %v3448, 4294901760
        %v4203 = vsub.f32 %v3448, %v4202
        %4204 = vmatmul.mubr.f32.gmra.mrb[0].mxu0 %v4203
        %v4205 = vpop.f32.mrb[0].mxu0
        %v4206 = vadd.f32 %v4123, %v4205
        %v4207 = vpop.f32.mrb[0].mxu0
        %4208 = vdwg.mxu0
        %4209 = vmatprep.subr.mxu0 0.0
        %v4210 = vand.u32 %v3423, 4294901760
        %4211 = vmatpush1.msra.mxu0 %v4210
        %4212 = vmatprep.subr.mxu0 0.0
        %v4213 = vand.u32 %v3429, 4294901760
        %4214 = vmatpush1.msra.mxu0 %v4213
        %4215 = vmatprep.subr.mxu0 0.0
        %4216 = vmatpush1.msra.mxu0 0.0
        %4217 = vmatprep.subr.mxu0 0.0
        %4218 = vmatpush1.msra.mxu0 0.0
        %4219 = vmatprep.subr.mxu0 0.0
        %4220 = vmatpush1.msra.mxu0 0.0
        %4221 = vmatprep.subr.mxu0 0.0
        %4222 = vmatpush1.msra.mxu0 0.0
        %4223 = vmatprep.subr.mxu0 0.0
        %4224 = vmatpush1.msra.mxu0 0.0
        %4225 = vmatprep.subr.mxu0 0.0
        %4226 = vmatpush1.msra.mxu0 0.0
        %4227 = vmatprep.subr.mxu0 0.0
        %4228 = vmatpush1.msra.mxu0 0.0
        %4229 = vmatprep.subr.mxu0 0.0
        %4230 = vmatpush1.msra.mxu0 0.0
        %4231 = vmatprep.subr.mxu0 0.0
        %4232 = vmatpush1.msra.mxu0 0.0
        %4233 = vmatprep.subr.mxu0 0.0
        %4234 = vmatpush1.msra.mxu0 0.0
        %4235 = vmatprep.subr.mxu0 0.0
        %4236 = vmatpush1.msra.mxu0 0.0
        %4237 = vmatprep.subr.mxu0 0.0
        %4238 = vmatpush1.msra.mxu0 0.0
        %4239 = vmatprep.subr.mxu0 0.0
        %4240 = vmatpush1.msra.mxu0 0.0
        %4241 = vmatprep.subr.mxu0 0.0
        %4242 = vmatpush1.msra.mxu0 0.0
        %4243 = vmatprep.subr.mxu0 0.0
        %4244 = vmatpush1.msra.mxu0 0.0
        %4245 = vmatprep.subr.mxu0 0.0
        %4246 = vmatpush1.msra.mxu0 0.0
        %4247 = vmatprep.subr.mxu0 0.0
        %4248 = vmatpush1.msra.mxu0 0.0
        %4249 = vmatprep.subr.mxu0 0.0
        %4250 = vmatpush1.msra.mxu0 0.0
        %4251 = vmatprep.subr.mxu0 0.0
        %4252 = vmatpush1.msra.mxu0 0.0
        %4253 = vmatprep.subr.mxu0 0.0
        %4254 = vmatpush1.msra.mxu0 0.0
        %4255 = vmatprep.subr.mxu0 0.0
        %4256 = vmatpush1.msra.mxu0 0.0
        %4257 = vmatprep.subr.mxu0 0.0
        %4258 = vmatpush1.msra.mxu0 0.0
        %4259 = vmatprep.subr.mxu0 0.0
        %4260 = vmatpush1.msra.mxu0 0.0
        %4261 = vmatprep.subr.mxu0 0.0
        %4262 = vmatpush1.msra.mxu0 0.0
        %4263 = vmatprep.subr.mxu0 0.0
        %4264 = vmatpush1.msra.mxu0 0.0
        %4265 = vmatprep.subr.mxu0 0.0
        %4266 = vmatpush1.msra.mxu0 0.0
        %4267 = vmatprep.subr.mxu0 0.0
        %4268 = vmatpush1.msra.mxu0 0.0
        %4269 = vmatprep.subr.mxu0 0.0
        %4270 = vmatpush1.msra.mxu0 0.0
        %4271 = vmatprep.subr.mxu0 0.0
        %4272 = vmatpush1.msra.mxu0 0.0
        %4273 = vmatprep.subr.mxu0 0.0
        %4274 = vmatpush1.msra.mxu0 0.0
        %4275 = vmatprep.mubr.f32.mxu0 0.0
        %v4276 = vand.u32 %v3445, 4294901760
        %v4277 = vsub.f32 %v3445, %v4276
        %v4278 = vand.u32 %v4277, 4294901760
        %4279 = vmatmul.mubr.f32.gmra.mrb[0].mxu0 %v4278
        %v4280 = vpop.f32.mrb[0].mxu0
        %v4281 = vadd.f32 %v4199, %v4280
        %v4282 = vpop.f32.mrb[0].mxu0
        %4283 = vmatprep.mubr.f32.mxu0 0.0
        %v4284 = vand.u32 %v3448, 4294901760
        %v4285 = vsub.f32 %v3448, %v4284
        %v4286 = vand.u32 %v4285, 4294901760
        %4287 = vmatmul.mubr.f32.gmra.mrb[0].mxu0 %v4286
        %v4288 = vpop.f32.mrb[0].mxu0
        %v4289 = vadd.f32 %v4206, %v4288
        %v4290 = vpop.f32.mrb[0].mxu0
        %4291 = vdwg.mxu0
        %4292 = vmatprep.subr.mxu0 0.0
        %v4293 = vand.u32 %v3423, 4294901760
        %v4294 = vsub.f32 %v3423, %v4293
        %v4295 = vand.u32 %v4294, 4294901760
        %4296 = vmatpush1.msra.mxu0 %v4295
        %4297 = vmatprep.subr.mxu0 0.0
        %v4298 = vand.u32 %v3429, 4294901760
        %v4299 = vsub.f32 %v3429, %v4298
        %v4300 = vand.u32 %v4299, 4294901760
        %4301 = vmatpush1.msra.mxu0 %v4300
        %4302 = vmatprep.subr.mxu0 0.0
        %4303 = vmatpush1.msra.mxu0 0.0
        %4304 = vmatprep.subr.mxu0 0.0
        %4305 = vmatpush1.msra.mxu0 0.0
        %4306 = vmatprep.subr.mxu0 0.0
        %4307 = vmatpush1.msra.mxu0 0.0
        %4308 = vmatprep.subr.mxu0 0.0
        %4309 = vmatpush1.msra.mxu0 0.0
        %4310 = vmatprep.subr.mxu0 0.0
        %4311 = vmatpush1.msra.mxu0 0.0
        %4312 = vmatprep.subr.mxu0 0.0
        %4313 = vmatpush1.msra.mxu0 0.0
        %4314 = vmatprep.subr.mxu0 0.0
        %4315 = vmatpush1.msra.mxu0 0.0
        %4316 = vmatprep.subr.mxu0 0.0
        %4317 = vmatpush1.msra.mxu0 0.0
        %4318 = vmatprep.subr.mxu0 0.0
        %4319 = vmatpush1.msra.mxu0 0.0
        %4320 = vmatprep.subr.mxu0 0.0
        %4321 = vmatpush1.msra.mxu0 0.0
        %4322 = vmatprep.subr.mxu0 0.0
        %4323 = vmatpush1.msra.mxu0 0.0
        %4324 = vmatprep.subr.mxu0 0.0
        %4325 = vmatpush1.msra.mxu0 0.0
        %4326 = vmatprep.subr.mxu0 0.0
        %4327 = vmatpush1.msra.mxu0 0.0
        %4328 = vmatprep.subr.mxu0 0.0
        %4329 = vmatpush1.msra.mxu0 0.0
        %4330 = vmatprep.subr.mxu0 0.0
        %4331 = vmatpush1.msra.mxu0 0.0
        %4332 = vmatprep.subr.mxu0 0.0
        %4333 = vmatpush1.msra.mxu0 0.0
        %4334 = vmatprep.subr.mxu0 0.0
        %4335 = vmatpush1.msra.mxu0 0.0
        %4336 = vmatprep.subr.mxu0 0.0
        %4337 = vmatpush1.msra.mxu0 0.0
        %4338 = vmatprep.subr.mxu0 0.0
        %4339 = vmatpush1.msra.mxu0 0.0
        %4340 = vmatprep.subr.mxu0 0.0
        %4341 = vmatpush1.msra.mxu0 0.0
        %4342 = vmatprep.subr.mxu0 0.0
        %4343 = vmatpush1.msra.mxu0 0.0
        %4344 = vmatprep.subr.mxu0 0.0
        %4345 = vmatpush1.msra.mxu0 0.0
        %4346 = vmatprep.subr.mxu0 0.0
        %4347 = vmatpush1.msra.mxu0 0.0
        %4348 = vmatprep.subr.mxu0 0.0
        %4349 = vmatpush1.msra.mxu0 0.0
        %4350 = vmatprep.subr.mxu0 0.0
        %4351 = vmatpush1.msra.mxu0 0.0
        %4352 = vmatprep.subr.mxu0 0.0
        %4353 = vmatpush1.msra.mxu0 0.0
        %4354 = vmatprep.subr.mxu0 0.0
        %4355 = vmatpush1.msra.mxu0 0.0
        %4356 = vmatprep.subr.mxu0 0.0
        %4357 = vmatpush1.msra.mxu0 0.0
        %4358 = vmatprep.subr.mxu0 0.0
        %4359 = vmatpush1.msra.mxu0 0.0
        %4360 = vmatprep.subr.mxu0 0.0
        %4361 = vmatpush1.msra.mxu0 0.0
        %4362 = vmatprep.mubr.f32.mxu0 0.0
        %v4363 = vand.u32 %v3445, 4294901760
        %4364 = vmatmul.mubr.f32.gmra.mrb[0].mxu0 %v4363
        %v4365 = vpop.f32.mrb[0].mxu0
        %v4366 = vadd.f32 %v4281, %v4365
        %v4367 = vpop.f32.mrb[0].mxu0
        %4368 = vmatprep.mubr.f32.mxu0 0.0
        %v4369 = vand.u32 %v3448, 4294901760
        %4370 = vmatmul.mubr.f32.gmra.mrb[0].mxu0 %v4369
        %v4371 = vpop.f32.mrb[0].mxu0
        %v4372 = vadd.f32 %v4289, %v4371
        %v4373 = vpop.f32.mrb[0].mxu0
        %4374 = vdwg.mxu0
        %4375 = vmatprep.subr.mxu0 0.0
        %v4376 = vand.u32 %v3423, 4294901760
        %4377 = vmatpush1.msra.mxu0 %v4376
        %4378 = vmatprep.subr.mxu0 0.0
        %v4379 = vand.u32 %v3429, 4294901760
        %4380 = vmatpush1.msra.mxu0 %v4379
        %4381 = vmatprep.subr.mxu0 0.0
        %4382 = vmatpush1.msra.mxu0 0.0
        %4383 = vmatprep.subr.mxu0 0.0
        %4384 = vmatpush1.msra.mxu0 0.0
        %4385 = vmatprep.subr.mxu0 0.0
        %4386 = vmatpush1.msra.mxu0 0.0
        %4387 = vmatprep.subr.mxu0 0.0
        %4388 = vmatpush1.msra.mxu0 0.0
        %4389 = vmatprep.subr.mxu0 0.0
        %4390 = vmatpush1.msra.mxu0 0.0
        %4391 = vmatprep.subr.mxu0 0.0
        %4392 = vmatpush1.msra.mxu0 0.0
        %4393 = vmatprep.subr.mxu0 0.0
        %4394 = vmatpush1.msra.mxu0 0.0
        %4395 = vmatprep.subr.mxu0 0.0
        %4396 = vmatpush1.msra.mxu0 0.0
        %4397 = vmatprep.subr.mxu0 0.0
        %4398 = vmatpush1.msra.mxu0 0.0
        %4399 = vmatprep.subr.mxu0 0.0
        %4400 = vmatpush1.msra.mxu0 0.0
        %4401 = vmatprep.subr.mxu0 0.0
        %4402 = vmatpush1.msra.mxu0 0.0
        %4403 = vmatprep.subr.mxu0 0.0
        %4404 = vmatpush1.msra.mxu0 0.0
        %4405 = vmatprep.subr.mxu0 0.0
        %4406 = vmatpush1.msra.mxu0 0.0
        %4407 = vmatprep.subr.mxu0 0.0
        %4408 = vmatpush1.msra.mxu0 0.0
        %4409 = vmatprep.subr.mxu0 0.0
        %4410 = vmatpush1.msra.mxu0 0.0
        %4411 = vmatprep.subr.mxu0 0.0
        %4412 = vmatpush1.msra.mxu0 0.0
        %4413 = vmatprep.subr.mxu0 0.0
        %4414 = vmatpush1.msra.mxu0 0.0
        %4415 = vmatprep.subr.mxu0 0.0
        %4416 = vmatpush1.msra.mxu0 0.0
        %4417 = vmatprep.subr.mxu0 0.0
        %4418 = vmatpush1.msra.mxu0 0.0
        %4419 = vmatprep.subr.mxu0 0.0
        %4420 = vmatpush1.msra.mxu0 0.0
        %4421 = vmatprep.subr.mxu0 0.0
        %4422 = vmatpush1.msra.mxu0 0.0
        %4423 = vmatprep.subr.mxu0 0.0
        %4424 = vmatpush1.msra.mxu0 0.0
        %4425 = vmatprep.subr.mxu0 0.0
        %4426 = vmatpush1.msra.mxu0 0.0
        %4427 = vmatprep.subr.mxu0 0.0
        %4428 = vmatpush1.msra.mxu0 0.0
        %4429 = vmatprep.subr.mxu0 0.0
        %4430 = vmatpush1.msra.mxu0 0.0
        %4431 = vmatprep.subr.mxu0 0.0
        %4432 = vmatpush1.msra.mxu0 0.0
        %4433 = vmatprep.subr.mxu0 0.0
        %4434 = vmatpush1.msra.mxu0 0.0
        %4435 = vmatprep.subr.mxu0 0.0
        %4436 = vmatpush1.msra.mxu0 0.0
        %4437 = vmatprep.subr.mxu0 0.0
        %4438 = vmatpush1.msra.mxu0 0.0
        %4439 = vmatprep.subr.mxu0 0.0
        %4440 = vmatpush1.msra.mxu0 0.0
        %4441 = vmatprep.mubr.f32.mxu0 0.0
        %v4442 = vand.u32 %v3445, 4294901760
        %4443 = vmatmul.mubr.f32.gmra.mrb[0].mxu0 %v4442
        %v4444 = vpop.f32.mrb[0].mxu0
        %v4445 = vadd.f32 %v4366, %v4444
        %v4446 = vpop.f32.mrb[0].mxu0
        %4447 = vmatprep.mubr.f32.mxu0 0.0
        %v4448 = vand.u32 %v3448, 4294901760
        %4449 = vmatmul.mubr.f32.gmra.mrb[0].mxu0 %v4448
        %v4450 = vpop.f32.mrb[0].mxu0
        %v4451 = vadd.f32 %v4372, %v4450
        %v4452 = vpop.f32.mrb[0].mxu0
        %4453 = vdwg.mxu0
        %4454 = vmatprep.subr.mxu0 0.0
        %v4455 = vand.u32 %v3435, 4294901760
        %4456 = vmatpush1.msra.mxu0 %v4455
        %4457 = vmatprep.subr.mxu0 0.0
        %v4458 = vand.u32 %v3441, 4294901760
        %4459 = vmatpush1.msra.mxu0 %v4458
        %4460 = vmatprep.subr.mxu0 0.0
        %4461 = vmatpush1.msra.mxu0 0.0
        %4462 = vmatprep.subr.mxu0 0.0
        %4463 = vmatpush1.msra.mxu0 0.0
        %4464 = vmatprep.subr.mxu0 0.0
        %4465 = vmatpush1.msra.mxu0 0.0
        %4466 = vmatprep.subr.mxu0 0.0
        %4467 = vmatpush1.msra.mxu0 0.0
        %4468 = vmatprep.subr.mxu0 0.0
        %4469 = vmatpush1.msra.mxu0 0.0
        %4470 = vmatprep.subr.mxu0 0.0
        %4471 = vmatpush1.msra.mxu0 0.0
        %4472 = vmatprep.subr.mxu0 0.0
        %4473 = vmatpush1.msra.mxu0 0.0
        %4474 = vmatprep.subr.mxu0 0.0
        %4475 = vmatpush1.msra.mxu0 0.0
        %4476 = vmatprep.subr.mxu0 0.0
        %4477 = vmatpush1.msra.mxu0 0.0
        %4478 = vmatprep.subr.mxu0 0.0
        %4479 = vmatpush1.msra.mxu0 0.0
        %4480 = vmatprep.subr.mxu0 0.0
        %4481 = vmatpush1.msra.mxu0 0.0
        %4482 = vmatprep.subr.mxu0 0.0
        %4483 = vmatpush1.msra.mxu0 0.0
        %4484 = vmatprep.subr.mxu0 0.0
        %4485 = vmatpush1.msra.mxu0 0.0
        %4486 = vmatprep.subr.mxu0 0.0
        %4487 = vmatpush1.msra.mxu0 0.0
        %4488 = vmatprep.subr.mxu0 0.0
        %4489 = vmatpush1.msra.mxu0 0.0
        %4490 = vmatprep.subr.mxu0 0.0
        %4491 = vmatpush1.msra.mxu0 0.0
        %4492 = vmatprep.subr.mxu0 0.0
        %4493 = vmatpush1.msra.mxu0 0.0
        %4494 = vmatprep.subr.mxu0 0.0
        %4495 = vmatpush1.msra.mxu0 0.0
        %4496 = vmatprep.subr.mxu0 0.0
        %4497 = vmatpush1.msra.mxu0 0.0
        %4498 = vmatprep.subr.mxu0 0.0
        %4499 = vmatpush1.msra.mxu0 0.0
        %4500 = vmatprep.subr.mxu0 0.0
        %4501 = vmatpush1.msra.mxu0 0.0
        %4502 = vmatprep.subr.mxu0 0.0
        %4503 = vmatpush1.msra.mxu0 0.0
        %4504 = vmatprep.subr.mxu0 0.0
        %4505 = vmatpush1.msra.mxu0 0.0
        %4506 = vmatprep.subr.mxu0 0.0
        %4507 = vmatpush1.msra.mxu0 0.0
        %4508 = vmatprep.subr.mxu0 0.0
        %4509 = vmatpush1.msra.mxu0 0.0
        %4510 = vmatprep.subr.mxu0 0.0
        %4511 = vmatpush1.msra.mxu0 0.0
        %4512 = vmatprep.subr.mxu0 0.0
        %4513 = vmatpush1.msra.mxu0 0.0
        %4514 = vmatprep.subr.mxu0 0.0
        %4515 = vmatpush1.msra.mxu0 0.0
        %4516 = vmatprep.subr.mxu0 0.0
        %4517 = vmatpush1.msra.mxu0 0.0
        %4518 = vmatprep.subr.mxu0 0.0
        %4519 = vmatpush1.msra.mxu0 0.0
        %4520 = vmatprep.mubr.f32.mxu0 0.0
        %v4521 = vand.u32 %v3445, 4294901760
        %v4522 = vsub.f32 %v3445, %v4521
        %v4523 = vand.u32 %v4522, 4294901760
        %v4524 = vsub.f32 %v4522, %v4523
        %v4525 = vand.u32 %v4524, 4294901760
        %4526 = vmatmul.mubr.f32.gmra.mrb[0].mxu0 %v4525
        %v4527 = vpop.f32.mrb[0].mxu0
        %v4528 = vadd.f32 0.0, %v4527
        %v4529 = vpop.f32.mrb[0].mxu0
        %4530 = vmatprep.mubr.f32.mxu0 0.0
        %v4531 = vand.u32 %v3448, 4294901760
        %v4532 = vsub.f32 %v3448, %v4531
        %v4533 = vand.u32 %v4532, 4294901760
        %v4534 = vsub.f32 %v4532, %v4533
        %v4535 = vand.u32 %v4534, 4294901760
        %4536 = vmatmul.mubr.f32.gmra.mrb[0].mxu0 %v4535
        %v4537 = vpop.f32.mrb[0].mxu0
        %v4538 = vadd.f32 0.0, %v4537
        %v4539 = vpop.f32.mrb[0].mxu0
        %4540 = vdwg.mxu0
        %4541 = vmatprep.subr.mxu0 0.0
        %v4542 = vand.u32 %v3435, 4294901760
        %v4543 = vsub.f32 %v3435, %v4542
        %v4544 = vand.u32 %v4543, 4294901760
        %v4545 = vsub.f32 %v4543, %v4544
        %v4546 = vand.u32 %v4545, 4294901760
        %4547 = vmatpush1.msra.mxu0 %v4546
        %4548 = vmatprep.subr.mxu0 0.0
        %v4549 = vand.u32 %v3441, 4294901760
        %v4550 = vsub.f32 %v3441, %v4549
        %v4551 = vand.u32 %v4550, 4294901760
        %v4552 = vsub.f32 %v4550, %v4551
        %v4553 = vand.u32 %v4552, 4294901760
        %4554 = vmatpush1.msra.mxu0 %v4553
        %4555 = vmatprep.subr.mxu0 0.0
        %4556 = vmatpush1.msra.mxu0 0.0
        %4557 = vmatprep.subr.mxu0 0.0
        %4558 = vmatpush1.msra.mxu0 0.0
        %4559 = vmatprep.subr.mxu0 0.0
        %4560 = vmatpush1.msra.mxu0 0.0
        %4561 = vmatprep.subr.mxu0 0.0
        %4562 = vmatpush1.msra.mxu0 0.0
        %4563 = vmatprep.subr.mxu0 0.0
        %4564 = vmatpush1.msra.mxu0 0.0
        %4565 = vmatprep.subr.mxu0 0.0
        %4566 = vmatpush1.msra.mxu0 0.0
        %4567 = vmatprep.subr.mxu0 0.0
        %4568 = vmatpush1.msra.mxu0 0.0
        %4569 = vmatprep.subr.mxu0 0.0
        %4570 = vmatpush1.msra.mxu0 0.0
        %4571 = vmatprep.subr.mxu0 0.0
        %4572 = vmatpush1.msra.mxu0 0.0
        %4573 = vmatprep.subr.mxu0 0.0
        %4574 = vmatpush1.msra.mxu0 0.0
        %4575 = vmatprep.subr.mxu0 0.0
        %4576 = vmatpush1.msra.mxu0 0.0
        %4577 = vmatprep.subr.mxu0 0.0
        %4578 = vmatpush1.msra.mxu0 0.0
        %4579 = vmatprep.subr.mxu0 0.0
        %4580 = vmatpush1.msra.mxu0 0.0
        %4581 = vmatprep.subr.mxu0 0.0
        %4582 = vmatpush1.msra.mxu0 0.0
        %4583 = vmatprep.subr.mxu0 0.0
        %4584 = vmatpush1.msra.mxu0 0.0
        %4585 = vmatprep.subr.mxu0 0.0
        %4586 = vmatpush1.msra.mxu0 0.0
        %4587 = vmatprep.subr.mxu0 0.0
        %4588 = vmatpush1.msra.mxu0 0.0
        %4589 = vmatprep.subr.mxu0 0.0
        %4590 = vmatpush1.msra.mxu0 0.0
        %4591 = vmatprep.subr.mxu0 0.0
        %4592 = vmatpush1.msra.mxu0 0.0
        %4593 = vmatprep.subr.mxu0 0.0
        %4594 = vmatpush1.msra.mxu0 0.0
        %4595 = vmatprep.subr.mxu0 0.0
        %4596 = vmatpush1.msra.mxu0 0.0
        %4597 = vmatprep.subr.mxu0 0.0
        %4598 = vmatpush1.msra.mxu0 0.0
        %4599 = vmatprep.subr.mxu0 0.0
        %4600 = vmatpush1.msra.mxu0 0.0
        %4601 = vmatprep.subr.mxu0 0.0
        %4602 = vmatpush1.msra.mxu0 0.0
        %4603 = vmatprep.subr.mxu0 0.0
        %4604 = vmatpush1.msra.mxu0 0.0
        %4605 = vmatprep.subr.mxu0 0.0
        %4606 = vmatpush1.msra.mxu0 0.0
        %4607 = vmatprep.subr.mxu0 0.0
        %4608 = vmatpush1.msra.mxu0 0.0
        %4609 = vmatprep.subr.mxu0 0.0
        %4610 = vmatpush1.msra.mxu0 0.0
        %4611 = vmatprep.subr.mxu0 0.0
        %4612 = vmatpush1.msra.mxu0 0.0
        %4613 = vmatprep.subr.mxu0 0.0
        %4614 = vmatpush1.msra.mxu0 0.0
        %4615 = vmatprep.mubr.f32.mxu0 0.0
        %v4616 = vand.u32 %v3445, 4294901760
        %4617 = vmatmul.mubr.f32.gmra.mrb[0].mxu0 %v4616
        %v4618 = vpop.f32.mrb[0].mxu0
        %v4619 = vadd.f32 %v4528, %v4618
        %v4620 = vpop.f32.mrb[0].mxu0
        %4621 = vmatprep.mubr.f32.mxu0 0.0
        %v4622 = vand.u32 %v3448, 4294901760
        %4623 = vmatmul.mubr.f32.gmra.mrb[0].mxu0 %v4622
        %v4624 = vpop.f32.mrb[0].mxu0
        %v4625 = vadd.f32 %v4538, %v4624
        %v4626 = vpop.f32.mrb[0].mxu0
        %4627 = vdwg.mxu0
        %4628 = vmatprep.subr.mxu0 0.0
        %v4629 = vand.u32 %v3435, 4294901760
        %v4630 = vsub.f32 %v3435, %v4629
        %4631 = vmatpush1.msra.mxu0 %v4630
        %4632 = vmatprep.subr.mxu0 0.0
        %v4633 = vand.u32 %v3441, 4294901760
        %v4634 = vsub.f32 %v3441, %v4633
        %4635 = vmatpush1.msra.mxu0 %v4634
        %4636 = vmatprep.subr.mxu0 0.0
        %4637 = vmatpush1.msra.mxu0 0.0
        %4638 = vmatprep.subr.mxu0 0.0
        %4639 = vmatpush1.msra.mxu0 0.0
        %4640 = vmatprep.subr.mxu0 0.0
        %4641 = vmatpush1.msra.mxu0 0.0
        %4642 = vmatprep.subr.mxu0 0.0
        %4643 = vmatpush1.msra.mxu0 0.0
        %4644 = vmatprep.subr.mxu0 0.0
        %4645 = vmatpush1.msra.mxu0 0.0
        %4646 = vmatprep.subr.mxu0 0.0
        %4647 = vmatpush1.msra.mxu0 0.0
        %4648 = vmatprep.subr.mxu0 0.0
        %4649 = vmatpush1.msra.mxu0 0.0
        %4650 = vmatprep.subr.mxu0 0.0
        %4651 = vmatpush1.msra.mxu0 0.0
        %4652 = vmatprep.subr.mxu0 0.0
        %4653 = vmatpush1.msra.mxu0 0.0
        %4654 = vmatprep.subr.mxu0 0.0
        %4655 = vmatpush1.msra.mxu0 0.0
        %4656 = vmatprep.subr.mxu0 0.0
        %4657 = vmatpush1.msra.mxu0 0.0
        %4658 = vmatprep.subr.mxu0 0.0
        %4659 = vmatpush1.msra.mxu0 0.0
        %4660 = vmatprep.subr.mxu0 0.0
        %4661 = vmatpush1.msra.mxu0 0.0
        %4662 = vmatprep.subr.mxu0 0.0
        %4663 = vmatpush1.msra.mxu0 0.0
        %4664 = vmatprep.subr.mxu0 0.0
        %4665 = vmatpush1.msra.mxu0 0.0
        %4666 = vmatprep.subr.mxu0 0.0
        %4667 = vmatpush1.msra.mxu0 0.0
        %4668 = vmatprep.subr.mxu0 0.0
        %4669 = vmatpush1.msra.mxu0 0.0
        %4670 = vmatprep.subr.mxu0 0.0
        %4671 = vmatpush1.msra.mxu0 0.0
        %4672 = vmatprep.subr.mxu0 0.0
        %4673 = vmatpush1.msra.mxu0 0.0
        %4674 = vmatprep.subr.mxu0 0.0
        %4675 = vmatpush1.msra.mxu0 0.0
        %4676 = vmatprep.subr.mxu0 0.0
        %4677 = vmatpush1.msra.mxu0 0.0
        %4678 = vmatprep.subr.mxu0 0.0
        %4679 = vmatpush1.msra.mxu0 0.0
        %4680 = vmatprep.subr.mxu0 0.0
        %4681 = vmatpush1.msra.mxu0 0.0
        %4682 = vmatprep.subr.mxu0 0.0
        %4683 = vmatpush1.msra.mxu0 0.0
        %4684 = vmatprep.subr.mxu0 0.0
        %4685 = vmatpush1.msra.mxu0 0.0
        %4686 = vmatprep.subr.mxu0 0.0
        %4687 = vmatpush1.msra.mxu0 0.0
        %4688 = vmatprep.subr.mxu0 0.0
        %4689 = vmatpush1.msra.mxu0 0.0
        %4690 = vmatprep.subr.mxu0 0.0
        %4691 = vmatpush1.msra.mxu0 0.0
        %4692 = vmatprep.subr.mxu0 0.0
        %4693 = vmatpush1.msra.mxu0 0.0
        %4694 = vmatprep.subr.mxu0 0.0
        %4695 = vmatpush1.msra.mxu0 0.0
        %4696 = vmatprep.mubr.f32.mxu0 0.0
        %v4697 = vand.u32 %v3445, 4294901760
        %v4698 = vsub.f32 %v3445, %v4697
        %4699 = vmatmul.mubr.f32.gmra.mrb[0].mxu0 %v4698
        %v4700 = vpop.f32.mrb[0].mxu0
        %v4701 = vadd.f32 %v4619, %v4700
        %v4702 = vpop.f32.mrb[0].mxu0
        %4703 = vmatprep.mubr.f32.mxu0 0.0
        %v4704 = vand.u32 %v3448, 4294901760
        %v4705 = vsub.f32 %v3448, %v4704
        %4706 = vmatmul.mubr.f32.gmra.mrb[0].mxu0 %v4705
        %v4707 = vpop.f32.mrb[0].mxu0
        %v4708 = vadd.f32 %v4625, %v4707
        %v4709 = vpop.f32.mrb[0].mxu0
        %4710 = vdwg.mxu0
        %4711 = vmatprep.subr.mxu0 0.0
        %v4712 = vand.u32 %v3435, 4294901760
        %4713 = vmatpush1.msra.mxu0 %v4712
        %4714 = vmatprep.subr.mxu0 0.0
        %v4715 = vand.u32 %v3441, 4294901760
        %4716 = vmatpush1.msra.mxu0 %v4715
        %4717 = vmatprep.subr.mxu0 0.0
        %4718 = vmatpush1.msra.mxu0 0.0
        %4719 = vmatprep.subr.mxu0 0.0
        %4720 = vmatpush1.msra.mxu0 0.0
        %4721 = vmatprep.subr.mxu0 0.0
        %4722 = vmatpush1.msra.mxu0 0.0
        %4723 = vmatprep.subr.mxu0 0.0
        %4724 = vmatpush1.msra.mxu0 0.0
        %4725 = vmatprep.subr.mxu0 0.0
        %4726 = vmatpush1.msra.mxu0 0.0
        %4727 = vmatprep.subr.mxu0 0.0
        %4728 = vmatpush1.msra.mxu0 0.0
        %4729 = vmatprep.subr.mxu0 0.0
        %4730 = vmatpush1.msra.mxu0 0.0
        %4731 = vmatprep.subr.mxu0 0.0
        %4732 = vmatpush1.msra.mxu0 0.0
        %4733 = vmatprep.subr.mxu0 0.0
        %4734 = vmatpush1.msra.mxu0 0.0
        %4735 = vmatprep.subr.mxu0 0.0
        %4736 = vmatpush1.msra.mxu0 0.0
        %4737 = vmatprep.subr.mxu0 0.0
        %4738 = vmatpush1.msra.mxu0 0.0
        %4739 = vmatprep.subr.mxu0 0.0
        %4740 = vmatpush1.msra.mxu0 0.0
        %4741 = vmatprep.subr.mxu0 0.0
        %4742 = vmatpush1.msra.mxu0 0.0
        %4743 = vmatprep.subr.mxu0 0.0
        %4744 = vmatpush1.msra.mxu0 0.0
        %4745 = vmatprep.subr.mxu0 0.0
        %4746 = vmatpush1.msra.mxu0 0.0
        %4747 = vmatprep.subr.mxu0 0.0
        %4748 = vmatpush1.msra.mxu0 0.0
        %4749 = vmatprep.subr.mxu0 0.0
        %4750 = vmatpush1.msra.mxu0 0.0
        %4751 = vmatprep.subr.mxu0 0.0
        %4752 = vmatpush1.msra.mxu0 0.0
        %4753 = vmatprep.subr.mxu0 0.0
        %4754 = vmatpush1.msra.mxu0 0.0
        %4755 = vmatprep.subr.mxu0 0.0
        %4756 = vmatpush1.msra.mxu0 0.0
        %4757 = vmatprep.subr.mxu0 0.0
        %4758 = vmatpush1.msra.mxu0 0.0
        %4759 = vmatprep.subr.mxu0 0.0
        %4760 = vmatpush1.msra.mxu0 0.0
        %4761 = vmatprep.subr.mxu0 0.0
        %4762 = vmatpush1.msra.mxu0 0.0
        %4763 = vmatprep.subr.mxu0 0.0
        %4764 = vmatpush1.msra.mxu0 0.0
        %4765 = vmatprep.subr.mxu0 0.0
        %4766 = vmatpush1.msra.mxu0 0.0
        %4767 = vmatprep.subr.mxu0 0.0
        %4768 = vmatpush1.msra.mxu0 0.0
        %4769 = vmatprep.subr.mxu0 0.0
        %4770 = vmatpush1.msra.mxu0 0.0
        %4771 = vmatprep.subr.mxu0 0.0
        %4772 = vmatpush1.msra.mxu0 0.0
        %4773 = vmatprep.subr.mxu0 0.0
        %4774 = vmatpush1.msra.mxu0 0.0
        %4775 = vmatprep.subr.mxu0 0.0
        %4776 = vmatpush1.msra.mxu0 0.0
        %4777 = vmatprep.mubr.f32.mxu0 0.0
        %v4778 = vand.u32 %v3445, 4294901760
        %v4779 = vsub.f32 %v3445, %v4778
        %v4780 = vand.u32 %v4779, 4294901760
        %4781 = vmatmul.mubr.f32.gmra.mrb[0].mxu0 %v4780
        %v4782 = vpop.f32.mrb[0].mxu0
        %v4783 = vadd.f32 %v4701, %v4782
        %v4784 = vpop.f32.mrb[0].mxu0
        %4785 = vmatprep.mubr.f32.mxu0 0.0
        %v4786 = vand.u32 %v3448, 4294901760
        %v4787 = vsub.f32 %v3448, %v4786
        %v4788 = vand.u32 %v4787, 4294901760
        %4789 = vmatmul.mubr.f32.gmra.mrb[0].mxu0 %v4788
        %v4790 = vpop.f32.mrb[0].mxu0
        %v4791 = vadd.f32 %v4708, %v4790
        %v4792 = vpop.f32.mrb[0].mxu0
        %4793 = vdwg.mxu0
        %4794 = vmatprep.subr.mxu0 0.0
        %v4795 = vand.u32 %v3435, 4294901760
        %v4796 = vsub.f32 %v3435, %v4795
        %v4797 = vand.u32 %v4796, 4294901760
        %4798 = vmatpush1.msra.mxu0 %v4797
        %4799 = vmatprep.subr.mxu0 0.0
        %v4800 = vand.u32 %v3441, 4294901760
        %v4801 = vsub.f32 %v3441, %v4800
        %v4802 = vand.u32 %v4801, 4294901760
        %4803 = vmatpush1.msra.mxu0 %v4802
        %4804 = vmatprep.subr.mxu0 0.0
        %4805 = vmatpush1.msra.mxu0 0.0
        %4806 = vmatprep.subr.mxu0 0.0
        %4807 = vmatpush1.msra.mxu0 0.0
        %4808 = vmatprep.subr.mxu0 0.0
        %4809 = vmatpush1.msra.mxu0 0.0
        %4810 = vmatprep.subr.mxu0 0.0
        %4811 = vmatpush1.msra.mxu0 0.0
        %4812 = vmatprep.subr.mxu0 0.0
        %4813 = vmatpush1.msra.mxu0 0.0
        %4814 = vmatprep.subr.mxu0 0.0
        %4815 = vmatpush1.msra.mxu0 0.0
        %4816 = vmatprep.subr.mxu0 0.0
        %4817 = vmatpush1.msra.mxu0 0.0
        %4818 = vmatprep.subr.mxu0 0.0
        %4819 = vmatpush1.msra.mxu0 0.0
        %4820 = vmatprep.subr.mxu0 0.0
        %4821 = vmatpush1.msra.mxu0 0.0
        %4822 = vmatprep.subr.mxu0 0.0
        %4823 = vmatpush1.msra.mxu0 0.0
        %4824 = vmatprep.subr.mxu0 0.0
        %4825 = vmatpush1.msra.mxu0 0.0
        %4826 = vmatprep.subr.mxu0 0.0
        %4827 = vmatpush1.msra.mxu0 0.0
        %4828 = vmatprep.subr.mxu0 0.0
        %4829 = vmatpush1.msra.mxu0 0.0
        %4830 = vmatprep.subr.mxu0 0.0
        %4831 = vmatpush1.msra.mxu0 0.0
        %4832 = vmatprep.subr.mxu0 0.0
        %4833 = vmatpush1.msra.mxu0 0.0
        %4834 = vmatprep.subr.mxu0 0.0
        %4835 = vmatpush1.msra.mxu0 0.0
        %4836 = vmatprep.subr.mxu0 0.0
        %4837 = vmatpush1.msra.mxu0 0.0
        %4838 = vmatprep.subr.mxu0 0.0
        %4839 = vmatpush1.msra.mxu0 0.0
        %4840 = vmatprep.subr.mxu0 0.0
        %4841 = vmatpush1.msra.mxu0 0.0
        %4842 = vmatprep.subr.mxu0 0.0
        %4843 = vmatpush1.msra.mxu0 0.0
        %4844 = vmatprep.subr.mxu0 0.0
        %4845 = vmatpush1.msra.mxu0 0.0
        %4846 = vmatprep.subr.mxu0 0.0
        %4847 = vmatpush1.msra.mxu0 0.0
        %4848 = vmatprep.subr.mxu0 0.0
        %4849 = vmatpush1.msra.mxu0 0.0
        %4850 = vmatprep.subr.mxu0 0.0
        %4851 = vmatpush1.msra.mxu0 0.0
        %4852 = vmatprep.subr.mxu0 0.0
        %4853 = vmatpush1.msra.mxu0 0.0
        %4854 = vmatprep.subr.mxu0 0.0
        %4855 = vmatpush1.msra.mxu0 0.0
        %4856 = vmatprep.subr.mxu0 0.0
        %4857 = vmatpush1.msra.mxu0 0.0
        %4858 = vmatprep.subr.mxu0 0.0
        %4859 = vmatpush1.msra.mxu0 0.0
        %4860 = vmatprep.subr.mxu0 0.0
        %4861 = vmatpush1.msra.mxu0 0.0
        %4862 = vmatprep.subr.mxu0 0.0
        %4863 = vmatpush1.msra.mxu0 0.0
        %4864 = vmatprep.mubr.f32.mxu0 0.0
        %v4865 = vand.u32 %v3445, 4294901760
        %4866 = vmatmul.mubr.f32.gmra.mrb[0].mxu0 %v4865
        %v4867 = vpop.f32.mrb[0].mxu0
        %v4868 = vadd.f32 %v4783, %v4867
        %v4869 = vpop.f32.mrb[0].mxu0
        %4870 = vmatprep.mubr.f32.mxu0 0.0
        %v4871 = vand.u32 %v3448, 4294901760
        %4872 = vmatmul.mubr.f32.gmra.mrb[0].mxu0 %v4871
        %v4873 = vpop.f32.mrb[0].mxu0
        %v4874 = vadd.f32 %v4791, %v4873
        %v4875 = vpop.f32.mrb[0].mxu0
        %4876 = vdwg.mxu0
        %4877 = vmatprep.subr.mxu0 0.0
        %v4878 = vand.u32 %v3435, 4294901760
        %4879 = vmatpush1.msra.mxu0 %v4878
        %4880 = vmatprep.subr.mxu0 0.0
        %v4881 = vand.u32 %v3441, 4294901760
        %4882 = vmatpush1.msra.mxu0 %v4881
        %4883 = vmatprep.subr.mxu0 0.0
        %4884 = vmatpush1.msra.mxu0 0.0
        %4885 = vmatprep.subr.mxu0 0.0
        %4886 = vmatpush1.msra.mxu0 0.0
        %4887 = vmatprep.subr.mxu0 0.0
        %4888 = vmatpush1.msra.mxu0 0.0
        %4889 = vmatprep.subr.mxu0 0.0
        %4890 = vmatpush1.msra.mxu0 0.0
        %4891 = vmatprep.subr.mxu0 0.0
        %4892 = vmatpush1.msra.mxu0 0.0
        %4893 = vmatprep.subr.mxu0 0.0
        %4894 = vmatpush1.msra.mxu0 0.0
        %4895 = vmatprep.subr.mxu0 0.0
        %4896 = vmatpush1.msra.mxu0 0.0
        %4897 = vmatprep.subr.mxu0 0.0
        %4898 = vmatpush1.msra.mxu0 0.0
        %4899 = vmatprep.subr.mxu0 0.0
        %4900 = vmatpush1.msra.mxu0 0.0
        %4901 = vmatprep.subr.mxu0 0.0
        %4902 = vmatpush1.msra.mxu0 0.0
        %4903 = vmatprep.subr.mxu0 0.0
        %4904 = vmatpush1.msra.mxu0 0.0
        %4905 = vmatprep.subr.mxu0 0.0
        %4906 = vmatpush1.msra.mxu0 0.0
        %4907 = vmatprep.subr.mxu0 0.0
        %4908 = vmatpush1.msra.mxu0 0.0
        %4909 = vmatprep.subr.mxu0 0.0
        %4910 = vmatpush1.msra.mxu0 0.0
        %4911 = vmatprep.subr.mxu0 0.0
        %4912 = vmatpush1.msra.mxu0 0.0
        %4913 = vmatprep.subr.mxu0 0.0
        %4914 = vmatpush1.msra.mxu0 0.0
        %4915 = vmatprep.subr.mxu0 0.0
        %4916 = vmatpush1.msra.mxu0 0.0
        %4917 = vmatprep.subr.mxu0 0.0
        %4918 = vmatpush1.msra.mxu0 0.0
        %4919 = vmatprep.subr.mxu0 0.0
        %4920 = vmatpush1.msra.mxu0 0.0
        %4921 = vmatprep.subr.mxu0 0.0
        %4922 = vmatpush1.msra.mxu0 0.0
        %4923 = vmatprep.subr.mxu0 0.0
        %4924 = vmatpush1.msra.mxu0 0.0
        %4925 = vmatprep.subr.mxu0 0.0
        %4926 = vmatpush1.msra.mxu0 0.0
        %4927 = vmatprep.subr.mxu0 0.0
        %4928 = vmatpush1.msra.mxu0 0.0
        %4929 = vmatprep.subr.mxu0 0.0
        %4930 = vmatpush1.msra.mxu0 0.0
        %4931 = vmatprep.subr.mxu0 0.0
        %4932 = vmatpush1.msra.mxu0 0.0
        %4933 = vmatprep.subr.mxu0 0.0
        %4934 = vmatpush1.msra.mxu0 0.0
        %4935 = vmatprep.subr.mxu0 0.0
        %4936 = vmatpush1.msra.mxu0 0.0
        %4937 = vmatprep.subr.mxu0 0.0
        %4938 = vmatpush1.msra.mxu0 0.0
        %4939 = vmatprep.subr.mxu0 0.0
        %4940 = vmatpush1.msra.mxu0 0.0
        %4941 = vmatprep.subr.mxu0 0.0
        %4942 = vmatpush1.msra.mxu0 0.0
        %4943 = vmatprep.mubr.f32.mxu0 0.0
        %v4944 = vand.u32 %v3445, 4294901760
        %4945 = vmatmul.mubr.f32.gmra.mrb[0].mxu0 %v4944
        %v4946 = vpop.f32.mrb[0].mxu0
        %v4947 = vadd.f32 %v4868, %v4946
        %v4948 = vpop.f32.mrb[0].mxu0
        %4949 = vmatprep.mubr.f32.mxu0 0.0
        %v4950 = vand.u32 %v3448, 4294901760
        %4951 = vmatmul.mubr.f32.gmra.mrb[0].mxu0 %v4950
        %v4952 = vpop.f32.mrb[0].mxu0
        %v4953 = vadd.f32 %v4874, %v4952
        %v4954 = vpop.f32.mrb[0].mxu0
        %4955 = vdwg.mxu0
        %v4956 = vmul.f32 %v4947, 1.402
        %v4957 = vmul.f32 %v4953, 1.402
        %v4958 = vadd.f32 %v3943, %v4956
        %v4959 = vadd.f32 %v3949, %v4957
        %v4960 = vmul.f32 %v4445, 0.344136
        %v4961 = vmul.f32 %v4451, 0.344136
        %v4962 = vsub.f32 %v3943, %v4960
        %v4963 = vsub.f32 %v3949, %v4961
        %v4964 = vmul.f32 %v4947, 0.714136
        %v4965 = vmul.f32 %v4953, 0.714136
        %v4966 = vsub.f32 %v4962, %v4964
        %v4967 = vsub.f32 %v4963, %v4965
        %v4968 = vmul.f32 %v4445, 1.772
        %v4969 = vmul.f32 %v4451, 1.772
        %v4970 = vadd.f32 %v3943, %v4968
        %v4971 = vadd.f32 %v3949, %v4969
        %v4972 = vmax.f32 %v4958, 0.0
        %v4973 = vmax.f32 %v4959, 0.0
        %v4974 = vmin.f32 %v4972, 255.0
        %v4975 = vmin.f32 %v4973, 255.0
        %v4976 = vround.ne.pseudo %v4974
        %v4977 = vround.ne.pseudo %v4975
        %v4978 = vmul.f32 %v4976, 0.003921569
        %v4979 = vmul.f32 %v4977, 0.003921569
        %v4980 = vsub.f32 %v4978, %v456
        %v4981 = vsub.f32 %v4979, %v456
        %v4982 = vrcp.pop %v453
        %v4983 = vmul.f32 %v4980, %v4982
        %v4984 = vmul.f32 %v4981, %v4982
        %4985 = vst.msk [vmem:[%s438] sm:$0xff] %vm523, %v4983
        %4986 = vst.msk [vmem:[%s438 + $0x8] sm:$0xff] %vm523, %v4984
        %v4987 = vmax.f32 %v4966, 0.0
        %v4988 = vmax.f32 %v4967, 0.0
        %v4989 = vmin.f32 %v4987, 255.0
        %v4990 = vmin.f32 %v4988, 255.0
        %v4991 = vround.ne.pseudo %v4989
        %v4992 = vround.ne.pseudo %v4990
        %v4993 = vmul.f32 %v4991, 0.003921569
        %v4994 = vmul.f32 %v4992, 0.003921569
        %v4995 = vsub.f32 %v4993, %v456
        %v4996 = vsub.f32 %v4994, %v456
        %v4997 = vmul.f32 %v4995, %v4982
        %v4998 = vmul.f32 %v4996, %v4982
        %s4999 = scalar_lea.vmem %s438, 16 [#allocation15]
        %5000 = vst.msk [vmem:[%s4999] sm:$0xff] %vm523, %v4997
        %5001 = vst.msk [vmem:[%s4999 + $0x8] sm:$0xff] %vm523, %v4998
        %v5002 = vmax.f32 %v4970, 0.0
        %v5003 = vmax.f32 %v4971, 0.0
        %v5004 = vmin.f32 %v5002, 255.0
        %v5005 = vmin.f32 %v5003, 255.0
        %v5006 = vround.ne.pseudo %v5004
        %v5007 = vround.ne.pseudo %v5005
        %v5008 = vmul.f32 %v5006, 0.003921569
        %v5009 = vmul.f32 %v5007, 0.003921569
        %v5010 = vsub.f32 %v5008, %v456
        %v5011 = vsub.f32 %v5009, %v456
        %v5012 = vmul.f32 %v5010, %v4982
        %v5013 = vmul.f32 %v5011, %v4982
        %s5014 = scalar_lea.vmem %s438, 32 [#allocation15]
        %5015 = vst.msk [vmem:[%s5014] sm:$0xff] %vm523, %v5012
        %5016 = vst.msk [vmem:[%s5014 + $0x8] sm:$0xff] %vm523, %v5013
        %s5017 = sand.u32 %s237, 1
        %s5018 = scalar_lea.sflag [#allocation4], %s5017
        %s5019 = sand.u32 %s237, 1
        %s5020 = smul.addr %s5019, 48
        %s5021 = scalar_lea.vmem [#allocation15], %s5020
        // Predicated region
        $region81: #{tpu_custom_call.1} parent=51 // pred_check
          %p5022 = pneg %p247
        $region82: #{tpu_custom_call.1} parent=51 // pred_check_branch
          %5024 = sbr.rel (%p5022) target = $region84
        $region83: #{tpu_custom_call.1} parent=51 // pred_region
          %s5025 = smul.u32 2, %s35
          %s5027 = ssub.s32 768, 768
          %5028 = vsyncadd %s5018, %s5027
          %s5029 = sadd.s32 %s36, %s5025
          %s5030 = smul.addr %s34, 6
          %s5031 = sadd.s32 %s5029, %s5030
          %s5032 = smul.addr %s5031, 128
          %s5033 = scalar_lea.hbm %s8, %s5032
          %s5034 = sshll.u32 %s5021, 4
          %s5035 = int_to_ptr.vmem [resolvable:$true] %s5034
          %5040 = dma.vmem_to_hbm [thread:$0]  %s5035, 768, %s5033, %s5018, 128, 128, 8
        $region84: #{tpu_custom_call.1} parent=51 // pred_fallthru
          _
      $region52: #{tpu_custom_call.1} parent=5 // pred_fallthru
        _
      %p5041 = scmp.le.s32.totalorder 2, %s24
      // Predicated region
      $region85: #{tpu_custom_call.1} parent=5 // pred_check
        %p5042 = pneg %p5041
      $region86: #{tpu_custom_call.1} parent=5 // pred_check_branch
        %5044 = sbr.rel (%p5042) target = $region88
      $region87: #{tpu_custom_call.1} parent=5 // pred_region
        %s5045 = ssub.s32 %s24, 2
        // Predicated region
        $region89: #{tpu_custom_call.1} parent=87 // pred_check
          %p5046 = pneg %p253
        $region90: #{tpu_custom_call.1} parent=87 // pred_check_branch
          %5048 = sbr.rel (%p5046) target = $region92
        $region91: #{tpu_custom_call.1} parent=87 // pred_region
          %s5049 = sand.u32 %s238, 1
          %s5050 = scalar_lea.sflag [#allocation4], %s5049
          %s5051 = sand.u32 %s238, 1
          %s5052 = smul.addr %s5051, 48
          %s5053 = scalar_lea.vmem [#allocation15], %s5052
          %5054 = dma.done %s5050, 768
        $region92: #{tpu_custom_call.1} parent=87 // pred_fallthru
          _
      $region88: #{tpu_custom_call.1} parent=5 // pred_fallthru
        _
    $region6: #{tpu_custom_call.1} parent=1 // loop_footer
      %s28 = sadd.s32 1, %s24
    $region7: #{tpu_custom_call.1} parent=1 // loop_footer_branch
      %23 = sbr.rel target = $region3
    $region8: #{tpu_custom_call.1} parent=1 // loop_exit
      _
    %5055 = vsyncpa [#allocation3], 1
    %s5056 = scalar_lea.sflag [#allocation3], 1
    %5057 = vsyncpa %s5056, 1
    %5058 = vsyncpa [#allocation8], 1
    %5059 = vsyncpa [#allocation11], 1
    %5060 = vsyncpa [#allocation14], 1
    %5061 = vsyncpa [#allocation4], 1
    %s5062 = scalar_lea.sflag [#allocation4], 1
    %5063 = vsyncpa %s5062, 1
    %5064 = vsyncpa [#allocation5], 1
    %s5065 = scalar_lea.sflag [#allocation5], 1
    %5066 = vsyncpa %s5065, 1

</llo_original>
